<compile_context>
chip_gen: v7x
topology: tpu7x:2x2x1
jax: 0.10.0
libtpu: 0.0.40
codegen_flags: <defaults>
</compile_context>

<pallas_src>
import jax
import jax.numpy as jnp
from jax.experimental import pallas as pl
from jax.experimental.pallas import tpu as pltpu


# --------------------------------------------------------------------------
# In-kernel exact GELU (erf via XLA's / Eigen's f32 rational approximation)
# --------------------------------------------------------------------------

_ERF_ALPHA = (-2.72614225801306e-10, 2.77068142495902e-08,
              -2.10102402082508e-06, -5.69250639462346e-05,
              -7.34990630326855e-04, -2.95459980854025e-03,
              -1.60960333262415e-02)
_ERF_BETA = (-1.45660718464996e-05, -2.13374055278905e-04,
             -1.68282697438203e-03, -7.37332916720468e-03,
             -1.42647390514189e-02)


def _recip(q):
    """1/q via the EUP approximate reciprocal + one Newton step (~f32 accuracy).

    Keeps the divide off the VPU slots; the EUP has its own bundle slot."""
    r = pl.reciprocal(q, approx=True)
    return r * (2.0 - q * r)


def _erf_f32(x):
    """erf(x) ~= x * P(x^2) / Q(x^2) on [-4, 4] (same approximation XLA uses for f32)."""
    x = jnp.clip(x, -4.0, 4.0)
    x2 = x * x
    p = jnp.float32(_ERF_ALPHA[0])
    for c in _ERF_ALPHA[1:]:
        p = p * x2 + jnp.float32(c)
    q = jnp.float32(_ERF_BETA[0])
    for c in _ERF_BETA[1:]:
        q = q * x2 + jnp.float32(c)
    return x * p * _recip(q)


def _gelu_exact(x):
    # exact (erf) GELU == nn.GELU() (approximate='none')
    return 0.5 * x * (1.0 + _erf_f32(x * 0.7071067811865476))


# --------------------------------------------------------------------------
# Fused VQAHead kernel: fc_hid (1x1x1 conv) + GELU + fc_last (1x1x1 conv)
# --------------------------------------------------------------------------

def _vqa_head_kernel(x_ref, w1_ref, b1_ref, w2_ref, b2_ref, o_ref):
    # x_ref : (Cin,  ts)  channels-first activation tile (native dtype, NCDHW layout)
    # w1_ref: (Chid, Cin) fc_hid weight ;  b1_ref: (Chid, 1)
    # w2_ref: (1,  Chid)  fc_last weight;  b2_ref: (1, 1)
    # o_ref : (1,   ts)   lane-dense output tile
    x = x_ref[...].astype(jnp.float32)            # in-kernel cast (no wrapper copy)
    h = jnp.dot(w1_ref[...], x, preferred_element_type=jnp.float32) + b1_ref[...]
    g = _gelu_exact(h)
    o_ref[...] = jnp.dot(w2_ref[...], g,
                         preferred_element_type=jnp.float32) + b2_ref[...]


def _default_spatial_tile():
    """Spatial (lane) tile size: big enough to amortize the ~0.35us per-grid-step
    overhead, small enough that double-buffered activation tiles fit the scoped-VMEM
    defaults (16 MiB v5e, 32 MiB v6e/v7x; v7x has only 64 MiB physical VMEM)."""
    try:
        kind = jax.devices()[0].device_kind.lower()
    except Exception:  # defensive: fall back to the conservative size
        kind = ""
    if "v7" in kind:
        return 4096   # 2 x 12 MiB activation buffers (Cin=768 f32) ~= 24.5 MiB < 32 MiB
    return 2048       # 2 x 6 MiB (+weights) ~= 12.5 MiB, fits v5e's 16 MiB default


def vqa_head_forward(params, x, pre_pool=False, spatial_tile=None):
    """VQAHead.forward in eval mode.

    x: (N, C_in, T, H, W) float32 or bfloat16 (torch NCDHW layout) -> (N, 1, T', H', W').
    """
    # TODO(synk): nn.Dropout(p=0.5) is identity in eval mode; training-mode RNG dropout
    # (on x and on the gelu output) is not implemented in the kernel.
    w1 = jnp.asarray(params["fc_hid_w"], jnp.float32)    # (Chid, Cin)
    b1 = jnp.asarray(params["fc_hid_b"], jnp.float32)    # (Chid,)
    w2 = jnp.asarray(params["fc_last_w"], jnp.float32)   # (1, Chid)
    b2 = jnp.asarray(params["fc_last_b"], jnp.float32)   # (1,)

    N, Cin, T, H, W = x.shape
    Chid = w1.shape[0]

    if pre_pool:
        # Aesthetic head: AdaptiveAvgPool3d((1,1,1)) collapses everything to one
        # (N, Cin) vector.  A Pallas grid step would DMA a ~99%-padded 128-lane tile
        # per sample, so the two tiny GEMVs run in plain JAX instead.
        pooled = jnp.mean(x.astype(jnp.float32), axis=(2, 3, 4))        # (N, Cin)
        hp = jax.lax.Precision.HIGHEST
        h = jnp.dot(pooled, w1.T, precision=hp) + b1
        g = jax.nn.gelu(h, approximate=False)
        o = jnp.dot(g, w2.T, precision=hp) + b2
        return o.reshape(N, 1, 1, 1, 1)

    S = T * H * W
    xf = x.reshape(N, Cin, S)   # free view of NCDHW: no copy, no dtype cast, no pad

    if spatial_tile is None:
        spatial_tile = _default_spatial_tile()
    ts = min(spatial_tile, pl.cdiv(S, 128) * 128)   # lane-dense, 128-multiple tile
    n_s = pl.cdiv(S, ts)        # ragged last tile handled by Pallas masked stores
    # v7x has 2 TensorCores: make sure the "parallel" grid has >= 2 steps when possible,
    # preferring to split the spatial axis rather than collapsing it into one tile.
    if N * n_s < 2 and S > 128:
        ts = max(128, pl.cdiv(pl.cdiv(S, 2), 128) * 128)
        n_s = pl.cdiv(S, ts)

    cost = pl.CostEstimate(
        flops=int(2 * N * S * Chid * (Cin + 1)),
        transcendentals=int(N * S * Chid),                 # EUP reciprocal in the erf
        bytes_accessed=int(N * Cin * S * x.dtype.itemsize  # activation read
                           + N * S * 4                     # output write
                           + (Chid * Cin + 2 * Chid + 1) * 4))  # weights + biases

    out = pl.pallas_call(
        _vqa_head_kernel,
        out_shape=jax.ShapeDtypeStruct((N, 1, S), jnp.float32),
        grid=(N, n_s),
        in_specs=[
            pl.BlockSpec((None, Cin, ts), lambda n, s: (n, 0, s)),   # activation tile
            pl.BlockSpec((Chid, Cin), lambda n, s: (0, 0)),          # fc_hid weight
            pl.BlockSpec((Chid, 1), lambda n, s: (0, 0)),            # fc_hid bias
            pl.BlockSpec((1, Chid), lambda n, s: (0, 0)),            # fc_last weight
            pl.BlockSpec((1, 1), lambda n, s: (0, 0)),               # fc_last bias
        ],
        out_specs=pl.BlockSpec((None, 1, ts), lambda n, s: (n, 0, s)),
        compiler_params=pltpu.CompilerParams(
            dimension_semantics=("parallel", "parallel")),
        cost_estimate=cost,
    )(xf, w1, b1.reshape(Chid, 1), w2, b2.reshape(1, 1))

    return out.reshape(N, 1, T, H, W)


# --------------------------------------------------------------------------
# Pure-JAX reference (for correctness check) and parameter init
# --------------------------------------------------------------------------

def vqa_head_reference(params, x, pre_pool=False):
    x = x.astype(jnp.float32)
    if pre_pool:
        x = jnp.mean(x, axis=(2, 3, 4), keepdims=True)
    hp = jax.lax.Precision.HIGHEST
    h = jnp.einsum("oc,ncthw->nothw", params["fc_hid_w"], x, precision=hp)
    h = h + params["fc_hid_b"][None, :, None, None, None]
    g = jax.nn.gelu(h, approximate=False)
    o = jnp.einsum("oc,ncthw->nothw", params["fc_last_w"], g, precision=hp)
    return o + params["fc_last_b"][None, :, None, None, None]


def init_params(key, in_channels, hidden_channels):
    k1, k2, k3, k4 = jax.random.split(key, 4)
    # torch Conv3d weight is (out, in, 1, 1, 1); stored here pre-squeezed as (out, in).
    return dict(
        fc_hid_w=0.02 * jax.random.normal(k1, (hidden_channels, in_channels), jnp.float32),
        fc_hid_b=0.02 * jax.random.normal(k2, (hidden_channels,), jnp.float32),
        fc_last_w=0.02 * jax.random.normal(k3, (1, hidden_channels), jnp.float32),
        fc_last_b=0.02 * jax.random.normal(k4, (1,), jnp.float32),
    )


def _check(out, ref, rtol, atol, tag):
    assert bool(jnp.all(jnp.isfinite(out))), tag
    ok = bool(jnp.allclose(out, ref, rtol=rtol, atol=atol))
    assert ok, (tag, float(jnp.max(jnp.abs(out - ref))))


# --------------------------------------------------------------------------

if __name__ == "__main__":
    key = jax.random.PRNGKey(0)
    k_params, k_x, k_x2 = jax.random.split(key, 3)

    in_channels, hidden_channels = 768, 64          # VQAHead defaults
    params = init_params(k_params, in_channels, hidden_channels)

    # Technical head path (pre_pool=False, module default); S = 4*16*16 = 1024.
    x = jax.random.normal(k_x, (2, in_channels, 4, 16, 16), jnp.float32)
    out = jax.block_until_ready(vqa_head_forward(params, x))
    assert out.shape == (2, 1, 4, 16, 16), out.shape
    _check(out, vqa_head_reference(params, x), rtol=1e-4, atol=1e-4, tag="f32")

    # Ragged spatial extent (S = 2*7*7 = 98, not a multiple of 128) -> exercises the
    # masked partial-tile store path (no jnp.pad round trip).
    x2 = jax.random.normal(k_x2, (2, in_channels, 2, 7, 7), jnp.float32)
    out2 = jax.block_until_ready(vqa_head_forward(params, x2))
    assert out2.shape == (2, 1, 2, 7, 7), out2.shape
    _check(out2, vqa_head_reference(params, x2), rtol=1e-4, atol=1e-4, tag="ragged")

    # Native-bf16 activations (cast happens in-kernel; halves activation HBM traffic).
    x_bf16 = x.astype(jnp.bfloat16)
    out_bf = jax.block_until_ready(vqa_head_forward(params, x_bf16))
    assert out_bf.shape == (2, 1, 4, 16, 16), out_bf.shape
    _check(out_bf, vqa_head_reference(params, x_bf16), rtol=1e-4, atol=1e-4, tag="bf16")

    # Aesthetic head path (pre_pool=True) -> pooled GEMVs in plain JAX.
    out_pp = jax.block_until_ready(vqa_head_forward(params, x, pre_pool=True))
    assert out_pp.shape == (2, 1, 1, 1, 1), out_pp.shape
    _check(out_pp, vqa_head_reference(params, x, pre_pool=True),
           rtol=1e-5, atol=1e-5, tag="pre_pool")

    print("KERNEL_OK")
</pallas_src>

<mosaic_0001>
module attributes {stable_mosaic.version = 11 : i64} {
  func.func @_vqa_head_kernel(%arg0: i32, %arg1: i32, %arg2: memref<1x768x1024xf32, #tpu.memory_space<vmem>>, %arg3: memref<64x768xf32, #tpu.memory_space<vmem>>, %arg4: memref<64x1xf32, #tpu.memory_space<vmem>>, %arg5: memref<1x64xf32, #tpu.memory_space<vmem>>, %arg6: memref<1x1xf32, #tpu.memory_space<vmem>>, %arg7: memref<1x1x1024xf32, #tpu.memory_space<vmem>>) attributes {dimension_semantics = [#tpu.dimension_semantics<parallel>, #tpu.dimension_semantics<parallel>], iteration_bounds = array<i64: 2, 1>, scalar_prefetch = 0 : i64, scratch_operands = 0 : i64, tpu.core_type = #tpu.core_type<tc>, window_params = [{transform_indices = @transform_0, window_bounds = array<i64: 1, 768, 1024>}, {pipeline_mode = #tpu.pipeline_mode<synchronous>, transform_indices = @transform_1, window_bounds = array<i64: 64, 768>}, {pipeline_mode = #tpu.pipeline_mode<synchronous>, transform_indices = @transform_2, window_bounds = array<i64: 64, 1>}, {pipeline_mode = #tpu.pipeline_mode<synchronous>, transform_indices = @transform_3, window_bounds = array<i64: 1, 64>}, {pipeline_mode = #tpu.pipeline_mode<synchronous>, transform_indices = @transform_4, window_bounds = array<i64: 1, 1>}, {transform_indices = @transform_5, window_bounds = array<i64: 1, 1, 1024>}]} {
    %c0 = arith.constant 0 : index
    %c0_0 = arith.constant 0 : index
    %c0_1 = arith.constant 0 : index
    %0 = vector.load %arg2[%c0, %c0_0, %c0_1] : memref<1x768x1024xf32, #tpu.memory_space<vmem>>, vector<1x768x1024xf32>
    %1 = vector.shape_cast %0 : vector<1x768x1024xf32> to vector<768x1024xf32>
    %c0_2 = arith.constant 0 : index
    %c0_3 = arith.constant 0 : index
    %2 = vector.load %arg3[%c0_2, %c0_3] : memref<64x768xf32, #tpu.memory_space<vmem>>, vector<64x768xf32>
    %cst = arith.constant dense<0.000000e+00> : vector<64x1024xf32>
    %3 = tpu.matmul %2, %1, %cst {dimension_numbers = #tpu.dot_dimension_numbers<[1], [0], [0], [1], [0, 0, 1, 1], [], []>} : vector<64x768xf32>, vector<768x1024xf32>, vector<64x1024xf32> -> vector<64x1024xf32>
    %c0_4 = arith.constant 0 : index
    %c0_5 = arith.constant 0 : index
    %4 = vector.load %arg4[%c0_4, %c0_5] : memref<64x1xf32, #tpu.memory_space<vmem>>, vector<64x1xf32>
    %5 = vector.broadcast %4 : vector<64x1xf32> to vector<64x1024xf32>
    %6 = arith.addf %3, %5 : vector<64x1024xf32>
    %cst_6 = arith.constant 5.000000e-01 : f32
    %7 = vector.broadcast %cst_6 : f32 to vector<64x1024xf32>
    %8 = arith.mulf %7, %6 : vector<64x1024xf32>
    %cst_7 = arith.constant 0.707106769 : f32
    %9 = vector.broadcast %cst_7 : f32 to vector<64x1024xf32>
    %10 = arith.mulf %6, %9 : vector<64x1024xf32>
    %cst_8 = arith.constant -4.000000e+00 : f32
    %cst_9 = arith.constant 4.000000e+00 : f32
    %11 = vector.broadcast %cst_8 : f32 to vector<64x1024xf32>
    %12 = arith.maximumf %11, %10 : vector<64x1024xf32>
    %13 = vector.broadcast %cst_9 : f32 to vector<64x1024xf32>
    %14 = arith.minimumf %13, %12 : vector<64x1024xf32>
    %15 = arith.mulf %14, %14 : vector<64x1024xf32>
    %cst_10 = arith.constant -2.72614237E-10 : f32
    %16 = vector.broadcast %cst_10 : f32 to vector<64x1024xf32>
    %17 = arith.mulf %16, %15 : vector<64x1024xf32>
    %cst_11 = arith.constant 2.77068146E-8 : f32
    %18 = vector.broadcast %cst_11 : f32 to vector<64x1024xf32>
    %19 = arith.addf %17, %18 : vector<64x1024xf32>
    %20 = arith.mulf %19, %15 : vector<64x1024xf32>
    %cst_12 = arith.constant -2.10102394E-6 : f32
    %21 = vector.broadcast %cst_12 : f32 to vector<64x1024xf32>
    %22 = arith.addf %20, %21 : vector<64x1024xf32>
    %23 = arith.mulf %22, %15 : vector<64x1024xf32>
    %cst_13 = arith.constant -5.69250624E-5 : f32
    %24 = vector.broadcast %cst_13 : f32 to vector<64x1024xf32>
    %25 = arith.addf %23, %24 : vector<64x1024xf32>
    %26 = arith.mulf %25, %15 : vector<64x1024xf32>
    %cst_14 = arith.constant -7.34990637E-4 : f32
    %27 = vector.broadcast %cst_14 : f32 to vector<64x1024xf32>
    %28 = arith.addf %26, %27 : vector<64x1024xf32>
    %29 = arith.mulf %28, %15 : vector<64x1024xf32>
    %cst_15 = arith.constant -2.954600e-03 : f32
    %30 = vector.broadcast %cst_15 : f32 to vector<64x1024xf32>
    %31 = arith.addf %29, %30 : vector<64x1024xf32>
    %32 = arith.mulf %31, %15 : vector<64x1024xf32>
    %cst_16 = arith.constant -0.0160960332 : f32
    %33 = vector.broadcast %cst_16 : f32 to vector<64x1024xf32>
    %34 = arith.addf %32, %33 : vector<64x1024xf32>
    %cst_17 = arith.constant -1.45660715E-5 : f32
    %35 = vector.broadcast %cst_17 : f32 to vector<64x1024xf32>
    %36 = arith.mulf %35, %15 : vector<64x1024xf32>
    %cst_18 = arith.constant -2.13374049E-4 : f32
    %37 = vector.broadcast %cst_18 : f32 to vector<64x1024xf32>
    %38 = arith.addf %36, %37 : vector<64x1024xf32>
    %39 = arith.mulf %38, %15 : vector<64x1024xf32>
    %cst_19 = arith.constant -0.00168282702 : f32
    %40 = vector.broadcast %cst_19 : f32 to vector<64x1024xf32>
    %41 = arith.addf %39, %40 : vector<64x1024xf32>
    %42 = arith.mulf %41, %15 : vector<64x1024xf32>
    %cst_20 = arith.constant -0.00737332925 : f32
    %43 = vector.broadcast %cst_20 : f32 to vector<64x1024xf32>
    %44 = arith.addf %42, %43 : vector<64x1024xf32>
    %45 = arith.mulf %44, %15 : vector<64x1024xf32>
    %cst_21 = arith.constant -0.0142647391 : f32
    %46 = vector.broadcast %cst_21 : f32 to vector<64x1024xf32>
    %47 = arith.addf %45, %46 : vector<64x1024xf32>
    %48 = arith.mulf %14, %34 : vector<64x1024xf32>
    %49 = tpu.reciprocal %47 {approx = true} : vector<64x1024xf32> -> vector<64x1024xf32>
    %50 = arith.mulf %47, %49 : vector<64x1024xf32>
    %cst_22 = arith.constant 2.000000e+00 : f32
    %51 = vector.broadcast %cst_22 : f32 to vector<64x1024xf32>
    %52 = arith.subf %51, %50 : vector<64x1024xf32>
    %53 = arith.mulf %49, %52 : vector<64x1024xf32>
    %54 = arith.mulf %48, %53 : vector<64x1024xf32>
    %cst_23 = arith.constant 1.000000e+00 : f32
    %55 = vector.broadcast %cst_23 : f32 to vector<64x1024xf32>
    %56 = arith.addf %55, %54 : vector<64x1024xf32>
    %57 = arith.mulf %8, %56 : vector<64x1024xf32>
    %c0_24 = arith.constant 0 : index
    %c0_25 = arith.constant 0 : index
    %58 = vector.load %arg5[%c0_24, %c0_25] : memref<1x64xf32, #tpu.memory_space<vmem>>, vector<1x64xf32>
    %cst_26 = arith.constant dense<0.000000e+00> : vector<1x1024xf32>
    %59 = tpu.matmul %58, %57, %cst_26 {dimension_numbers = #tpu.dot_dimension_numbers<[1], [0], [0], [1], [0, 0, 1, 1], [], []>} : vector<1x64xf32>, vector<64x1024xf32>, vector<1x1024xf32> -> vector<1x1024xf32>
    %c0_27 = arith.constant 0 : index
    %c0_28 = arith.constant 0 : index
    %60 = vector.load %arg6[%c0_27, %c0_28] : memref<1x1xf32, #tpu.memory_space<vmem>>, vector<1x1xf32>
    %61 = vector.broadcast %60 : vector<1x1xf32> to vector<1x1024xf32>
    %62 = arith.addf %59, %61 : vector<1x1024xf32>
    %c0_29 = arith.constant 0 : index
    %c0_30 = arith.constant 0 : index
    %c0_31 = arith.constant 0 : index
    %63 = vector.load %arg7[%c0_29, %c0_30, %c0_31] : memref<1x1x1024xf32, #tpu.memory_space<vmem>>, vector<1x1x1024xf32>
    %64 = vector.shape_cast %63 : vector<1x1x1024xf32> to vector<1x1024xf32>
    %65 = vector.shape_cast %62 : vector<1x1024xf32> to vector<1x1x1024xf32>
    tpu.vector_store %arg7[%c0_29, %c0_30, %c0_31], %65 {strides = array<i32>} : memref<1x1x1024xf32, #tpu.memory_space<vmem>>, vector<1x1x1024xf32>,
    return
  }
  func.func @transform_0(%arg0: i32, %arg1: i32) -> (i32, i32, i32) {
    %c0_i32 = arith.constant 0 : i32
    %c0_i32_0 = arith.constant 0 : i32
    return %arg0, %c0_i32, %arg1 : i32, i32, i32
  }
  func.func @transform_1(%arg0: i32, %arg1: i32) -> (i32, i32) {
    %c0_i32 = arith.constant 0 : i32
    %c0_i32_0 = arith.constant 0 : i32
    %c0_i32_1 = arith.constant 0 : i32
    return %c0_i32, %c0_i32_0 : i32, i32
  }
  func.func @transform_2(%arg0: i32, %arg1: i32) -> (i32, i32) {
    %c0_i32 = arith.constant 0 : i32
    %c0_i32_0 = arith.constant 0 : i32
    %c0_i32_1 = arith.constant 0 : i32
    return %c0_i32, %c0_i32_0 : i32, i32
  }
  func.func @transform_3(%arg0: i32, %arg1: i32) -> (i32, i32) {
    %c0_i32 = arith.constant 0 : i32
    %c0_i32_0 = arith.constant 0 : i32
    %c0_i32_1 = arith.constant 0 : i32
    return %c0_i32, %c0_i32_0 : i32, i32
  }
  func.func @transform_4(%arg0: i32, %arg1: i32) -> (i32, i32) {
    %c0_i32 = arith.constant 0 : i32
    %c0_i32_0 = arith.constant 0 : i32
    %c0_i32_1 = arith.constant 0 : i32
    return %c0_i32, %c0_i32_0 : i32, i32
  }
  func.func @transform_5(%arg0: i32, %arg1: i32) -> (i32, i32, i32) {
    %c0_i32 = arith.constant 0 : i32
    %c0_i32_0 = arith.constant 0 : i32
    return %arg0, %c0_i32, %arg1 : i32, i32, i32
  }
}

</mosaic_0001>

<llo_original>
// kernel: tpu_custom_call.1
$region0: #{tpu_custom_call.1}
  #allocation0 [shape = 'u32[]', space=smem, size = 0x4, offset = 0x4, fixed_abs, tag = 'smem constant byte address 0x4 - core index']
  #allocation1 [shape = 'u32[144,128]{1,0:T(1,128)}', space=vmem, size = 0x12000, scoped, tag = 'internal scratch']
  #allocation2 [shape = 'f32[1,1]{1,0:T(1,128)S(1)}', space=vmem, size = 0x200, scoped, tag = 'scoped memory for tpu_custom_call.1']
  %s0 = inlined_call_operand.hbm [shape: f32[2,768,1024], index: 0, kind: input, shape index: {}]
  %s1 = inlined_call_operand.hbm [shape: f32[64,768], index: 1, kind: input, shape index: {}]
  %s2 = inlined_call_operand.vmem [shape: f32[64,1], index: 2, kind: input, shape index: {}]
  %s3 = inlined_call_operand.hbm [shape: f32[1,64], index: 3, kind: input, shape index: {}]
  %s4 = inlined_call_operand.<no memory space> [shape: f32[1,1], index: 4, kind: input, shape index: {}]
  %s5 = inlined_call_operand.hbm [shape: f32[2,1,1024], index: 5, kind: output, shape index: {}]
  %s6 = sld [smem:[#allocation0]]
  $region65: #{tpu_custom_call.1} parent=0
    _
  %s8 = ssub.s32 1, %s6
  %s9 = scalar_select 0, %s8, %s6
  %v10 = vstv %s4
  %11 = vst [vmem:[#allocation2] sm:$0x1] %v10
  $region1: #{tpu_custom_call.1} parent=0
    #allocation3 [shape = 'u8[6291456]{0}', space=vmem, size = 0x600000, scoped, tag = 'input window, operand 0']
    #allocation4 [shape = 's32[2]{0}', space=sflag, size = 0x8, scoped, tag = 'scoped memory for tpu_custom_call.1']
    #allocation5 [shape = 's32[2]{0}', space=sflag, size = 0x8, scoped, tag = 'scoped memory for tpu_custom_call.1']
    #allocation6 [shape = 'u8[196608]{0}', space=vmem, size = 0x30000, scoped, tag = 'input window, operand 1, single buffered']
    #allocation7 [shape = 's32[1]{0}', space=sflag, size = 0x4, scoped, tag = 'scoped memory for tpu_custom_call.1']
    #allocation8 [shape = 'u8[512]{0}', space=vmem, size = 0x400, scoped, tag = 'input window, operand 3, single buffered']
    #allocation9 [shape = 'u8[8192]{0}', space=vmem, size = 0x2000, scoped, tag = 'output window, operand 0']
    %12 = vsyncpa [#allocation4], 0
    %s13 = scalar_lea.sflag [#allocation4], 1
    %14 = vsyncpa %s13, 0
    %15 = vsyncpa [#allocation7], 0
    %16 = vsyncpa [#allocation5], 0
    %s17 = scalar_lea.sflag [#allocation5], 1
    %18 = vsyncpa %s17, 0
    loop: start=0, step=1, limit=4
    $region2: #{tpu_custom_call.1} parent=1 // loop_pre_header
      _
    $region3: #{tpu_custom_call.1} parent=1 // loop_header
      %s20 = sphi 0, %s24
      %p21 = scmp.ge.s32.totalorder %s20, 4
      %s27 = sphi 0, %s39
      %s28 = sphi 0, %s35
      %s29 = sphi 0, %s27
      %s30 = sphi 0, %s28
      %s31 = sphi 0, %s29
      %s32 = sphi 0, %s30
      %s44 = sphi 0, %s46
      %s47 = sphi 0, %s44
      %s48 = sphi 0, %s47
      %s64 = sphi 0, %s48
      %s68 = sphi 0, %s68
      %s70 = sphi 0, %s68
      %s71 = sphi 0, %s70
      %s85 = sphi 0, %s71
      %s89 = sphi 0, %s89
      %s91 = sphi 0, %s89
      %s92 = sphi 0, %s91
      %s106 = sphi 0, %s92
      %s110 = sphi 0, %s110
      %s112 = sphi 0, %s110
      %s113 = sphi 0, %s112
      %s127 = sphi 0, %s113
      %s131 = sphi 0, %s131
      %s133 = sphi 0, %s131
      %s134 = sphi 0, %s133
      %s148 = sphi 0, %s134
      %s156 = sphi 0, %s158
      %s159 = sphi 0, %s156
      %s160 = sphi 0, %s159
      %s176 = sphi 0, %s160
    $region4: #{tpu_custom_call.1} parent=1 // loop_header_branch
      %23 = sbr.rel (%p21) target = $region8
    $region5: #{tpu_custom_call.1} parent=1 // loop_body
      %s25 = ssub.s32 %s20, 1
      %s26 = ssub.s32 %s20, 2
      %s33 = sadd.s32 1, %s28
      %p34 = scmp.ge.s32.totalorder %s33, 1
      %s35 = scalar_select %p34, 0, %s33
      %s36 = sadd.s32 1, %s27
      %s37 = scalar_select %p34, %s36, %s27
      %p38 = scmp.ge.s32.totalorder %s37, 2
      %s39 = scalar_select %p38, 0, %s37
      %s40 = ssub.s32 %s27, %s39
      %s41 = ssub.s32 %s28, %s35
      %s42 = sor.u32 %s40, %s41
      %p43 = scmp.eq.s32.totalorder %s42, 0
      %s45 = sadd.s32 %s44, 1
      %s46 = scalar_select %p43, %s44, %s45
      %p49 = pneg %p43
      %p50 = scmp.eq.s32.totalorder %s20, 1
      %p51 = por %p49, %p50
      %p52 = scmp.ne.s32.totalorder %s44, %s47
      %p53 = scmp.eq.s32.totalorder %s20, 0
      %p54 = por %p52, %p53
      %p55 = scmp.ne.s32.totalorder %s44, %s47
      %p56 = scmp.eq.s32.totalorder %s25, 1
      %p57 = por %p55, %p56
      %p58 = scmp.ne.s32.totalorder %s47, %s48
      %p59 = scmp.eq.s32.totalorder %s25, 0
      %p60 = por %p58, %p59
      %p61 = scmp.ne.s32.totalorder %s47, %s48
      %p62 = scmp.eq.s32.totalorder %s26, 1
      %p63 = por %p61, %p62
      %p65 = scmp.ne.s32.totalorder %s48, %s64
      %p66 = scmp.eq.s32.totalorder %s26, 0
      %p67 = por %p65, %p66
      %s69 = sadd.s32 %s68, 1
      %p72 = scmp.eq.s32.totalorder %s20, 1
      %p73 = scmp.ne.s32.totalorder %s68, %s70
      %p74 = scmp.eq.s32.totalorder %s20, 0
      %p75 = por %p73, %p74
      %p76 = scmp.ne.s32.totalorder %s68, %s70
      %p77 = scmp.eq.s32.totalorder %s25, 1
      %p78 = por %p76, %p77
      %p79 = scmp.ne.s32.totalorder %s70, %s71
      %p80 = scmp.eq.s32.totalorder %s25, 0
      %p81 = por %p79, %p80
      %p82 = scmp.ne.s32.totalorder %s70, %s71
      %p83 = scmp.eq.s32.totalorder %s26, 1
      %p84 = por %p82, %p83
      %p86 = scmp.ne.s32.totalorder %s71, %s85
      %p87 = scmp.eq.s32.totalorder %s26, 0
      %p88 = por %p86, %p87
      %s90 = sadd.s32 %s89, 1
      %p93 = scmp.eq.s32.totalorder %s20, 1
      %p94 = scmp.ne.s32.totalorder %s89, %s91
      %p95 = scmp.eq.s32.totalorder %s20, 0
      %p96 = por %p94, %p95
      %p97 = scmp.ne.s32.totalorder %s89, %s91
      %p98 = scmp.eq.s32.totalorder %s25, 1
      %p99 = por %p97, %p98
      %p100 = scmp.ne.s32.totalorder %s91, %s92
      %p101 = scmp.eq.s32.totalorder %s25, 0
      %p102 = por %p100, %p101
      %p103 = scmp.ne.s32.totalorder %s91, %s92
      %p104 = scmp.eq.s32.totalorder %s26, 1
      %p105 = por %p103, %p104
      %p107 = scmp.ne.s32.totalorder %s92, %s106
      %p108 = scmp.eq.s32.totalorder %s26, 0
      %p109 = por %p107, %p108
      %s111 = sadd.s32 %s110, 1
      %p114 = scmp.eq.s32.totalorder %s20, 1
      %p115 = scmp.ne.s32.totalorder %s110, %s112
      %p116 = scmp.eq.s32.totalorder %s20, 0
      %p117 = por %p115, %p116
      %p118 = scmp.ne.s32.totalorder %s110, %s112
      %p119 = scmp.eq.s32.totalorder %s25, 1
      %p120 = por %p118, %p119
      %p121 = scmp.ne.s32.totalorder %s112, %s113
      %p122 = scmp.eq.s32.totalorder %s25, 0
      %p123 = por %p121, %p122
      %p124 = scmp.ne.s32.totalorder %s112, %s113
      %p125 = scmp.eq.s32.totalorder %s26, 1
      %p126 = por %p124, %p125
      %p128 = scmp.ne.s32.totalorder %s113, %s127
      %p129 = scmp.eq.s32.totalorder %s26, 0
      %p130 = por %p128, %p129
      %s132 = sadd.s32 %s131, 1
      %p135 = scmp.eq.s32.totalorder %s20, 1
      %p136 = scmp.ne.s32.totalorder %s131, %s133
      %p137 = scmp.eq.s32.totalorder %s20, 0
      %p138 = por %p136, %p137
      %p139 = scmp.ne.s32.totalorder %s131, %s133
      %p140 = scmp.eq.s32.totalorder %s25, 1
      %p141 = por %p139, %p140
      %p142 = scmp.ne.s32.totalorder %s133, %s134
      %p143 = scmp.eq.s32.totalorder %s25, 0
      %p144 = por %p142, %p143
      %p145 = scmp.ne.s32.totalorder %s133, %s134
      %p146 = scmp.eq.s32.totalorder %s26, 1
      %p147 = por %p145, %p146
      %p149 = scmp.ne.s32.totalorder %s134, %s148
      %p150 = scmp.eq.s32.totalorder %s26, 0
      %p151 = por %p149, %p150
      %s152 = ssub.s32 %s27, %s39
      %s153 = ssub.s32 %s28, %s35
      %s154 = sor.u32 %s152, %s153
      %p155 = scmp.eq.s32.totalorder %s154, 0
      %s157 = sadd.s32 %s156, 1
      %s158 = scalar_select %p155, %s156, %s157
      %p161 = pneg %p155
      %p162 = scmp.eq.s32.totalorder %s20, 1
      %p163 = por %p161, %p162
      %p164 = scmp.ne.s32.totalorder %s156, %s159
      %p165 = scmp.eq.s32.totalorder %s20, 0
      %p166 = por %p164, %p165
      %p167 = scmp.ne.s32.totalorder %s156, %s159
      %p168 = scmp.eq.s32.totalorder %s25, 1
      %p169 = por %p167, %p168
      %p170 = scmp.ne.s32.totalorder %s159, %s160
      %p171 = scmp.eq.s32.totalorder %s25, 0
      %p172 = por %p170, %p171
      %p173 = scmp.ne.s32.totalorder %s159, %s160
      %p174 = scmp.eq.s32.totalorder %s26, 1
      %p175 = por %p173, %p174
      %p177 = scmp.ne.s32.totalorder %s160, %s176
      %p178 = scmp.eq.s32.totalorder %s26, 0
      %p179 = por %p177, %p178
      %p180 = scmp.le.s32.totalorder 1, %s20
      %p181 = scmp.lt.s32.totalorder %s20, 3
      %p182 = pnand %p180, %p181
      %p183 = pneg %p182
      // Predicated region
      $region9: #{tpu_custom_call.1} parent=5 // pred_check
        _
      $region10: #{tpu_custom_call.1} parent=5 // pred_check_branch
        %185 = sbr.rel (%p182) target = $region12
      $region11: #{tpu_custom_call.1} parent=5 // pred_region
        %s186 = ssub.s32 %s20, 1
        // Predicated region
        $region13: #{tpu_custom_call.1} parent=11 // pred_check
          %p187 = pneg %p81
        $region14: #{tpu_custom_call.1} parent=11 // pred_check_branch
          %189 = sbr.rel (%p187) target = $region16
        $region15: #{tpu_custom_call.1} parent=11 // pred_region
          %s191 = ssub.s32 6144, 6144
          %192 = vsyncadd [#allocation7], %s191
          %s193 = sshll.u32 [#allocation6], 4
          %s194 = int_to_ptr.vmem [resolvable:$true] %s193
          %199 = dma.hbm_to_vmem [thread:$0]  %s1, 6144, %s194, [#allocation7], 768, 768, 48
        $region16: #{tpu_custom_call.1} parent=11 // pred_fallthru
          _
        // Predicated region
        $region17: #{tpu_custom_call.1} parent=11 // pred_check
          %p200 = pneg %p102
        $region18: #{tpu_custom_call.1} parent=11 // pred_check_branch
          %202 = sbr.rel (%p200) target = $region20
        $region19: #{tpu_custom_call.1} parent=11 // pred_region
          _
        $region20: #{tpu_custom_call.1} parent=11 // pred_fallthru
          _
        // Predicated region
        $region21: #{tpu_custom_call.1} parent=11 // pred_check
          %p203 = pneg %p123
        $region22: #{tpu_custom_call.1} parent=11 // pred_check_branch
          %205 = sbr.rel (%p203) target = $region24
        $region23: #{tpu_custom_call.1} parent=11 // pred_region
          %s207 = ssub.s32 16, 16
          %208 = vsyncadd [#allocation7], %s207
          %s210 = sshll.u32 [#allocation8], 4
          %s211 = int_to_ptr.vmem [resolvable:$true] %s210
          %213 = dma.hbm_to_vmem [thread:$0]  %s3, 16, %s211, [#allocation7]
        $region24: #{tpu_custom_call.1} parent=11 // pred_fallthru
          _
        // Predicated region
        $region25: #{tpu_custom_call.1} parent=11 // pred_check
          %p214 = pneg %p144
        $region26: #{tpu_custom_call.1} parent=11 // pred_check_branch
          %216 = sbr.rel (%p214) target = $region28
        $region27: #{tpu_custom_call.1} parent=11 // pred_region
          _
        $region28: #{tpu_custom_call.1} parent=11 // pred_fallthru
          _
      $region12: #{tpu_custom_call.1} parent=5 // pred_fallthru
        _
      %p217 = scmp.lt.s32.totalorder %s20, 2
      // Predicated region
      $region29: #{tpu_custom_call.1} parent=5 // pred_check
        %p218 = pneg %p217
      $region30: #{tpu_custom_call.1} parent=5 // pred_check_branch
        %220 = sbr.rel (%p218) target = $region32
      $region31: #{tpu_custom_call.1} parent=5 // pred_region
        // Predicated region
        $region33: #{tpu_custom_call.1} parent=31 // pred_check
          %p221 = pneg %p54
        $region34: #{tpu_custom_call.1} parent=31 // pred_check_branch
          %223 = sbr.rel (%p221) target = $region36
        $region35: #{tpu_custom_call.1} parent=31 // pred_region
          %s224 = sand.u32 %s44, 1
          %s225 = scalar_lea.sflag [#allocation4], %s224
          %s226 = sand.u32 %s44, 1
          %s227 = smul.addr %s226, 6144
          %s228 = scalar_lea.vmem [#allocation3], %s227
          %s229 = smul.u32 8, %s28
          %s231 = ssub.s32 98304, 98304
          %232 = vsyncadd %s225, %s231
          %s233 = smul.addr %s27, 768
          %s234 = sadd.s32 %s229, %s233
          %s235 = smul.addr %s234, 128
          %s236 = scalar_lea.hbm %s0, %s235
          %s237 = sshll.u32 %s228, 4
          %s238 = int_to_ptr.vmem [resolvable:$true] %s237
          %243 = dma.hbm_to_vmem [thread:$0]  %s236, 98304, %s238, %s225, 1024, 1024, 64
        $region36: #{tpu_custom_call.1} parent=31 // pred_fallthru
          _
      $region32: #{tpu_custom_call.1} parent=5 // pred_fallthru
        _
      %p244 = scmp.le.s32.totalorder 1, %s20
      %p245 = scmp.lt.s32.totalorder %s20, 3
      %p246 = pnand %p244, %p245
      %p247 = pneg %p246
      // Predicated region
      $region37: #{tpu_custom_call.1} parent=5 // pred_check
        _
      $region38: #{tpu_custom_call.1} parent=5 // pred_check_branch
        %249 = sbr.rel (%p246) target = $region40
      $region39: #{tpu_custom_call.1} parent=5 // pred_region
        %s250 = ssub.s32 %s20, 1
        %s251 = sand.u32 %s47, 1
        %s252 = scalar_lea.sflag [#allocation4], %s251
        %s253 = sand.u32 %s47, 1
        %s254 = smul.addr %s253, 6144
        %s255 = scalar_lea.vmem [#allocation3], %s254
        // Predicated region
        $region41: #{tpu_custom_call.1} parent=39 // pred_check
          %p256 = pneg %p60
        $region42: #{tpu_custom_call.1} parent=39 // pred_check_branch
          %258 = sbr.rel (%p256) target = $region44
        $region43: #{tpu_custom_call.1} parent=39 // pred_region
          %259 = dma.done %s252, 98304
        $region44: #{tpu_custom_call.1} parent=39 // pred_fallthru
          _
        // Predicated region
        $region45: #{tpu_custom_call.1} parent=39 // pred_check
          %p260 = pneg %p81
        $region46: #{tpu_custom_call.1} parent=39 // pred_check_branch
          %262 = sbr.rel (%p260) target = $region48
        $region47: #{tpu_custom_call.1} parent=39 // pred_region
          %263 = dma.done [#allocation7], 6144
        $region48: #{tpu_custom_call.1} parent=39 // pred_fallthru
          _
        // Predicated region
        $region49: #{tpu_custom_call.1} parent=39 // pred_check
          %p264 = pneg %p123
        $region50: #{tpu_custom_call.1} parent=39 // pred_check_branch
          %266 = sbr.rel (%p264) target = $region52
        $region51: #{tpu_custom_call.1} parent=39 // pred_region
          %267 = dma.done [#allocation7], 16
        $region52: #{tpu_custom_call.1} parent=39 // pred_fallthru
          _
        %s268 = sand.u32 %s47, 1
        %s269 = scalar_lea.sflag [#allocation4], %s268
        %s270 = sand.u32 %s47, 1
        %s271 = smul.addr %s270, 6144
        %s272 = scalar_lea.vmem [#allocation3], %s271
        %p273 = pneg %p60
        %p274 = pneg %p57
        %p275 = pneg %p81
        %p276 = pneg %p78
        %p277 = pneg %p102
        %p278 = pneg %p99
        %p279 = pneg %p123
        %p280 = pneg %p120
        %p281 = pneg %p144
        %p282 = pneg %p141
        %p283 = pneg %p172
        %p284 = pneg %p169
        %s285 = sand.u32 %s159, 1
        %s286 = scalar_lea.sflag [#allocation5], %s285
        %s287 = sand.u32 %s159, 1
        %s288 = smul.addr %s287, 8
        %s289 = scalar_lea.vmem [#allocation9], %s288
        %s290 = smul.u32 8, %s30
        %s291 = smul.u32 8, %s30
        %v292 = vld [vmem:[%s255] sm:$0xff]
        %v293 = vld [vmem:[%s255 + $0x8] sm:$0xff]
        %v294 = vld [vmem:[%s255 + $0x10] sm:$0xff]
        %v295 = vld [vmem:[%s255 + $0x18] sm:$0xff]
        %v296 = vld [vmem:[%s255 + $0x20] sm:$0xff]
        %v297 = vld [vmem:[%s255 + $0x28] sm:$0xff]
        %v298 = vld [vmem:[%s255 + $0x30] sm:$0xff]
        %v299 = vld [vmem:[%s255 + $0x38] sm:$0xff]
        %v300 = vld [vmem:[%s255 + $0x40] sm:$0xff]
        %v301 = vld [vmem:[%s255 + $0x48] sm:$0xff]
        %v302 = vld [vmem:[%s255 + $0x50] sm:$0xff]
        %v303 = vld [vmem:[%s255 + $0x58] sm:$0xff]
        %v304 = vld [vmem:[%s255 + $0x60] sm:$0xff]
        %v305 = vld [vmem:[%s255 + $0x68] sm:$0xff]
        %v306 = vld [vmem:[%s255 + $0x70] sm:$0xff]
        %v307 = vld [vmem:[%s255 + $0x78] sm:$0xff]
        %v308 = vld [vmem:[%s255 + $0x80] sm:$0xff]
        %v309 = vld [vmem:[%s255 + $0x88] sm:$0xff]
        %v310 = vld [vmem:[%s255 + $0x90] sm:$0xff]
        %v311 = vld [vmem:[%s255 + $0x98] sm:$0xff]
        %v312 = vld [vmem:[%s255 + $0xa0] sm:$0xff]
        %v313 = vld [vmem:[%s255 + $0xa8] sm:$0xff]
        %v314 = vld [vmem:[%s255 + $0xb0] sm:$0xff]
        %v315 = vld [vmem:[%s255 + $0xb8] sm:$0xff]
        %v316 = vld [vmem:[%s255 + $0xc0] sm:$0xff]
        %v317 = vld [vmem:[%s255 + $0xc8] sm:$0xff]
        %v318 = vld [vmem:[%s255 + $0xd0] sm:$0xff]
        %v319 = vld [vmem:[%s255 + $0xd8] sm:$0xff]
        %v320 = vld [vmem:[%s255 + $0xe0] sm:$0xff]
        %v321 = vld [vmem:[%s255 + $0xe8] sm:$0xff]
        %v322 = vld [vmem:[%s255 + $0xf0] sm:$0xff]
        %v323 = vld [vmem:[%s255 + $0xf8] sm:$0xff]
        %v324 = vld [vmem:[%s255 + $0x100] sm:$0xff]
        %v325 = vld [vmem:[%s255 + $0x108] sm:$0xff]
        %v326 = vld [vmem:[%s255 + $0x110] sm:$0xff]
        %v327 = vld [vmem:[%s255 + $0x118] sm:$0xff]
        %v328 = vld [vmem:[%s255 + $0x120] sm:$0xff]
        %v329 = vld [vmem:[%s255 + $0x128] sm:$0xff]
        %v330 = vld [vmem:[%s255 + $0x130] sm:$0xff]
        %v331 = vld [vmem:[%s255 + $0x138] sm:$0xff]
        %v332 = vld [vmem:[%s255 + $0x140] sm:$0xff]
        %v333 = vld [vmem:[%s255 + $0x148] sm:$0xff]
        %v334 = vld [vmem:[%s255 + $0x150] sm:$0xff]
        %v335 = vld [vmem:[%s255 + $0x158] sm:$0xff]
        %v336 = vld [vmem:[%s255 + $0x160] sm:$0xff]
        %v337 = vld [vmem:[%s255 + $0x168] sm:$0xff]
        %v338 = vld [vmem:[%s255 + $0x170] sm:$0xff]
        %v339 = vld [vmem:[%s255 + $0x178] sm:$0xff]
        %v340 = vld [vmem:[%s255 + $0x180] sm:$0xff]
        %v341 = vld [vmem:[%s255 + $0x188] sm:$0xff]
        %v342 = vld [vmem:[%s255 + $0x190] sm:$0xff]
        %v343 = vld [vmem:[%s255 + $0x198] sm:$0xff]
        %v344 = vld [vmem:[%s255 + $0x1a0] sm:$0xff]
        %v345 = vld [vmem:[%s255 + $0x1a8] sm:$0xff]
        %v346 = vld [vmem:[%s255 + $0x1b0] sm:$0xff]
        %v347 = vld [vmem:[%s255 + $0x1b8] sm:$0xff]
        %v348 = vld [vmem:[%s255 + $0x1c0] sm:$0xff]
        %v349 = vld [vmem:[%s255 + $0x1c8] sm:$0xff]
        %v350 = vld [vmem:[%s255 + $0x1d0] sm:$0xff]
        %v351 = vld [vmem:[%s255 + $0x1d8] sm:$0xff]
        %v352 = vld [vmem:[%s255 + $0x1e0] sm:$0xff]
        %v353 = vld [vmem:[%s255 + $0x1e8] sm:$0xff]
        %v354 = vld [vmem:[%s255 + $0x1f0] sm:$0xff]
        %v355 = vld [vmem:[%s255 + $0x1f8] sm:$0xff]
        %v356 = vld [vmem:[%s255 + $0x200] sm:$0xff]
        %v357 = vld [vmem:[%s255 + $0x208] sm:$0xff]
        %v358 = vld [vmem:[%s255 + $0x210] sm:$0xff]
        %v359 = vld [vmem:[%s255 + $0x218] sm:$0xff]
        %v360 = vld [vmem:[%s255 + $0x220] sm:$0xff]
        %v361 = vld [vmem:[%s255 + $0x228] sm:$0xff]
        %v362 = vld [vmem:[%s255 + $0x230] sm:$0xff]
        %v363 = vld [vmem:[%s255 + $0x238] sm:$0xff]
        %v364 = vld [vmem:[%s255 + $0x240] sm:$0xff]
        %v365 = vld [vmem:[%s255 + $0x248] sm:$0xff]
        %v366 = vld [vmem:[%s255 + $0x250] sm:$0xff]
        %v367 = vld [vmem:[%s255 + $0x258] sm:$0xff]
        %v368 = vld [vmem:[%s255 + $0x260] sm:$0xff]
        %v369 = vld [vmem:[%s255 + $0x268] sm:$0xff]
        %v370 = vld [vmem:[%s255 + $0x270] sm:$0xff]
        %v371 = vld [vmem:[%s255 + $0x278] sm:$0xff]
        %v372 = vld [vmem:[%s255 + $0x280] sm:$0xff]
        %v373 = vld [vmem:[%s255 + $0x288] sm:$0xff]
        %v374 = vld [vmem:[%s255 + $0x290] sm:$0xff]
        %v375 = vld [vmem:[%s255 + $0x298] sm:$0xff]
        %v376 = vld [vmem:[%s255 + $0x2a0] sm:$0xff]
        %v377 = vld [vmem:[%s255 + $0x2a8] sm:$0xff]
        %v378 = vld [vmem:[%s255 + $0x2b0] sm:$0xff]
        %v379 = vld [vmem:[%s255 + $0x2b8] sm:$0xff]
        %v380 = vld [vmem:[%s255 + $0x2c0] sm:$0xff]
        %v381 = vld [vmem:[%s255 + $0x2c8] sm:$0xff]
        %v382 = vld [vmem:[%s255 + $0x2d0] sm:$0xff]
        %v383 = vld [vmem:[%s255 + $0x2d8] sm:$0xff]
        %v384 = vld [vmem:[%s255 + $0x2e0] sm:$0xff]
        %v385 = vld [vmem:[%s255 + $0x2e8] sm:$0xff]
        %v386 = vld [vmem:[%s255 + $0x2f0] sm:$0xff]
        %v387 = vld [vmem:[%s255 + $0x2f8] sm:$0xff]
        %v388 = vld [vmem:[%s255 + $0x300] sm:$0xff]
        %v389 = vld [vmem:[%s255 + $0x308] sm:$0xff]
        %v390 = vld [vmem:[%s255 + $0x310] sm:$0xff]
        %v391 = vld [vmem:[%s255 + $0x318] sm:$0xff]
        %v392 = vld [vmem:[%s255 + $0x320] sm:$0xff]
        %v393 = vld [vmem:[%s255 + $0x328] sm:$0xff]
        %v394 = vld [vmem:[%s255 + $0x330] sm:$0xff]
        %v395 = vld [vmem:[%s255 + $0x338] sm:$0xff]
        %v396 = vld [vmem:[%s255 + $0x340] sm:$0xff]
        %v397 = vld [vmem:[%s255 + $0x348] sm:$0xff]
        %v398 = vld [vmem:[%s255 + $0x350] sm:$0xff]
        %v399 = vld [vmem:[%s255 + $0x358] sm:$0xff]
        %v400 = vld [vmem:[%s255 + $0x360] sm:$0xff]
        %v401 = vld [vmem:[%s255 + $0x368] sm:$0xff]
        %v402 = vld [vmem:[%s255 + $0x370] sm:$0xff]
        %v403 = vld [vmem:[%s255 + $0x378] sm:$0xff]
        %v404 = vld [vmem:[%s255 + $0x380] sm:$0xff]
        %v405 = vld [vmem:[%s255 + $0x388] sm:$0xff]
        %v406 = vld [vmem:[%s255 + $0x390] sm:$0xff]
        %v407 = vld [vmem:[%s255 + $0x398] sm:$0xff]
        %v408 = vld [vmem:[%s255 + $0x3a0] sm:$0xff]
        %v409 = vld [vmem:[%s255 + $0x3a8] sm:$0xff]
        %v410 = vld [vmem:[%s255 + $0x3b0] sm:$0xff]
        %v411 = vld [vmem:[%s255 + $0x3b8] sm:$0xff]
        %v412 = vld [vmem:[%s255 + $0x3c0] sm:$0xff]
        %v413 = vld [vmem:[%s255 + $0x3c8] sm:$0xff]
        %v414 = vld [vmem:[%s255 + $0x3d0] sm:$0xff]
        %v415 = vld [vmem:[%s255 + $0x3d8] sm:$0xff]
        %v416 = vld [vmem:[%s255 + $0x3e0] sm:$0xff]
        %v417 = vld [vmem:[%s255 + $0x3e8] sm:$0xff]
        %v418 = vld [vmem:[%s255 + $0x3f0] sm:$0xff]
        %v419 = vld [vmem:[%s255 + $0x3f8] sm:$0xff]
        %v420 = vld [vmem:[%s255 + $0x400] sm:$0xff]
        %v421 = vld [vmem:[%s255 + $0x408] sm:$0xff]
        %v422 = vld [vmem:[%s255 + $0x410] sm:$0xff]
        %v423 = vld [vmem:[%s255 + $0x418] sm:$0xff]
        %v424 = vld [vmem:[%s255 + $0x420] sm:$0xff]
        %v425 = vld [vmem:[%s255 + $0x428] sm:$0xff]
        %v426 = vld [vmem:[%s255 + $0x430] sm:$0xff]
        %v427 = vld [vmem:[%s255 + $0x438] sm:$0xff]
        %v428 = vld [vmem:[%s255 + $0x440] sm:$0xff]
        %v429 = vld [vmem:[%s255 + $0x448] sm:$0xff]
        %v430 = vld [vmem:[%s255 + $0x450] sm:$0xff]
        %v431 = vld [vmem:[%s255 + $0x458] sm:$0xff]
        %v432 = vld [vmem:[%s255 + $0x460] sm:$0xff]
        %v433 = vld [vmem:[%s255 + $0x468] sm:$0xff]
        %v434 = vld [vmem:[%s255 + $0x470] sm:$0xff]
        %v435 = vld [vmem:[%s255 + $0x478] sm:$0xff]
        %v436 = vld [vmem:[%s255 + $0x480] sm:$0xff]
        %v437 = vld [vmem:[%s255 + $0x488] sm:$0xff]
        %v438 = vld [vmem:[%s255 + $0x490] sm:$0xff]
        %v439 = vld [vmem:[%s255 + $0x498] sm:$0xff]
        %v440 = vld [vmem:[%s255 + $0x4a0] sm:$0xff]
        %v441 = vld [vmem:[%s255 + $0x4a8] sm:$0xff]
        %v442 = vld [vmem:[%s255 + $0x4b0] sm:$0xff]
        %v443 = vld [vmem:[%s255 + $0x4b8] sm:$0xff]
        %v444 = vld [vmem:[%s255 + $0x4c0] sm:$0xff]
        %v445 = vld [vmem:[%s255 + $0x4c8] sm:$0xff]
        %v446 = vld [vmem:[%s255 + $0x4d0] sm:$0xff]
        %v447 = vld [vmem:[%s255 + $0x4d8] sm:$0xff]
        %v448 = vld [vmem:[%s255 + $0x4e0] sm:$0xff]
        %v449 = vld [vmem:[%s255 + $0x4e8] sm:$0xff]
        %v450 = vld [vmem:[%s255 + $0x4f0] sm:$0xff]
        %v451 = vld [vmem:[%s255 + $0x4f8] sm:$0xff]
        %v452 = vld [vmem:[%s255 + $0x500] sm:$0xff]
        %v453 = vld [vmem:[%s255 + $0x508] sm:$0xff]
        %v454 = vld [vmem:[%s255 + $0x510] sm:$0xff]
        %v455 = vld [vmem:[%s255 + $0x518] sm:$0xff]
        %v456 = vld [vmem:[%s255 + $0x520] sm:$0xff]
        %v457 = vld [vmem:[%s255 + $0x528] sm:$0xff]
        %v458 = vld [vmem:[%s255 + $0x530] sm:$0xff]
        %v459 = vld [vmem:[%s255 + $0x538] sm:$0xff]
        %v460 = vld [vmem:[%s255 + $0x540] sm:$0xff]
        %v461 = vld [vmem:[%s255 + $0x548] sm:$0xff]
        %v462 = vld [vmem:[%s255 + $0x550] sm:$0xff]
        %v463 = vld [vmem:[%s255 + $0x558] sm:$0xff]
        %v464 = vld [vmem:[%s255 + $0x560] sm:$0xff]
        %v465 = vld [vmem:[%s255 + $0x568] sm:$0xff]
        %v466 = vld [vmem:[%s255 + $0x570] sm:$0xff]
        %v467 = vld [vmem:[%s255 + $0x578] sm:$0xff]
        %v468 = vld [vmem:[%s255 + $0x580] sm:$0xff]
        %v469 = vld [vmem:[%s255 + $0x588] sm:$0xff]
        %v470 = vld [vmem:[%s255 + $0x590] sm:$0xff]
        %v471 = vld [vmem:[%s255 + $0x598] sm:$0xff]
        %v472 = vld [vmem:[%s255 + $0x5a0] sm:$0xff]
        %v473 = vld [vmem:[%s255 + $0x5a8] sm:$0xff]
        %v474 = vld [vmem:[%s255 + $0x5b0] sm:$0xff]
        %v475 = vld [vmem:[%s255 + $0x5b8] sm:$0xff]
        %v476 = vld [vmem:[%s255 + $0x5c0] sm:$0xff]
        %v477 = vld [vmem:[%s255 + $0x5c8] sm:$0xff]
        %v478 = vld [vmem:[%s255 + $0x5d0] sm:$0xff]
        %v479 = vld [vmem:[%s255 + $0x5d8] sm:$0xff]
        %v480 = vld [vmem:[%s255 + $0x5e0] sm:$0xff]
        %v481 = vld [vmem:[%s255 + $0x5e8] sm:$0xff]
        %v482 = vld [vmem:[%s255 + $0x5f0] sm:$0xff]
        %v483 = vld [vmem:[%s255 + $0x5f8] sm:$0xff]
        %v484 = vld [vmem:[%s255 + $0x600] sm:$0xff]
        %v485 = vld [vmem:[%s255 + $0x608] sm:$0xff]
        %v486 = vld [vmem:[%s255 + $0x610] sm:$0xff]
        %v487 = vld [vmem:[%s255 + $0x618] sm:$0xff]
        %v488 = vld [vmem:[%s255 + $0x620] sm:$0xff]
        %v489 = vld [vmem:[%s255 + $0x628] sm:$0xff]
        %v490 = vld [vmem:[%s255 + $0x630] sm:$0xff]
        %v491 = vld [vmem:[%s255 + $0x638] sm:$0xff]
        %v492 = vld [vmem:[%s255 + $0x640] sm:$0xff]
        %v493 = vld [vmem:[%s255 + $0x648] sm:$0xff]
        %v494 = vld [vmem:[%s255 + $0x650] sm:$0xff]
        %v495 = vld [vmem:[%s255 + $0x658] sm:$0xff]
        %v496 = vld [vmem:[%s255 + $0x660] sm:$0xff]
        %v497 = vld [vmem:[%s255 + $0x668] sm:$0xff]
        %v498 = vld [vmem:[%s255 + $0x670] sm:$0xff]
        %v499 = vld [vmem:[%s255 + $0x678] sm:$0xff]
        %v500 = vld [vmem:[%s255 + $0x680] sm:$0xff]
        %v501 = vld [vmem:[%s255 + $0x688] sm:$0xff]
        %v502 = vld [vmem:[%s255 + $0x690] sm:$0xff]
        %v503 = vld [vmem:[%s255 + $0x698] sm:$0xff]
        %v504 = vld [vmem:[%s255 + $0x6a0] sm:$0xff]
        %v505 = vld [vmem:[%s255 + $0x6a8] sm:$0xff]
        %v506 = vld [vmem:[%s255 + $0x6b0] sm:$0xff]
        %v507 = vld [vmem:[%s255 + $0x6b8] sm:$0xff]
        %v508 = vld [vmem:[%s255 + $0x6c0] sm:$0xff]
        %v509 = vld [vmem:[%s255 + $0x6c8] sm:$0xff]
        %v510 = vld [vmem:[%s255 + $0x6d0] sm:$0xff]
        %v511 = vld [vmem:[%s255 + $0x6d8] sm:$0xff]
        %v512 = vld [vmem:[%s255 + $0x6e0] sm:$0xff]
        %v513 = vld [vmem:[%s255 + $0x6e8] sm:$0xff]
        %v514 = vld [vmem:[%s255 + $0x6f0] sm:$0xff]
        %v515 = vld [vmem:[%s255 + $0x6f8] sm:$0xff]
        %v516 = vld [vmem:[%s255 + $0x700] sm:$0xff]
        %v517 = vld [vmem:[%s255 + $0x708] sm:$0xff]
        %v518 = vld [vmem:[%s255 + $0x710] sm:$0xff]
        %v519 = vld [vmem:[%s255 + $0x718] sm:$0xff]
        %v520 = vld [vmem:[%s255 + $0x720] sm:$0xff]
        %v521 = vld [vmem:[%s255 + $0x728] sm:$0xff]
        %v522 = vld [vmem:[%s255 + $0x730] sm:$0xff]
        %v523 = vld [vmem:[%s255 + $0x738] sm:$0xff]
        %v524 = vld [vmem:[%s255 + $0x740] sm:$0xff]
        %v525 = vld [vmem:[%s255 + $0x748] sm:$0xff]
        %v526 = vld [vmem:[%s255 + $0x750] sm:$0xff]
        %v527 = vld [vmem:[%s255 + $0x758] sm:$0xff]
        %v528 = vld [vmem:[%s255 + $0x760] sm:$0xff]
        %v529 = vld [vmem:[%s255 + $0x768] sm:$0xff]
        %v530 = vld [vmem:[%s255 + $0x770] sm:$0xff]
        %v531 = vld [vmem:[%s255 + $0x778] sm:$0xff]
        %v532 = vld [vmem:[%s255 + $0x780] sm:$0xff]
        %v533 = vld [vmem:[%s255 + $0x788] sm:$0xff]
        %v534 = vld [vmem:[%s255 + $0x790] sm:$0xff]
        %v535 = vld [vmem:[%s255 + $0x798] sm:$0xff]
        %v536 = vld [vmem:[%s255 + $0x7a0] sm:$0xff]
        %v537 = vld [vmem:[%s255 + $0x7a8] sm:$0xff]
        %v538 = vld [vmem:[%s255 + $0x7b0] sm:$0xff]
        %v539 = vld [vmem:[%s255 + $0x7b8] sm:$0xff]
        %v540 = vld [vmem:[%s255 + $0x7c0] sm:$0xff]
        %v541 = vld [vmem:[%s255 + $0x7c8] sm:$0xff]
        %v542 = vld [vmem:[%s255 + $0x7d0] sm:$0xff]
        %v543 = vld [vmem:[%s255 + $0x7d8] sm:$0xff]
        %v544 = vld [vmem:[%s255 + $0x7e0] sm:$0xff]
        %v545 = vld [vmem:[%s255 + $0x7e8] sm:$0xff]
        %v546 = vld [vmem:[%s255 + $0x7f0] sm:$0xff]
        %v547 = vld [vmem:[%s255 + $0x7f8] sm:$0xff]
        %v548 = vld [vmem:[%s255 + $0x800] sm:$0xff]
        %v549 = vld [vmem:[%s255 + $0x808] sm:$0xff]
        %v550 = vld [vmem:[%s255 + $0x810] sm:$0xff]
        %v551 = vld [vmem:[%s255 + $0x818] sm:$0xff]
        %v552 = vld [vmem:[%s255 + $0x820] sm:$0xff]
        %v553 = vld [vmem:[%s255 + $0x828] sm:$0xff]
        %v554 = vld [vmem:[%s255 + $0x830] sm:$0xff]
        %v555 = vld [vmem:[%s255 + $0x838] sm:$0xff]
        %v556 = vld [vmem:[%s255 + $0x840] sm:$0xff]
        %v557 = vld [vmem:[%s255 + $0x848] sm:$0xff]
        %v558 = vld [vmem:[%s255 + $0x850] sm:$0xff]
        %v559 = vld [vmem:[%s255 + $0x858] sm:$0xff]
        %v560 = vld [vmem:[%s255 + $0x860] sm:$0xff]
        %v561 = vld [vmem:[%s255 + $0x868] sm:$0xff]
        %v562 = vld [vmem:[%s255 + $0x870] sm:$0xff]
        %v563 = vld [vmem:[%s255 + $0x878] sm:$0xff]
        %v564 = vld [vmem:[%s255 + $0x880] sm:$0xff]
        %v565 = vld [vmem:[%s255 + $0x888] sm:$0xff]
        %v566 = vld [vmem:[%s255 + $0x890] sm:$0xff]
        %v567 = vld [vmem:[%s255 + $0x898] sm:$0xff]
        %v568 = vld [vmem:[%s255 + $0x8a0] sm:$0xff]
        %v569 = vld [vmem:[%s255 + $0x8a8] sm:$0xff]
        %v570 = vld [vmem:[%s255 + $0x8b0] sm:$0xff]
        %v571 = vld [vmem:[%s255 + $0x8b8] sm:$0xff]
        %v572 = vld [vmem:[%s255 + $0x8c0] sm:$0xff]
        %v573 = vld [vmem:[%s255 + $0x8c8] sm:$0xff]
        %v574 = vld [vmem:[%s255 + $0x8d0] sm:$0xff]
        %v575 = vld [vmem:[%s255 + $0x8d8] sm:$0xff]
        %v576 = vld [vmem:[%s255 + $0x8e0] sm:$0xff]
        %v577 = vld [vmem:[%s255 + $0x8e8] sm:$0xff]
        %v578 = vld [vmem:[%s255 + $0x8f0] sm:$0xff]
        %v579 = vld [vmem:[%s255 + $0x8f8] sm:$0xff]
        %v580 = vld [vmem:[%s255 + $0x900] sm:$0xff]
        %v581 = vld [vmem:[%s255 + $0x908] sm:$0xff]
        %v582 = vld [vmem:[%s255 + $0x910] sm:$0xff]
        %v583 = vld [vmem:[%s255 + $0x918] sm:$0xff]
        %v584 = vld [vmem:[%s255 + $0x920] sm:$0xff]
        %v585 = vld [vmem:[%s255 + $0x928] sm:$0xff]
        %v586 = vld [vmem:[%s255 + $0x930] sm:$0xff]
        %v587 = vld [vmem:[%s255 + $0x938] sm:$0xff]
        %v588 = vld [vmem:[%s255 + $0x940] sm:$0xff]
        %v589 = vld [vmem:[%s255 + $0x948] sm:$0xff]
        %v590 = vld [vmem:[%s255 + $0x950] sm:$0xff]
        %v591 = vld [vmem:[%s255 + $0x958] sm:$0xff]
        %v592 = vld [vmem:[%s255 + $0x960] sm:$0xff]
        %v593 = vld [vmem:[%s255 + $0x968] sm:$0xff]
        %v594 = vld [vmem:[%s255 + $0x970] sm:$0xff]
        %v595 = vld [vmem:[%s255 + $0x978] sm:$0xff]
        %v596 = vld [vmem:[%s255 + $0x980] sm:$0xff]
        %v597 = vld [vmem:[%s255 + $0x988] sm:$0xff]
        %v598 = vld [vmem:[%s255 + $0x990] sm:$0xff]
        %v599 = vld [vmem:[%s255 + $0x998] sm:$0xff]
        %v600 = vld [vmem:[%s255 + $0x9a0] sm:$0xff]
        %v601 = vld [vmem:[%s255 + $0x9a8] sm:$0xff]
        %v602 = vld [vmem:[%s255 + $0x9b0] sm:$0xff]
        %v603 = vld [vmem:[%s255 + $0x9b8] sm:$0xff]
        %v604 = vld [vmem:[%s255 + $0x9c0] sm:$0xff]
        %v605 = vld [vmem:[%s255 + $0x9c8] sm:$0xff]
        %v606 = vld [vmem:[%s255 + $0x9d0] sm:$0xff]
        %v607 = vld [vmem:[%s255 + $0x9d8] sm:$0xff]
        %v608 = vld [vmem:[%s255 + $0x9e0] sm:$0xff]
        %v609 = vld [vmem:[%s255 + $0x9e8] sm:$0xff]
        %v610 = vld [vmem:[%s255 + $0x9f0] sm:$0xff]
        %v611 = vld [vmem:[%s255 + $0x9f8] sm:$0xff]
        %v612 = vld [vmem:[%s255 + $0xa00] sm:$0xff]
        %v613 = vld [vmem:[%s255 + $0xa08] sm:$0xff]
        %v614 = vld [vmem:[%s255 + $0xa10] sm:$0xff]
        %v615 = vld [vmem:[%s255 + $0xa18] sm:$0xff]
        %v616 = vld [vmem:[%s255 + $0xa20] sm:$0xff]
        %v617 = vld [vmem:[%s255 + $0xa28] sm:$0xff]
        %v618 = vld [vmem:[%s255 + $0xa30] sm:$0xff]
        %v619 = vld [vmem:[%s255 + $0xa38] sm:$0xff]
        %v620 = vld [vmem:[%s255 + $0xa40] sm:$0xff]
        %v621 = vld [vmem:[%s255 + $0xa48] sm:$0xff]
        %v622 = vld [vmem:[%s255 + $0xa50] sm:$0xff]
        %v623 = vld [vmem:[%s255 + $0xa58] sm:$0xff]
        %v624 = vld [vmem:[%s255 + $0xa60] sm:$0xff]
        %v625 = vld [vmem:[%s255 + $0xa68] sm:$0xff]
        %v626 = vld [vmem:[%s255 + $0xa70] sm:$0xff]
        %v627 = vld [vmem:[%s255 + $0xa78] sm:$0xff]
        %v628 = vld [vmem:[%s255 + $0xa80] sm:$0xff]
        %v629 = vld [vmem:[%s255 + $0xa88] sm:$0xff]
        %v630 = vld [vmem:[%s255 + $0xa90] sm:$0xff]
        %v631 = vld [vmem:[%s255 + $0xa98] sm:$0xff]
        %v632 = vld [vmem:[%s255 + $0xaa0] sm:$0xff]
        %v633 = vld [vmem:[%s255 + $0xaa8] sm:$0xff]
        %v634 = vld [vmem:[%s255 + $0xab0] sm:$0xff]
        %v635 = vld [vmem:[%s255 + $0xab8] sm:$0xff]
        %v636 = vld [vmem:[%s255 + $0xac0] sm:$0xff]
        %v637 = vld [vmem:[%s255 + $0xac8] sm:$0xff]
        %v638 = vld [vmem:[%s255 + $0xad0] sm:$0xff]
        %v639 = vld [vmem:[%s255 + $0xad8] sm:$0xff]
        %v640 = vld [vmem:[%s255 + $0xae0] sm:$0xff]
        %v641 = vld [vmem:[%s255 + $0xae8] sm:$0xff]
        %v642 = vld [vmem:[%s255 + $0xaf0] sm:$0xff]
        %v643 = vld [vmem:[%s255 + $0xaf8] sm:$0xff]
        %v644 = vld [vmem:[%s255 + $0xb00] sm:$0xff]
        %v645 = vld [vmem:[%s255 + $0xb08] sm:$0xff]
        %v646 = vld [vmem:[%s255 + $0xb10] sm:$0xff]
        %v647 = vld [vmem:[%s255 + $0xb18] sm:$0xff]
        %v648 = vld [vmem:[%s255 + $0xb20] sm:$0xff]
        %v649 = vld [vmem:[%s255 + $0xb28] sm:$0xff]
        %v650 = vld [vmem:[%s255 + $0xb30] sm:$0xff]
        %v651 = vld [vmem:[%s255 + $0xb38] sm:$0xff]
        %v652 = vld [vmem:[%s255 + $0xb40] sm:$0xff]
        %v653 = vld [vmem:[%s255 + $0xb48] sm:$0xff]
        %v654 = vld [vmem:[%s255 + $0xb50] sm:$0xff]
        %v655 = vld [vmem:[%s255 + $0xb58] sm:$0xff]
        %v656 = vld [vmem:[%s255 + $0xb60] sm:$0xff]
        %v657 = vld [vmem:[%s255 + $0xb68] sm:$0xff]
        %v658 = vld [vmem:[%s255 + $0xb70] sm:$0xff]
        %v659 = vld [vmem:[%s255 + $0xb78] sm:$0xff]
        %v660 = vld [vmem:[%s255 + $0xb80] sm:$0xff]
        %v661 = vld [vmem:[%s255 + $0xb88] sm:$0xff]
        %v662 = vld [vmem:[%s255 + $0xb90] sm:$0xff]
        %v663 = vld [vmem:[%s255 + $0xb98] sm:$0xff]
        %v664 = vld [vmem:[%s255 + $0xba0] sm:$0xff]
        %v665 = vld [vmem:[%s255 + $0xba8] sm:$0xff]
        %v666 = vld [vmem:[%s255 + $0xbb0] sm:$0xff]
        %v667 = vld [vmem:[%s255 + $0xbb8] sm:$0xff]
        %v668 = vld [vmem:[%s255 + $0xbc0] sm:$0xff]
        %v669 = vld [vmem:[%s255 + $0xbc8] sm:$0xff]
        %v670 = vld [vmem:[%s255 + $0xbd0] sm:$0xff]
        %v671 = vld [vmem:[%s255 + $0xbd8] sm:$0xff]
        %v672 = vld [vmem:[%s255 + $0xbe0] sm:$0xff]
        %v673 = vld [vmem:[%s255 + $0xbe8] sm:$0xff]
        %v674 = vld [vmem:[%s255 + $0xbf0] sm:$0xff]
        %v675 = vld [vmem:[%s255 + $0xbf8] sm:$0xff]
        %v676 = vld [vmem:[%s255 + $0xc00] sm:$0xff]
        %v677 = vld [vmem:[%s255 + $0xc08] sm:$0xff]
        %v678 = vld [vmem:[%s255 + $0xc10] sm:$0xff]
        %v679 = vld [vmem:[%s255 + $0xc18] sm:$0xff]
        %v680 = vld [vmem:[%s255 + $0xc20] sm:$0xff]
        %v681 = vld [vmem:[%s255 + $0xc28] sm:$0xff]
        %v682 = vld [vmem:[%s255 + $0xc30] sm:$0xff]
        %v683 = vld [vmem:[%s255 + $0xc38] sm:$0xff]
        %v684 = vld [vmem:[%s255 + $0xc40] sm:$0xff]
        %v685 = vld [vmem:[%s255 + $0xc48] sm:$0xff]
        %v686 = vld [vmem:[%s255 + $0xc50] sm:$0xff]
        %v687 = vld [vmem:[%s255 + $0xc58] sm:$0xff]
        %v688 = vld [vmem:[%s255 + $0xc60] sm:$0xff]
        %v689 = vld [vmem:[%s255 + $0xc68] sm:$0xff]
        %v690 = vld [vmem:[%s255 + $0xc70] sm:$0xff]
        %v691 = vld [vmem:[%s255 + $0xc78] sm:$0xff]
        %v692 = vld [vmem:[%s255 + $0xc80] sm:$0xff]
        %v693 = vld [vmem:[%s255 + $0xc88] sm:$0xff]
        %v694 = vld [vmem:[%s255 + $0xc90] sm:$0xff]
        %v695 = vld [vmem:[%s255 + $0xc98] sm:$0xff]
        %v696 = vld [vmem:[%s255 + $0xca0] sm:$0xff]
        %v697 = vld [vmem:[%s255 + $0xca8] sm:$0xff]
        %v698 = vld [vmem:[%s255 + $0xcb0] sm:$0xff]
        %v699 = vld [vmem:[%s255 + $0xcb8] sm:$0xff]
        %v700 = vld [vmem:[%s255 + $0xcc0] sm:$0xff]
        %v701 = vld [vmem:[%s255 + $0xcc8] sm:$0xff]
        %v702 = vld [vmem:[%s255 + $0xcd0] sm:$0xff]
        %v703 = vld [vmem:[%s255 + $0xcd8] sm:$0xff]
        %v704 = vld [vmem:[%s255 + $0xce0] sm:$0xff]
        %v705 = vld [vmem:[%s255 + $0xce8] sm:$0xff]
        %v706 = vld [vmem:[%s255 + $0xcf0] sm:$0xff]
        %v707 = vld [vmem:[%s255 + $0xcf8] sm:$0xff]
        %v708 = vld [vmem:[%s255 + $0xd00] sm:$0xff]
        %v709 = vld [vmem:[%s255 + $0xd08] sm:$0xff]
        %v710 = vld [vmem:[%s255 + $0xd10] sm:$0xff]
        %v711 = vld [vmem:[%s255 + $0xd18] sm:$0xff]
        %v712 = vld [vmem:[%s255 + $0xd20] sm:$0xff]
        %v713 = vld [vmem:[%s255 + $0xd28] sm:$0xff]
        %v714 = vld [vmem:[%s255 + $0xd30] sm:$0xff]
        %v715 = vld [vmem:[%s255 + $0xd38] sm:$0xff]
        %v716 = vld [vmem:[%s255 + $0xd40] sm:$0xff]
        %v717 = vld [vmem:[%s255 + $0xd48] sm:$0xff]
        %v718 = vld [vmem:[%s255 + $0xd50] sm:$0xff]
        %v719 = vld [vmem:[%s255 + $0xd58] sm:$0xff]
        %v720 = vld [vmem:[%s255 + $0xd60] sm:$0xff]
        %v721 = vld [vmem:[%s255 + $0xd68] sm:$0xff]
        %v722 = vld [vmem:[%s255 + $0xd70] sm:$0xff]
        %v723 = vld [vmem:[%s255 + $0xd78] sm:$0xff]
        %v724 = vld [vmem:[%s255 + $0xd80] sm:$0xff]
        %v725 = vld [vmem:[%s255 + $0xd88] sm:$0xff]
        %v726 = vld [vmem:[%s255 + $0xd90] sm:$0xff]
        %v727 = vld [vmem:[%s255 + $0xd98] sm:$0xff]
        %v728 = vld [vmem:[%s255 + $0xda0] sm:$0xff]
        %v729 = vld [vmem:[%s255 + $0xda8] sm:$0xff]
        %v730 = vld [vmem:[%s255 + $0xdb0] sm:$0xff]
        %v731 = vld [vmem:[%s255 + $0xdb8] sm:$0xff]
        %v732 = vld [vmem:[%s255 + $0xdc0] sm:$0xff]
        %v733 = vld [vmem:[%s255 + $0xdc8] sm:$0xff]
        %v734 = vld [vmem:[%s255 + $0xdd0] sm:$0xff]
        %v735 = vld [vmem:[%s255 + $0xdd8] sm:$0xff]
        %v736 = vld [vmem:[%s255 + $0xde0] sm:$0xff]
        %v737 = vld [vmem:[%s255 + $0xde8] sm:$0xff]
        %v738 = vld [vmem:[%s255 + $0xdf0] sm:$0xff]
        %v739 = vld [vmem:[%s255 + $0xdf8] sm:$0xff]
        %v740 = vld [vmem:[%s255 + $0xe00] sm:$0xff]
        %v741 = vld [vmem:[%s255 + $0xe08] sm:$0xff]
        %v742 = vld [vmem:[%s255 + $0xe10] sm:$0xff]
        %v743 = vld [vmem:[%s255 + $0xe18] sm:$0xff]
        %v744 = vld [vmem:[%s255 + $0xe20] sm:$0xff]
        %v745 = vld [vmem:[%s255 + $0xe28] sm:$0xff]
        %v746 = vld [vmem:[%s255 + $0xe30] sm:$0xff]
        %v747 = vld [vmem:[%s255 + $0xe38] sm:$0xff]
        %v748 = vld [vmem:[%s255 + $0xe40] sm:$0xff]
        %v749 = vld [vmem:[%s255 + $0xe48] sm:$0xff]
        %v750 = vld [vmem:[%s255 + $0xe50] sm:$0xff]
        %v751 = vld [vmem:[%s255 + $0xe58] sm:$0xff]
        %v752 = vld [vmem:[%s255 + $0xe60] sm:$0xff]
        %v753 = vld [vmem:[%s255 + $0xe68] sm:$0xff]
        %v754 = vld [vmem:[%s255 + $0xe70] sm:$0xff]
        %v755 = vld [vmem:[%s255 + $0xe78] sm:$0xff]
        %v756 = vld [vmem:[%s255 + $0xe80] sm:$0xff]
        %v757 = vld [vmem:[%s255 + $0xe88] sm:$0xff]
        %v758 = vld [vmem:[%s255 + $0xe90] sm:$0xff]
        %v759 = vld [vmem:[%s255 + $0xe98] sm:$0xff]
        %v760 = vld [vmem:[%s255 + $0xea0] sm:$0xff]
        %v761 = vld [vmem:[%s255 + $0xea8] sm:$0xff]
        %v762 = vld [vmem:[%s255 + $0xeb0] sm:$0xff]
        %v763 = vld [vmem:[%s255 + $0xeb8] sm:$0xff]
        %v764 = vld [vmem:[%s255 + $0xec0] sm:$0xff]
        %v765 = vld [vmem:[%s255 + $0xec8] sm:$0xff]
        %v766 = vld [vmem:[%s255 + $0xed0] sm:$0xff]
        %v767 = vld [vmem:[%s255 + $0xed8] sm:$0xff]
        %v768 = vld [vmem:[%s255 + $0xee0] sm:$0xff]
        %v769 = vld [vmem:[%s255 + $0xee8] sm:$0xff]
        %v770 = vld [vmem:[%s255 + $0xef0] sm:$0xff]
        %v771 = vld [vmem:[%s255 + $0xef8] sm:$0xff]
        %v772 = vld [vmem:[%s255 + $0xf00] sm:$0xff]
        %v773 = vld [vmem:[%s255 + $0xf08] sm:$0xff]
        %v774 = vld [vmem:[%s255 + $0xf10] sm:$0xff]
        %v775 = vld [vmem:[%s255 + $0xf18] sm:$0xff]
        %v776 = vld [vmem:[%s255 + $0xf20] sm:$0xff]
        %v777 = vld [vmem:[%s255 + $0xf28] sm:$0xff]
        %v778 = vld [vmem:[%s255 + $0xf30] sm:$0xff]
        %v779 = vld [vmem:[%s255 + $0xf38] sm:$0xff]
        %v780 = vld [vmem:[%s255 + $0xf40] sm:$0xff]
        %v781 = vld [vmem:[%s255 + $0xf48] sm:$0xff]
        %v782 = vld [vmem:[%s255 + $0xf50] sm:$0xff]
        %v783 = vld [vmem:[%s255 + $0xf58] sm:$0xff]
        %v784 = vld [vmem:[%s255 + $0xf60] sm:$0xff]
        %v785 = vld [vmem:[%s255 + $0xf68] sm:$0xff]
        %v786 = vld [vmem:[%s255 + $0xf70] sm:$0xff]
        %v787 = vld [vmem:[%s255 + $0xf78] sm:$0xff]
        %v788 = vld [vmem:[%s255 + $0xf80] sm:$0xff]
        %v789 = vld [vmem:[%s255 + $0xf88] sm:$0xff]
        %v790 = vld [vmem:[%s255 + $0xf90] sm:$0xff]
        %v791 = vld [vmem:[%s255 + $0xf98] sm:$0xff]
        %v792 = vld [vmem:[%s255 + $0xfa0] sm:$0xff]
        %v793 = vld [vmem:[%s255 + $0xfa8] sm:$0xff]
        %v794 = vld [vmem:[%s255 + $0xfb0] sm:$0xff]
        %v795 = vld [vmem:[%s255 + $0xfb8] sm:$0xff]
        %v796 = vld [vmem:[%s255 + $0xfc0] sm:$0xff]
        %v797 = vld [vmem:[%s255 + $0xfc8] sm:$0xff]
        %v798 = vld [vmem:[%s255 + $0xfd0] sm:$0xff]
        %v799 = vld [vmem:[%s255 + $0xfd8] sm:$0xff]
        %v800 = vld [vmem:[%s255 + $0xfe0] sm:$0xff]
        %v801 = vld [vmem:[%s255 + $0xfe8] sm:$0xff]
        %v802 = vld [vmem:[%s255 + $0xff0] sm:$0xff]
        %v803 = vld [vmem:[%s255 + $0xff8] sm:$0xff]
        %v804 = vld [vmem:[%s255 + $0x1000] sm:$0xff]
        %v805 = vld [vmem:[%s255 + $0x1008] sm:$0xff]
        %v806 = vld [vmem:[%s255 + $0x1010] sm:$0xff]
        %v807 = vld [vmem:[%s255 + $0x1018] sm:$0xff]
        %v808 = vld [vmem:[%s255 + $0x1020] sm:$0xff]
        %v809 = vld [vmem:[%s255 + $0x1028] sm:$0xff]
        %v810 = vld [vmem:[%s255 + $0x1030] sm:$0xff]
        %v811 = vld [vmem:[%s255 + $0x1038] sm:$0xff]
        %v812 = vld [vmem:[%s255 + $0x1040] sm:$0xff]
        %v813 = vld [vmem:[%s255 + $0x1048] sm:$0xff]
        %v814 = vld [vmem:[%s255 + $0x1050] sm:$0xff]
        %v815 = vld [vmem:[%s255 + $0x1058] sm:$0xff]
        %v816 = vld [vmem:[%s255 + $0x1060] sm:$0xff]
        %v817 = vld [vmem:[%s255 + $0x1068] sm:$0xff]
        %v818 = vld [vmem:[%s255 + $0x1070] sm:$0xff]
        %v819 = vld [vmem:[%s255 + $0x1078] sm:$0xff]
        %v820 = vld [vmem:[%s255 + $0x1080] sm:$0xff]
        %v821 = vld [vmem:[%s255 + $0x1088] sm:$0xff]
        %v822 = vld [vmem:[%s255 + $0x1090] sm:$0xff]
        %v823 = vld [vmem:[%s255 + $0x1098] sm:$0xff]
        %v824 = vld [vmem:[%s255 + $0x10a0] sm:$0xff]
        %v825 = vld [vmem:[%s255 + $0x10a8] sm:$0xff]
        %v826 = vld [vmem:[%s255 + $0x10b0] sm:$0xff]
        %v827 = vld [vmem:[%s255 + $0x10b8] sm:$0xff]
        %v828 = vld [vmem:[%s255 + $0x10c0] sm:$0xff]
        %v829 = vld [vmem:[%s255 + $0x10c8] sm:$0xff]
        %v830 = vld [vmem:[%s255 + $0x10d0] sm:$0xff]
        %v831 = vld [vmem:[%s255 + $0x10d8] sm:$0xff]
        %v832 = vld [vmem:[%s255 + $0x10e0] sm:$0xff]
        %v833 = vld [vmem:[%s255 + $0x10e8] sm:$0xff]
        %v834 = vld [vmem:[%s255 + $0x10f0] sm:$0xff]
        %v835 = vld [vmem:[%s255 + $0x10f8] sm:$0xff]
        %v836 = vld [vmem:[%s255 + $0x1100] sm:$0xff]
        %v837 = vld [vmem:[%s255 + $0x1108] sm:$0xff]
        %v838 = vld [vmem:[%s255 + $0x1110] sm:$0xff]
        %v839 = vld [vmem:[%s255 + $0x1118] sm:$0xff]
        %v840 = vld [vmem:[%s255 + $0x1120] sm:$0xff]
        %v841 = vld [vmem:[%s255 + $0x1128] sm:$0xff]
        %v842 = vld [vmem:[%s255 + $0x1130] sm:$0xff]
        %v843 = vld [vmem:[%s255 + $0x1138] sm:$0xff]
        %v844 = vld [vmem:[%s255 + $0x1140] sm:$0xff]
        %v845 = vld [vmem:[%s255 + $0x1148] sm:$0xff]
        %v846 = vld [vmem:[%s255 + $0x1150] sm:$0xff]
        %v847 = vld [vmem:[%s255 + $0x1158] sm:$0xff]
        %v848 = vld [vmem:[%s255 + $0x1160] sm:$0xff]
        %v849 = vld [vmem:[%s255 + $0x1168] sm:$0xff]
        %v850 = vld [vmem:[%s255 + $0x1170] sm:$0xff]
        %v851 = vld [vmem:[%s255 + $0x1178] sm:$0xff]
        %v852 = vld [vmem:[%s255 + $0x1180] sm:$0xff]
        %v853 = vld [vmem:[%s255 + $0x1188] sm:$0xff]
        %v854 = vld [vmem:[%s255 + $0x1190] sm:$0xff]
        %v855 = vld [vmem:[%s255 + $0x1198] sm:$0xff]
        %v856 = vld [vmem:[%s255 + $0x11a0] sm:$0xff]
        %v857 = vld [vmem:[%s255 + $0x11a8] sm:$0xff]
        %v858 = vld [vmem:[%s255 + $0x11b0] sm:$0xff]
        %v859 = vld [vmem:[%s255 + $0x11b8] sm:$0xff]
        %v860 = vld [vmem:[%s255 + $0x11c0] sm:$0xff]
        %v861 = vld [vmem:[%s255 + $0x11c8] sm:$0xff]
        %v862 = vld [vmem:[%s255 + $0x11d0] sm:$0xff]
        %v863 = vld [vmem:[%s255 + $0x11d8] sm:$0xff]
        %v864 = vld [vmem:[%s255 + $0x11e0] sm:$0xff]
        %v865 = vld [vmem:[%s255 + $0x11e8] sm:$0xff]
        %v866 = vld [vmem:[%s255 + $0x11f0] sm:$0xff]
        %v867 = vld [vmem:[%s255 + $0x11f8] sm:$0xff]
        %v868 = vld [vmem:[%s255 + $0x1200] sm:$0xff]
        %v869 = vld [vmem:[%s255 + $0x1208] sm:$0xff]
        %v870 = vld [vmem:[%s255 + $0x1210] sm:$0xff]
        %v871 = vld [vmem:[%s255 + $0x1218] sm:$0xff]
        %v872 = vld [vmem:[%s255 + $0x1220] sm:$0xff]
        %v873 = vld [vmem:[%s255 + $0x1228] sm:$0xff]
        %v874 = vld [vmem:[%s255 + $0x1230] sm:$0xff]
        %v875 = vld [vmem:[%s255 + $0x1238] sm:$0xff]
        %v876 = vld [vmem:[%s255 + $0x1240] sm:$0xff]
        %v877 = vld [vmem:[%s255 + $0x1248] sm:$0xff]
        %v878 = vld [vmem:[%s255 + $0x1250] sm:$0xff]
        %v879 = vld [vmem:[%s255 + $0x1258] sm:$0xff]
        %v880 = vld [vmem:[%s255 + $0x1260] sm:$0xff]
        %v881 = vld [vmem:[%s255 + $0x1268] sm:$0xff]
        %v882 = vld [vmem:[%s255 + $0x1270] sm:$0xff]
        %v883 = vld [vmem:[%s255 + $0x1278] sm:$0xff]
        %v884 = vld [vmem:[%s255 + $0x1280] sm:$0xff]
        %v885 = vld [vmem:[%s255 + $0x1288] sm:$0xff]
        %v886 = vld [vmem:[%s255 + $0x1290] sm:$0xff]
        %v887 = vld [vmem:[%s255 + $0x1298] sm:$0xff]
        %v888 = vld [vmem:[%s255 + $0x12a0] sm:$0xff]
        %v889 = vld [vmem:[%s255 + $0x12a8] sm:$0xff]
        %v890 = vld [vmem:[%s255 + $0x12b0] sm:$0xff]
        %v891 = vld [vmem:[%s255 + $0x12b8] sm:$0xff]
        %v892 = vld [vmem:[%s255 + $0x12c0] sm:$0xff]
        %v893 = vld [vmem:[%s255 + $0x12c8] sm:$0xff]
        %v894 = vld [vmem:[%s255 + $0x12d0] sm:$0xff]
        %v895 = vld [vmem:[%s255 + $0x12d8] sm:$0xff]
        %v896 = vld [vmem:[%s255 + $0x12e0] sm:$0xff]
        %v897 = vld [vmem:[%s255 + $0x12e8] sm:$0xff]
        %v898 = vld [vmem:[%s255 + $0x12f0] sm:$0xff]
        %v899 = vld [vmem:[%s255 + $0x12f8] sm:$0xff]
        %v900 = vld [vmem:[%s255 + $0x1300] sm:$0xff]
        %v901 = vld [vmem:[%s255 + $0x1308] sm:$0xff]
        %v902 = vld [vmem:[%s255 + $0x1310] sm:$0xff]
        %v903 = vld [vmem:[%s255 + $0x1318] sm:$0xff]
        %v904 = vld [vmem:[%s255 + $0x1320] sm:$0xff]
        %v905 = vld [vmem:[%s255 + $0x1328] sm:$0xff]
        %v906 = vld [vmem:[%s255 + $0x1330] sm:$0xff]
        %v907 = vld [vmem:[%s255 + $0x1338] sm:$0xff]
        %v908 = vld [vmem:[%s255 + $0x1340] sm:$0xff]
        %v909 = vld [vmem:[%s255 + $0x1348] sm:$0xff]
        %v910 = vld [vmem:[%s255 + $0x1350] sm:$0xff]
        %v911 = vld [vmem:[%s255 + $0x1358] sm:$0xff]
        %v912 = vld [vmem:[%s255 + $0x1360] sm:$0xff]
        %v913 = vld [vmem:[%s255 + $0x1368] sm:$0xff]
        %v914 = vld [vmem:[%s255 + $0x1370] sm:$0xff]
        %v915 = vld [vmem:[%s255 + $0x1378] sm:$0xff]
        %v916 = vld [vmem:[%s255 + $0x1380] sm:$0xff]
        %v917 = vld [vmem:[%s255 + $0x1388] sm:$0xff]
        %v918 = vld [vmem:[%s255 + $0x1390] sm:$0xff]
        %v919 = vld [vmem:[%s255 + $0x1398] sm:$0xff]
        %v920 = vld [vmem:[%s255 + $0x13a0] sm:$0xff]
        %v921 = vld [vmem:[%s255 + $0x13a8] sm:$0xff]
        %v922 = vld [vmem:[%s255 + $0x13b0] sm:$0xff]
        %v923 = vld [vmem:[%s255 + $0x13b8] sm:$0xff]
        %v924 = vld [vmem:[%s255 + $0x13c0] sm:$0xff]
        %v925 = vld [vmem:[%s255 + $0x13c8] sm:$0xff]
        %v926 = vld [vmem:[%s255 + $0x13d0] sm:$0xff]
        %v927 = vld [vmem:[%s255 + $0x13d8] sm:$0xff]
        %v928 = vld [vmem:[%s255 + $0x13e0] sm:$0xff]
        %v929 = vld [vmem:[%s255 + $0x13e8] sm:$0xff]
        %v930 = vld [vmem:[%s255 + $0x13f0] sm:$0xff]
        %v931 = vld [vmem:[%s255 + $0x13f8] sm:$0xff]
        %v932 = vld [vmem:[%s255 + $0x1400] sm:$0xff]
        %v933 = vld [vmem:[%s255 + $0x1408] sm:$0xff]
        %v934 = vld [vmem:[%s255 + $0x1410] sm:$0xff]
        %v935 = vld [vmem:[%s255 + $0x1418] sm:$0xff]
        %v936 = vld [vmem:[%s255 + $0x1420] sm:$0xff]
        %v937 = vld [vmem:[%s255 + $0x1428] sm:$0xff]
        %v938 = vld [vmem:[%s255 + $0x1430] sm:$0xff]
        %v939 = vld [vmem:[%s255 + $0x1438] sm:$0xff]
        %v940 = vld [vmem:[%s255 + $0x1440] sm:$0xff]
        %v941 = vld [vmem:[%s255 + $0x1448] sm:$0xff]
        %v942 = vld [vmem:[%s255 + $0x1450] sm:$0xff]
        %v943 = vld [vmem:[%s255 + $0x1458] sm:$0xff]
        %v944 = vld [vmem:[%s255 + $0x1460] sm:$0xff]
        %v945 = vld [vmem:[%s255 + $0x1468] sm:$0xff]
        %v946 = vld [vmem:[%s255 + $0x1470] sm:$0xff]
        %v947 = vld [vmem:[%s255 + $0x1478] sm:$0xff]
        %v948 = vld [vmem:[%s255 + $0x1480] sm:$0xff]
        %v949 = vld [vmem:[%s255 + $0x1488] sm:$0xff]
        %v950 = vld [vmem:[%s255 + $0x1490] sm:$0xff]
        %v951 = vld [vmem:[%s255 + $0x1498] sm:$0xff]
        %v952 = vld [vmem:[%s255 + $0x14a0] sm:$0xff]
        %v953 = vld [vmem:[%s255 + $0x14a8] sm:$0xff]
        %v954 = vld [vmem:[%s255 + $0x14b0] sm:$0xff]
        %v955 = vld [vmem:[%s255 + $0x14b8] sm:$0xff]
        %v956 = vld [vmem:[%s255 + $0x14c0] sm:$0xff]
        %v957 = vld [vmem:[%s255 + $0x14c8] sm:$0xff]
        %v958 = vld [vmem:[%s255 + $0x14d0] sm:$0xff]
        %v959 = vld [vmem:[%s255 + $0x14d8] sm:$0xff]
        %v960 = vld [vmem:[%s255 + $0x14e0] sm:$0xff]
        %v961 = vld [vmem:[%s255 + $0x14e8] sm:$0xff]
        %v962 = vld [vmem:[%s255 + $0x14f0] sm:$0xff]
        %v963 = vld [vmem:[%s255 + $0x14f8] sm:$0xff]
        %v964 = vld [vmem:[%s255 + $0x1500] sm:$0xff]
        %v965 = vld [vmem:[%s255 + $0x1508] sm:$0xff]
        %v966 = vld [vmem:[%s255 + $0x1510] sm:$0xff]
        %v967 = vld [vmem:[%s255 + $0x1518] sm:$0xff]
        %v968 = vld [vmem:[%s255 + $0x1520] sm:$0xff]
        %v969 = vld [vmem:[%s255 + $0x1528] sm:$0xff]
        %v970 = vld [vmem:[%s255 + $0x1530] sm:$0xff]
        %v971 = vld [vmem:[%s255 + $0x1538] sm:$0xff]
        %v972 = vld [vmem:[%s255 + $0x1540] sm:$0xff]
        %v973 = vld [vmem:[%s255 + $0x1548] sm:$0xff]
        %v974 = vld [vmem:[%s255 + $0x1550] sm:$0xff]
        %v975 = vld [vmem:[%s255 + $0x1558] sm:$0xff]
        %v976 = vld [vmem:[%s255 + $0x1560] sm:$0xff]
        %v977 = vld [vmem:[%s255 + $0x1568] sm:$0xff]
        %v978 = vld [vmem:[%s255 + $0x1570] sm:$0xff]
        %v979 = vld [vmem:[%s255 + $0x1578] sm:$0xff]
        %v980 = vld [vmem:[%s255 + $0x1580] sm:$0xff]
        %v981 = vld [vmem:[%s255 + $0x1588] sm:$0xff]
        %v982 = vld [vmem:[%s255 + $0x1590] sm:$0xff]
        %v983 = vld [vmem:[%s255 + $0x1598] sm:$0xff]
        %v984 = vld [vmem:[%s255 + $0x15a0] sm:$0xff]
        %v985 = vld [vmem:[%s255 + $0x15a8] sm:$0xff]
        %v986 = vld [vmem:[%s255 + $0x15b0] sm:$0xff]
        %v987 = vld [vmem:[%s255 + $0x15b8] sm:$0xff]
        %v988 = vld [vmem:[%s255 + $0x15c0] sm:$0xff]
        %v989 = vld [vmem:[%s255 + $0x15c8] sm:$0xff]
        %v990 = vld [vmem:[%s255 + $0x15d0] sm:$0xff]
        %v991 = vld [vmem:[%s255 + $0x15d8] sm:$0xff]
        %v992 = vld [vmem:[%s255 + $0x15e0] sm:$0xff]
        %v993 = vld [vmem:[%s255 + $0x15e8] sm:$0xff]
        %v994 = vld [vmem:[%s255 + $0x15f0] sm:$0xff]
        %v995 = vld [vmem:[%s255 + $0x15f8] sm:$0xff]
        %v996 = vld [vmem:[%s255 + $0x1600] sm:$0xff]
        %v997 = vld [vmem:[%s255 + $0x1608] sm:$0xff]
        %v998 = vld [vmem:[%s255 + $0x1610] sm:$0xff]
        %v999 = vld [vmem:[%s255 + $0x1618] sm:$0xff]
        %v1000 = vld [vmem:[%s255 + $0x1620] sm:$0xff]
        %v1001 = vld [vmem:[%s255 + $0x1628] sm:$0xff]
        %v1002 = vld [vmem:[%s255 + $0x1630] sm:$0xff]
        %v1003 = vld [vmem:[%s255 + $0x1638] sm:$0xff]
        %v1004 = vld [vmem:[%s255 + $0x1640] sm:$0xff]
        %v1005 = vld [vmem:[%s255 + $0x1648] sm:$0xff]
        %v1006 = vld [vmem:[%s255 + $0x1650] sm:$0xff]
        %v1007 = vld [vmem:[%s255 + $0x1658] sm:$0xff]
        %v1008 = vld [vmem:[%s255 + $0x1660] sm:$0xff]
        %v1009 = vld [vmem:[%s255 + $0x1668] sm:$0xff]
        %v1010 = vld [vmem:[%s255 + $0x1670] sm:$0xff]
        %v1011 = vld [vmem:[%s255 + $0x1678] sm:$0xff]
        %v1012 = vld [vmem:[%s255 + $0x1680] sm:$0xff]
        %v1013 = vld [vmem:[%s255 + $0x1688] sm:$0xff]
        %v1014 = vld [vmem:[%s255 + $0x1690] sm:$0xff]
        %v1015 = vld [vmem:[%s255 + $0x1698] sm:$0xff]
        %v1016 = vld [vmem:[%s255 + $0x16a0] sm:$0xff]
        %v1017 = vld [vmem:[%s255 + $0x16a8] sm:$0xff]
        %v1018 = vld [vmem:[%s255 + $0x16b0] sm:$0xff]
        %v1019 = vld [vmem:[%s255 + $0x16b8] sm:$0xff]
        %v1020 = vld [vmem:[%s255 + $0x16c0] sm:$0xff]
        %v1021 = vld [vmem:[%s255 + $0x16c8] sm:$0xff]
        %v1022 = vld [vmem:[%s255 + $0x16d0] sm:$0xff]
        %v1023 = vld [vmem:[%s255 + $0x16d8] sm:$0xff]
        %v1024 = vld [vmem:[%s255 + $0x16e0] sm:$0xff]
        %v1025 = vld [vmem:[%s255 + $0x16e8] sm:$0xff]
        %v1026 = vld [vmem:[%s255 + $0x16f0] sm:$0xff]
        %v1027 = vld [vmem:[%s255 + $0x16f8] sm:$0xff]
        %v1028 = vld [vmem:[%s255 + $0x1700] sm:$0xff]
        %v1029 = vld [vmem:[%s255 + $0x1708] sm:$0xff]
        %v1030 = vld [vmem:[%s255 + $0x1710] sm:$0xff]
        %v1031 = vld [vmem:[%s255 + $0x1718] sm:$0xff]
        %v1032 = vld [vmem:[%s255 + $0x1720] sm:$0xff]
        %v1033 = vld [vmem:[%s255 + $0x1728] sm:$0xff]
        %v1034 = vld [vmem:[%s255 + $0x1730] sm:$0xff]
        %v1035 = vld [vmem:[%s255 + $0x1738] sm:$0xff]
        %v1036 = vld [vmem:[%s255 + $0x1740] sm:$0xff]
        %v1037 = vld [vmem:[%s255 + $0x1748] sm:$0xff]
        %v1038 = vld [vmem:[%s255 + $0x1750] sm:$0xff]
        %v1039 = vld [vmem:[%s255 + $0x1758] sm:$0xff]
        %v1040 = vld [vmem:[%s255 + $0x1760] sm:$0xff]
        %v1041 = vld [vmem:[%s255 + $0x1768] sm:$0xff]
        %v1042 = vld [vmem:[%s255 + $0x1770] sm:$0xff]
        %v1043 = vld [vmem:[%s255 + $0x1778] sm:$0xff]
        %v1044 = vld [vmem:[%s255 + $0x1780] sm:$0xff]
        %v1045 = vld [vmem:[%s255 + $0x1788] sm:$0xff]
        %v1046 = vld [vmem:[%s255 + $0x1790] sm:$0xff]
        %v1047 = vld [vmem:[%s255 + $0x1798] sm:$0xff]
        %v1048 = vld [vmem:[%s255 + $0x17a0] sm:$0xff]
        %v1049 = vld [vmem:[%s255 + $0x17a8] sm:$0xff]
        %v1050 = vld [vmem:[%s255 + $0x17b0] sm:$0xff]
        %v1051 = vld [vmem:[%s255 + $0x17b8] sm:$0xff]
        %v1052 = vld [vmem:[%s255 + $0x17c0] sm:$0xff]
        %v1053 = vld [vmem:[%s255 + $0x17c8] sm:$0xff]
        %v1054 = vld [vmem:[%s255 + $0x17d0] sm:$0xff]
        %v1055 = vld [vmem:[%s255 + $0x17d8] sm:$0xff]
        %v1056 = vld [vmem:[%s255 + $0x17e0] sm:$0xff]
        %v1057 = vld [vmem:[%s255 + $0x17e8] sm:$0xff]
        %v1058 = vld [vmem:[%s255 + $0x17f0] sm:$0xff]
        %v1059 = vld [vmem:[%s255 + $0x17f8] sm:$0xff]
        %v1060 = vld [vmem:[#allocation6] sm:$0xff]
        %v1061 = vld [vmem:[#allocation6 + $0x8] sm:$0xff]
        %v1062 = vld [vmem:[#allocation6 + $0x10] sm:$0xff]
        %v1063 = vld [vmem:[#allocation6 + $0x18] sm:$0xff]
        %v1064 = vld [vmem:[#allocation6 + $0x20] sm:$0xff]
        %v1065 = vld [vmem:[#allocation6 + $0x28] sm:$0xff]
        %v1066 = vld [vmem:[#allocation6 + $0x30] sm:$0xff]
        %v1067 = vld [vmem:[#allocation6 + $0x38] sm:$0xff]
        %v1068 = vld [vmem:[#allocation6 + $0x40] sm:$0xff]
        %v1069 = vld [vmem:[#allocation6 + $0x48] sm:$0xff]
        %v1070 = vld [vmem:[#allocation6 + $0x50] sm:$0xff]
        %v1071 = vld [vmem:[#allocation6 + $0x58] sm:$0xff]
        %v1072 = vld [vmem:[#allocation6 + $0x60] sm:$0xff]
        %v1073 = vld [vmem:[#allocation6 + $0x68] sm:$0xff]
        %v1074 = vld [vmem:[#allocation6 + $0x70] sm:$0xff]
        %v1075 = vld [vmem:[#allocation6 + $0x78] sm:$0xff]
        %v1076 = vld [vmem:[#allocation6 + $0x80] sm:$0xff]
        %v1077 = vld [vmem:[#allocation6 + $0x88] sm:$0xff]
        %v1078 = vld [vmem:[#allocation6 + $0x90] sm:$0xff]
        %v1079 = vld [vmem:[#allocation6 + $0x98] sm:$0xff]
        %v1080 = vld [vmem:[#allocation6 + $0xa0] sm:$0xff]
        %v1081 = vld [vmem:[#allocation6 + $0xa8] sm:$0xff]
        %v1082 = vld [vmem:[#allocation6 + $0xb0] sm:$0xff]
        %v1083 = vld [vmem:[#allocation6 + $0xb8] sm:$0xff]
        %v1084 = vld [vmem:[#allocation6 + $0xc0] sm:$0xff]
        %v1085 = vld [vmem:[#allocation6 + $0xc8] sm:$0xff]
        %v1086 = vld [vmem:[#allocation6 + $0xd0] sm:$0xff]
        %v1087 = vld [vmem:[#allocation6 + $0xd8] sm:$0xff]
        %v1088 = vld [vmem:[#allocation6 + $0xe0] sm:$0xff]
        %v1089 = vld [vmem:[#allocation6 + $0xe8] sm:$0xff]
        %v1090 = vld [vmem:[#allocation6 + $0xf0] sm:$0xff]
        %v1091 = vld [vmem:[#allocation6 + $0xf8] sm:$0xff]
        %v1092 = vld [vmem:[#allocation6 + $0x100] sm:$0xff]
        %v1093 = vld [vmem:[#allocation6 + $0x108] sm:$0xff]
        %v1094 = vld [vmem:[#allocation6 + $0x110] sm:$0xff]
        %v1095 = vld [vmem:[#allocation6 + $0x118] sm:$0xff]
        %v1096 = vld [vmem:[#allocation6 + $0x120] sm:$0xff]
        %v1097 = vld [vmem:[#allocation6 + $0x128] sm:$0xff]
        %v1098 = vld [vmem:[#allocation6 + $0x130] sm:$0xff]
        %v1099 = vld [vmem:[#allocation6 + $0x138] sm:$0xff]
        %v1100 = vld [vmem:[#allocation6 + $0x140] sm:$0xff]
        %v1101 = vld [vmem:[#allocation6 + $0x148] sm:$0xff]
        %v1102 = vld [vmem:[#allocation6 + $0x150] sm:$0xff]
        %v1103 = vld [vmem:[#allocation6 + $0x158] sm:$0xff]
        %v1104 = vld [vmem:[#allocation6 + $0x160] sm:$0xff]
        %v1105 = vld [vmem:[#allocation6 + $0x168] sm:$0xff]
        %v1106 = vld [vmem:[#allocation6 + $0x170] sm:$0xff]
        %v1107 = vld [vmem:[#allocation6 + $0x178] sm:$0xff]
        %v1108 = vld [vmem:[%s2] sm:$0xff]
        %v1109 = vld [vmem:[%s2 + $0x8] sm:$0xff]
        %v1110 = vld [vmem:[%s2 + $0x10] sm:$0xff]
        %v1111 = vld [vmem:[%s2 + $0x18] sm:$0xff]
        %v1112 = vld [vmem:[%s2 + $0x20] sm:$0xff]
        %v1113 = vld [vmem:[%s2 + $0x28] sm:$0xff]
        %v1114 = vld [vmem:[%s2 + $0x30] sm:$0xff]
        %v1115 = vld [vmem:[%s2 + $0x38] sm:$0xff]
        %1117 = vset.pattern.permute.xlu0 0
        %1118 = vperm.xlu0 %1117, %v1108
        %v1119 = vpop.permute.xlu0 %1118
        %1122 = vset.pattern.permute.xlu0 0
        %1123 = vperm.xlu0 %1122, %v1109
        %v1124 = vpop.permute.xlu0 %1123
        %1127 = vset.pattern.permute.xlu0 0
        %1128 = vperm.xlu0 %1127, %v1110
        %v1129 = vpop.permute.xlu0 %1128
        %1132 = vset.pattern.permute.xlu0 0
        %1133 = vperm.xlu0 %1132, %v1111
        %v1134 = vpop.permute.xlu0 %1133
        %1137 = vset.pattern.permute.xlu0 0
        %1138 = vperm.xlu0 %1137, %v1112
        %v1139 = vpop.permute.xlu0 %1138
        %1142 = vset.pattern.permute.xlu0 0
        %1143 = vperm.xlu0 %1142, %v1113
        %v1144 = vpop.permute.xlu0 %1143
        %1147 = vset.pattern.permute.xlu0 0
        %1148 = vperm.xlu0 %1147, %v1114
        %v1149 = vpop.permute.xlu0 %1148
        %1152 = vset.pattern.permute.xlu0 0
        %1153 = vperm.xlu0 %1152, %v1115
        %v1154 = vpop.permute.xlu0 %1153
        %1156 = vmatprep.subr.mxu0 %v293
        %1157 = vmatpush1.msra.mxu0 %v292
        %1158 = vmatprep.subr.mxu0 %v301
        %1159 = vmatpush1.msra.mxu0 %v300
        %1160 = vmatprep.subr.mxu0 %v309
        %1161 = vmatpush1.msra.mxu0 %v308
        %1162 = vmatprep.subr.mxu0 %v317
        %1163 = vmatpush1.msra.mxu0 %v316
        %1164 = vmatprep.subr.mxu0 %v325
        %1165 = vmatpush1.msra.mxu0 %v324
        %1166 = vmatprep.subr.mxu0 %v333
        %1167 = vmatpush1.msra.mxu0 %v332
        %1168 = vmatprep.subr.mxu0 %v341
        %1169 = vmatpush1.msra.mxu0 %v340
        %1170 = vmatprep.subr.mxu0 %v349
        %1171 = vmatpush1.msra.mxu0 %v348
        %1172 = vmatprep.subr.mxu0 %v357
        %1173 = vmatpush1.msra.mxu0 %v356
        %1174 = vmatprep.subr.mxu0 %v365
        %1175 = vmatpush1.msra.mxu0 %v364
        %1176 = vmatprep.subr.mxu0 %v373
        %1177 = vmatpush1.msra.mxu0 %v372
        %1178 = vmatprep.subr.mxu0 %v381
        %1179 = vmatpush1.msra.mxu0 %v380
        %1180 = vmatprep.subr.mxu0 %v389
        %1181 = vmatpush1.msra.mxu0 %v388
        %1182 = vmatprep.subr.mxu0 %v397
        %1183 = vmatpush1.msra.mxu0 %v396
        %1184 = vmatprep.subr.mxu0 %v405
        %1185 = vmatpush1.msra.mxu0 %v404
        %1186 = vmatprep.subr.mxu0 %v413
        %1187 = vmatpush1.msra.mxu0 %v412
        %1188 = vmatprep.subr.mxu0 %v421
        %1189 = vmatpush1.msra.mxu0 %v420
        %1190 = vmatprep.subr.mxu0 %v429
        %1191 = vmatpush1.msra.mxu0 %v428
        %1192 = vmatprep.subr.mxu0 %v437
        %1193 = vmatpush1.msra.mxu0 %v436
        %1194 = vmatprep.subr.mxu0 %v445
        %1195 = vmatpush1.msra.mxu0 %v444
        %1196 = vmatprep.subr.mxu0 %v453
        %1197 = vmatpush1.msra.mxu0 %v452
        %1198 = vmatprep.subr.mxu0 %v461
        %1199 = vmatpush1.msra.mxu0 %v460
        %1200 = vmatprep.subr.mxu0 %v469
        %1201 = vmatpush1.msra.mxu0 %v468
        %1202 = vmatprep.subr.mxu0 %v477
        %1203 = vmatpush1.msra.mxu0 %v476
        %1204 = vmatprep.subr.mxu0 %v485
        %1205 = vmatpush1.msra.mxu0 %v484
        %1206 = vmatprep.subr.mxu0 %v493
        %1207 = vmatpush1.msra.mxu0 %v492
        %1208 = vmatprep.subr.mxu0 %v501
        %1209 = vmatpush1.msra.mxu0 %v500
        %1210 = vmatprep.subr.mxu0 %v509
        %1211 = vmatpush1.msra.mxu0 %v508
        %1212 = vmatprep.subr.mxu0 %v517
        %1213 = vmatpush1.msra.mxu0 %v516
        %1214 = vmatprep.subr.mxu0 %v525
        %1215 = vmatpush1.msra.mxu0 %v524
        %1216 = vmatprep.subr.mxu0 %v533
        %1217 = vmatpush1.msra.mxu0 %v532
        %1218 = vmatprep.subr.mxu0 %v541
        %1219 = vmatpush1.msra.mxu0 %v540
        %1220 = vmatprep.mubr.f32.mxu0 %v1061
        %1221 = vmatmul.mubr.f32.gmra.mrb[0].mxu0 %v1060
        %v1222 = vpop.f32.mrb[0].mxu0
        %v1223 = vadd.f32 %v1119, %v1222
        %v1224 = vpop.f32.mrb[0].mxu0
        %v1225 = vadd.f32 %v1119, %v1224
        %1226 = vmatprep.mubr.f32.mxu0 %v1067
        %1227 = vmatmul.mubr.f32.gmra.mrb[0].mxu0 %v1066
        %v1228 = vpop.f32.mrb[0].mxu0
        %v1229 = vadd.f32 %v1124, %v1228
        %v1230 = vpop.f32.mrb[0].mxu0
        %v1231 = vadd.f32 %v1124, %v1230
        %1232 = vmatprep.mubr.f32.mxu0 %v1073
        %1233 = vmatmul.mubr.f32.gmra.mrb[0].mxu0 %v1072
        %v1234 = vpop.f32.mrb[0].mxu0
        %v1235 = vadd.f32 %v1129, %v1234
        %v1236 = vpop.f32.mrb[0].mxu0
        %v1237 = vadd.f32 %v1129, %v1236
        %1238 = vmatprep.mubr.f32.mxu0 %v1079
        %1239 = vmatmul.mubr.f32.gmra.mrb[0].mxu0 %v1078
        %v1240 = vpop.f32.mrb[0].mxu0
        %v1241 = vadd.f32 %v1134, %v1240
        %v1242 = vpop.f32.mrb[0].mxu0
        %v1243 = vadd.f32 %v1134, %v1242
        %1244 = vmatprep.mubr.f32.mxu0 %v1085
        %1245 = vmatmul.mubr.f32.gmra.mrb[0].mxu0 %v1084
        %v1246 = vpop.f32.mrb[0].mxu0
        %v1247 = vadd.f32 %v1139, %v1246
        %v1248 = vpop.f32.mrb[0].mxu0
        %v1249 = vadd.f32 %v1139, %v1248
        %1250 = vmatprep.mubr.f32.mxu0 %v1091
        %1251 = vmatmul.mubr.f32.gmra.mrb[0].mxu0 %v1090
        %v1252 = vpop.f32.mrb[0].mxu0
        %v1253 = vadd.f32 %v1144, %v1252
        %v1254 = vpop.f32.mrb[0].mxu0
        %v1255 = vadd.f32 %v1144, %v1254
        %1256 = vmatprep.mubr.f32.mxu0 %v1097
        %1257 = vmatmul.mubr.f32.gmra.mrb[0].mxu0 %v1096
        %v1258 = vpop.f32.mrb[0].mxu0
        %v1259 = vadd.f32 %v1149, %v1258
        %v1260 = vpop.f32.mrb[0].mxu0
        %v1261 = vadd.f32 %v1149, %v1260
        %1262 = vmatprep.mubr.f32.mxu0 %v1103
        %1263 = vmatmul.mubr.f32.gmra.mrb[0].mxu0 %v1102
        %v1264 = vpop.f32.mrb[0].mxu0
        %v1265 = vadd.f32 %v1154, %v1264
        %v1266 = vpop.f32.mrb[0].mxu0
        %v1267 = vadd.f32 %v1154, %v1266
        %1268 = vdwg.mxu0
        %1269 = vmatprep.subr.mxu0 %v549
        %1270 = vmatpush1.msra.mxu0 %v548
        %1271 = vmatprep.subr.mxu0 %v557
        %1272 = vmatpush1.msra.mxu0 %v556
        %1273 = vmatprep.subr.mxu0 %v565
        %1274 = vmatpush1.msra.mxu0 %v564
        %1275 = vmatprep.subr.mxu0 %v573
        %1276 = vmatpush1.msra.mxu0 %v572
        %1277 = vmatprep.subr.mxu0 %v581
        %1278 = vmatpush1.msra.mxu0 %v580
        %1279 = vmatprep.subr.mxu0 %v589
        %1280 = vmatpush1.msra.mxu0 %v588
        %1281 = vmatprep.subr.mxu0 %v597
        %1282 = vmatpush1.msra.mxu0 %v596
        %1283 = vmatprep.subr.mxu0 %v605
        %1284 = vmatpush1.msra.mxu0 %v604
        %1285 = vmatprep.subr.mxu0 %v613
        %1286 = vmatpush1.msra.mxu0 %v612
        %1287 = vmatprep.subr.mxu0 %v621
        %1288 = vmatpush1.msra.mxu0 %v620
        %1289 = vmatprep.subr.mxu0 %v629
        %1290 = vmatpush1.msra.mxu0 %v628
        %1291 = vmatprep.subr.mxu0 %v637
        %1292 = vmatpush1.msra.mxu0 %v636
        %1293 = vmatprep.subr.mxu0 %v645
        %1294 = vmatpush1.msra.mxu0 %v644
        %1295 = vmatprep.subr.mxu0 %v653
        %1296 = vmatpush1.msra.mxu0 %v652
        %1297 = vmatprep.subr.mxu0 %v661
        %1298 = vmatpush1.msra.mxu0 %v660
        %1299 = vmatprep.subr.mxu0 %v669
        %1300 = vmatpush1.msra.mxu0 %v668
        %1301 = vmatprep.subr.mxu0 %v677
        %1302 = vmatpush1.msra.mxu0 %v676
        %1303 = vmatprep.subr.mxu0 %v685
        %1304 = vmatpush1.msra.mxu0 %v684
        %1305 = vmatprep.subr.mxu0 %v693
        %1306 = vmatpush1.msra.mxu0 %v692
        %1307 = vmatprep.subr.mxu0 %v701
        %1308 = vmatpush1.msra.mxu0 %v700
        %1309 = vmatprep.subr.mxu0 %v709
        %1310 = vmatpush1.msra.mxu0 %v708
        %1311 = vmatprep.subr.mxu0 %v717
        %1312 = vmatpush1.msra.mxu0 %v716
        %1313 = vmatprep.subr.mxu0 %v725
        %1314 = vmatpush1.msra.mxu0 %v724
        %1315 = vmatprep.subr.mxu0 %v733
        %1316 = vmatpush1.msra.mxu0 %v732
        %1317 = vmatprep.subr.mxu0 %v741
        %1318 = vmatpush1.msra.mxu0 %v740
        %1319 = vmatprep.subr.mxu0 %v749
        %1320 = vmatpush1.msra.mxu0 %v748
        %1321 = vmatprep.subr.mxu0 %v757
        %1322 = vmatpush1.msra.mxu0 %v756
        %1323 = vmatprep.subr.mxu0 %v765
        %1324 = vmatpush1.msra.mxu0 %v764
        %1325 = vmatprep.subr.mxu0 %v773
        %1326 = vmatpush1.msra.mxu0 %v772
        %1327 = vmatprep.subr.mxu0 %v781
        %1328 = vmatpush1.msra.mxu0 %v780
        %1329 = vmatprep.subr.mxu0 %v789
        %1330 = vmatpush1.msra.mxu0 %v788
        %1331 = vmatprep.subr.mxu0 %v797
        %1332 = vmatpush1.msra.mxu0 %v796
        %1333 = vmatprep.mubr.f32.mxu0 %v1063
        %1334 = vmatmul.mubr.f32.gmra.mrb[0].mxu0 %v1062
        %v1335 = vpop.f32.mrb[0].mxu0
        %v1336 = vadd.f32 %v1223, %v1335
        %v1337 = vpop.f32.mrb[0].mxu0
        %v1338 = vadd.f32 %v1225, %v1337
        %1339 = vmatprep.mubr.f32.mxu0 %v1069
        %1340 = vmatmul.mubr.f32.gmra.mrb[0].mxu0 %v1068
        %v1341 = vpop.f32.mrb[0].mxu0
        %v1342 = vadd.f32 %v1229, %v1341
        %v1343 = vpop.f32.mrb[0].mxu0
        %v1344 = vadd.f32 %v1231, %v1343
        %1345 = vmatprep.mubr.f32.mxu0 %v1075
        %1346 = vmatmul.mubr.f32.gmra.mrb[0].mxu0 %v1074
        %v1347 = vpop.f32.mrb[0].mxu0
        %v1348 = vadd.f32 %v1235, %v1347
        %v1349 = vpop.f32.mrb[0].mxu0
        %v1350 = vadd.f32 %v1237, %v1349
        %1351 = vmatprep.mubr.f32.mxu0 %v1081
        %1352 = vmatmul.mubr.f32.gmra.mrb[0].mxu0 %v1080
        %v1353 = vpop.f32.mrb[0].mxu0
        %v1354 = vadd.f32 %v1241, %v1353
        %v1355 = vpop.f32.mrb[0].mxu0
        %v1356 = vadd.f32 %v1243, %v1355
        %1357 = vmatprep.mubr.f32.mxu0 %v1087
        %1358 = vmatmul.mubr.f32.gmra.mrb[0].mxu0 %v1086
        %v1359 = vpop.f32.mrb[0].mxu0
        %v1360 = vadd.f32 %v1247, %v1359
        %v1361 = vpop.f32.mrb[0].mxu0
        %v1362 = vadd.f32 %v1249, %v1361
        %1363 = vmatprep.mubr.f32.mxu0 %v1093
        %1364 = vmatmul.mubr.f32.gmra.mrb[0].mxu0 %v1092
        %v1365 = vpop.f32.mrb[0].mxu0
        %v1366 = vadd.f32 %v1253, %v1365
        %v1367 = vpop.f32.mrb[0].mxu0
        %v1368 = vadd.f32 %v1255, %v1367
        %1369 = vmatprep.mubr.f32.mxu0 %v1099
        %1370 = vmatmul.mubr.f32.gmra.mrb[0].mxu0 %v1098
        %v1371 = vpop.f32.mrb[0].mxu0
        %v1372 = vadd.f32 %v1259, %v1371
        %v1373 = vpop.f32.mrb[0].mxu0
        %v1374 = vadd.f32 %v1261, %v1373
        %1375 = vmatprep.mubr.f32.mxu0 %v1105
        %1376 = vmatmul.mubr.f32.gmra.mrb[0].mxu0 %v1104
        %v1377 = vpop.f32.mrb[0].mxu0
        %v1378 = vadd.f32 %v1265, %v1377
        %v1379 = vpop.f32.mrb[0].mxu0
        %v1380 = vadd.f32 %v1267, %v1379
        %1381 = vdwg.mxu0
        %1382 = vmatprep.subr.mxu0 %v805
        %1383 = vmatpush1.msra.mxu0 %v804
        %1384 = vmatprep.subr.mxu0 %v813
        %1385 = vmatpush1.msra.mxu0 %v812
        %1386 = vmatprep.subr.mxu0 %v821
        %1387 = vmatpush1.msra.mxu0 %v820
        %1388 = vmatprep.subr.mxu0 %v829
        %1389 = vmatpush1.msra.mxu0 %v828
        %1390 = vmatprep.subr.mxu0 %v837
        %1391 = vmatpush1.msra.mxu0 %v836
        %1392 = vmatprep.subr.mxu0 %v845
        %1393 = vmatpush1.msra.mxu0 %v844
        %1394 = vmatprep.subr.mxu0 %v853
        %1395 = vmatpush1.msra.mxu0 %v852
        %1396 = vmatprep.subr.mxu0 %v861
        %1397 = vmatpush1.msra.mxu0 %v860
        %1398 = vmatprep.subr.mxu0 %v869
        %1399 = vmatpush1.msra.mxu0 %v868
        %1400 = vmatprep.subr.mxu0 %v877
        %1401 = vmatpush1.msra.mxu0 %v876
        %1402 = vmatprep.subr.mxu0 %v885
        %1403 = vmatpush1.msra.mxu0 %v884
        %1404 = vmatprep.subr.mxu0 %v893
        %1405 = vmatpush1.msra.mxu0 %v892
        %1406 = vmatprep.subr.mxu0 %v901
        %1407 = vmatpush1.msra.mxu0 %v900
        %1408 = vmatprep.subr.mxu0 %v909
        %1409 = vmatpush1.msra.mxu0 %v908
        %1410 = vmatprep.subr.mxu0 %v917
        %1411 = vmatpush1.msra.mxu0 %v916
        %1412 = vmatprep.subr.mxu0 %v925
        %1413 = vmatpush1.msra.mxu0 %v924
        %1414 = vmatprep.subr.mxu0 %v933
        %1415 = vmatpush1.msra.mxu0 %v932
        %1416 = vmatprep.subr.mxu0 %v941
        %1417 = vmatpush1.msra.mxu0 %v940
        %1418 = vmatprep.subr.mxu0 %v949
        %1419 = vmatpush1.msra.mxu0 %v948
        %1420 = vmatprep.subr.mxu0 %v957
        %1421 = vmatpush1.msra.mxu0 %v956
        %1422 = vmatprep.subr.mxu0 %v965
        %1423 = vmatpush1.msra.mxu0 %v964
        %1424 = vmatprep.subr.mxu0 %v973
        %1425 = vmatpush1.msra.mxu0 %v972
        %1426 = vmatprep.subr.mxu0 %v981
        %1427 = vmatpush1.msra.mxu0 %v980
        %1428 = vmatprep.subr.mxu0 %v989
        %1429 = vmatpush1.msra.mxu0 %v988
        %1430 = vmatprep.subr.mxu0 %v997
        %1431 = vmatpush1.msra.mxu0 %v996
        %1432 = vmatprep.subr.mxu0 %v1005
        %1433 = vmatpush1.msra.mxu0 %v1004
        %1434 = vmatprep.subr.mxu0 %v1013
        %1435 = vmatpush1.msra.mxu0 %v1012
        %1436 = vmatprep.subr.mxu0 %v1021
        %1437 = vmatpush1.msra.mxu0 %v1020
        %1438 = vmatprep.subr.mxu0 %v1029
        %1439 = vmatpush1.msra.mxu0 %v1028
        %1440 = vmatprep.subr.mxu0 %v1037
        %1441 = vmatpush1.msra.mxu0 %v1036
        %1442 = vmatprep.subr.mxu0 %v1045
        %1443 = vmatpush1.msra.mxu0 %v1044
        %1444 = vmatprep.subr.mxu0 %v1053
        %1445 = vmatpush1.msra.mxu0 %v1052
        %1446 = vmatprep.mubr.f32.mxu0 %v1065
        %1447 = vmatmul.mubr.f32.gmra.mrb[0].mxu0 %v1064
        %v1448 = vpop.f32.mrb[0].mxu0
        %v1449 = vadd.f32 %v1336, %v1448
        %v1450 = vpop.f32.mrb[0].mxu0
        %v1451 = vadd.f32 %v1338, %v1450
        %1452 = vmatprep.mubr.f32.mxu0 %v1071
        %1453 = vmatmul.mubr.f32.gmra.mrb[0].mxu0 %v1070
        %v1454 = vpop.f32.mrb[0].mxu0
        %v1455 = vadd.f32 %v1342, %v1454
        %v1456 = vpop.f32.mrb[0].mxu0
        %v1457 = vadd.f32 %v1344, %v1456
        %1458 = vmatprep.mubr.f32.mxu0 %v1077
        %1459 = vmatmul.mubr.f32.gmra.mrb[0].mxu0 %v1076
        %v1460 = vpop.f32.mrb[0].mxu0
        %v1461 = vadd.f32 %v1348, %v1460
        %v1462 = vpop.f32.mrb[0].mxu0
        %v1463 = vadd.f32 %v1350, %v1462
        %1464 = vmatprep.mubr.f32.mxu0 %v1083
        %1465 = vmatmul.mubr.f32.gmra.mrb[0].mxu0 %v1082
        %v1466 = vpop.f32.mrb[0].mxu0
        %v1467 = vadd.f32 %v1354, %v1466
        %v1468 = vpop.f32.mrb[0].mxu0
        %v1469 = vadd.f32 %v1356, %v1468
        %1470 = vmatprep.mubr.f32.mxu0 %v1089
        %1471 = vmatmul.mubr.f32.gmra.mrb[0].mxu0 %v1088
        %v1472 = vpop.f32.mrb[0].mxu0
        %v1473 = vadd.f32 %v1360, %v1472
        %v1474 = vpop.f32.mrb[0].mxu0
        %v1475 = vadd.f32 %v1362, %v1474
        %1476 = vmatprep.mubr.f32.mxu0 %v1095
        %1477 = vmatmul.mubr.f32.gmra.mrb[0].mxu0 %v1094
        %v1478 = vpop.f32.mrb[0].mxu0
        %v1479 = vadd.f32 %v1366, %v1478
        %v1480 = vpop.f32.mrb[0].mxu0
        %v1481 = vadd.f32 %v1368, %v1480
        %1482 = vmatprep.mubr.f32.mxu0 %v1101
        %1483 = vmatmul.mubr.f32.gmra.mrb[0].mxu0 %v1100
        %v1484 = vpop.f32.mrb[0].mxu0
        %v1485 = vadd.f32 %v1372, %v1484
        %v1486 = vpop.f32.mrb[0].mxu0
        %v1487 = vadd.f32 %v1374, %v1486
        %1488 = vmatprep.mubr.f32.mxu0 %v1107
        %1489 = vmatmul.mubr.f32.gmra.mrb[0].mxu0 %v1106
        %v1490 = vpop.f32.mrb[0].mxu0
        %v1491 = vadd.f32 %v1378, %v1490
        %v1492 = vpop.f32.mrb[0].mxu0
        %v1493 = vadd.f32 %v1380, %v1492
        %1494 = vdwg.mxu0
        %1495 = vmatprep.subr.mxu0 %v295
        %1496 = vmatpush1.msra.mxu0 %v294
        %1497 = vmatprep.subr.mxu0 %v303
        %1498 = vmatpush1.msra.mxu0 %v302
        %1499 = vmatprep.subr.mxu0 %v311
        %1500 = vmatpush1.msra.mxu0 %v310
        %1501 = vmatprep.subr.mxu0 %v319
        %1502 = vmatpush1.msra.mxu0 %v318
        %1503 = vmatprep.subr.mxu0 %v327
        %1504 = vmatpush1.msra.mxu0 %v326
        %1505 = vmatprep.subr.mxu0 %v335
        %1506 = vmatpush1.msra.mxu0 %v334
        %1507 = vmatprep.subr.mxu0 %v343
        %1508 = vmatpush1.msra.mxu0 %v342
        %1509 = vmatprep.subr.mxu0 %v351
        %1510 = vmatpush1.msra.mxu0 %v350
        %1511 = vmatprep.subr.mxu0 %v359
        %1512 = vmatpush1.msra.mxu0 %v358
        %1513 = vmatprep.subr.mxu0 %v367
        %1514 = vmatpush1.msra.mxu0 %v366
        %1515 = vmatprep.subr.mxu0 %v375
        %1516 = vmatpush1.msra.mxu0 %v374
        %1517 = vmatprep.subr.mxu0 %v383
        %1518 = vmatpush1.msra.mxu0 %v382
        %1519 = vmatprep.subr.mxu0 %v391
        %1520 = vmatpush1.msra.mxu0 %v390
        %1521 = vmatprep.subr.mxu0 %v399
        %1522 = vmatpush1.msra.mxu0 %v398
        %1523 = vmatprep.subr.mxu0 %v407
        %1524 = vmatpush1.msra.mxu0 %v406
        %1525 = vmatprep.subr.mxu0 %v415
        %1526 = vmatpush1.msra.mxu0 %v414
        %1527 = vmatprep.subr.mxu0 %v423
        %1528 = vmatpush1.msra.mxu0 %v422
        %1529 = vmatprep.subr.mxu0 %v431
        %1530 = vmatpush1.msra.mxu0 %v430
        %1531 = vmatprep.subr.mxu0 %v439
        %1532 = vmatpush1.msra.mxu0 %v438
        %1533 = vmatprep.subr.mxu0 %v447
        %1534 = vmatpush1.msra.mxu0 %v446
        %1535 = vmatprep.subr.mxu0 %v455
        %1536 = vmatpush1.msra.mxu0 %v454
        %1537 = vmatprep.subr.mxu0 %v463
        %1538 = vmatpush1.msra.mxu0 %v462
        %1539 = vmatprep.subr.mxu0 %v471
        %1540 = vmatpush1.msra.mxu0 %v470
        %1541 = vmatprep.subr.mxu0 %v479
        %1542 = vmatpush1.msra.mxu0 %v478
        %1543 = vmatprep.subr.mxu0 %v487
        %1544 = vmatpush1.msra.mxu0 %v486
        %1545 = vmatprep.subr.mxu0 %v495
        %1546 = vmatpush1.msra.mxu0 %v494
        %1547 = vmatprep.subr.mxu0 %v503
        %1548 = vmatpush1.msra.mxu0 %v502
        %1549 = vmatprep.subr.mxu0 %v511
        %1550 = vmatpush1.msra.mxu0 %v510
        %1551 = vmatprep.subr.mxu0 %v519
        %1552 = vmatpush1.msra.mxu0 %v518
        %1553 = vmatprep.subr.mxu0 %v527
        %1554 = vmatpush1.msra.mxu0 %v526
        %1555 = vmatprep.subr.mxu0 %v535
        %1556 = vmatpush1.msra.mxu0 %v534
        %1557 = vmatprep.subr.mxu0 %v543
        %1558 = vmatpush1.msra.mxu0 %v542
        %1559 = vmatprep.mubr.f32.mxu0 %v1061
        %1560 = vmatmul.mubr.f32.gmra.mrb[0].mxu0 %v1060
        %v1561 = vpop.f32.mrb[0].mxu0
        %v1562 = vadd.f32 %v1119, %v1561
        %v1563 = vpop.f32.mrb[0].mxu0
        %v1564 = vadd.f32 %v1119, %v1563
        %1565 = vmatprep.mubr.f32.mxu0 %v1067
        %1566 = vmatmul.mubr.f32.gmra.mrb[0].mxu0 %v1066
        %v1567 = vpop.f32.mrb[0].mxu0
        %v1568 = vadd.f32 %v1124, %v1567
        %v1569 = vpop.f32.mrb[0].mxu0
        %v1570 = vadd.f32 %v1124, %v1569
        %1571 = vmatprep.mubr.f32.mxu0 %v1073
        %1572 = vmatmul.mubr.f32.gmra.mrb[0].mxu0 %v1072
        %v1573 = vpop.f32.mrb[0].mxu0
        %v1574 = vadd.f32 %v1129, %v1573
        %v1575 = vpop.f32.mrb[0].mxu0
        %v1576 = vadd.f32 %v1129, %v1575
        %1577 = vmatprep.mubr.f32.mxu0 %v1079
        %1578 = vmatmul.mubr.f32.gmra.mrb[0].mxu0 %v1078
        %v1579 = vpop.f32.mrb[0].mxu0
        %v1580 = vadd.f32 %v1134, %v1579
        %v1581 = vpop.f32.mrb[0].mxu0
        %v1582 = vadd.f32 %v1134, %v1581
        %1583 = vmatprep.mubr.f32.mxu0 %v1085
        %1584 = vmatmul.mubr.f32.gmra.mrb[0].mxu0 %v1084
        %v1585 = vpop.f32.mrb[0].mxu0
        %v1586 = vadd.f32 %v1139, %v1585
        %v1587 = vpop.f32.mrb[0].mxu0
        %v1588 = vadd.f32 %v1139, %v1587
        %1589 = vmatprep.mubr.f32.mxu0 %v1091
        %1590 = vmatmul.mubr.f32.gmra.mrb[0].mxu0 %v1090
        %v1591 = vpop.f32.mrb[0].mxu0
        %v1592 = vadd.f32 %v1144, %v1591
        %v1593 = vpop.f32.mrb[0].mxu0
        %v1594 = vadd.f32 %v1144, %v1593
        %1595 = vmatprep.mubr.f32.mxu0 %v1097
        %1596 = vmatmul.mubr.f32.gmra.mrb[0].mxu0 %v1096
        %v1597 = vpop.f32.mrb[0].mxu0
        %v1598 = vadd.f32 %v1149, %v1597
        %v1599 = vpop.f32.mrb[0].mxu0
        %v1600 = vadd.f32 %v1149, %v1599
        %1601 = vmatprep.mubr.f32.mxu0 %v1103
        %1602 = vmatmul.mubr.f32.gmra.mrb[0].mxu0 %v1102
        %v1603 = vpop.f32.mrb[0].mxu0
        %v1604 = vadd.f32 %v1154, %v1603
        %v1605 = vpop.f32.mrb[0].mxu0
        %v1606 = vadd.f32 %v1154, %v1605
        %1607 = vdwg.mxu0
        %1608 = vmatprep.subr.mxu0 %v551
        %1609 = vmatpush1.msra.mxu0 %v550
        %1610 = vmatprep.subr.mxu0 %v559
        %1611 = vmatpush1.msra.mxu0 %v558
        %1612 = vmatprep.subr.mxu0 %v567
        %1613 = vmatpush1.msra.mxu0 %v566
        %1614 = vmatprep.subr.mxu0 %v575
        %1615 = vmatpush1.msra.mxu0 %v574
        %1616 = vmatprep.subr.mxu0 %v583
        %1617 = vmatpush1.msra.mxu0 %v582
        %1618 = vmatprep.subr.mxu0 %v591
        %1619 = vmatpush1.msra.mxu0 %v590
        %1620 = vmatprep.subr.mxu0 %v599
        %1621 = vmatpush1.msra.mxu0 %v598
        %1622 = vmatprep.subr.mxu0 %v607
        %1623 = vmatpush1.msra.mxu0 %v606
        %1624 = vmatprep.subr.mxu0 %v615
        %1625 = vmatpush1.msra.mxu0 %v614
        %1626 = vmatprep.subr.mxu0 %v623
        %1627 = vmatpush1.msra.mxu0 %v622
        %1628 = vmatprep.subr.mxu0 %v631
        %1629 = vmatpush1.msra.mxu0 %v630
        %1630 = vmatprep.subr.mxu0 %v639
        %1631 = vmatpush1.msra.mxu0 %v638
        %1632 = vmatprep.subr.mxu0 %v647
        %1633 = vmatpush1.msra.mxu0 %v646
        %1634 = vmatprep.subr.mxu0 %v655
        %1635 = vmatpush1.msra.mxu0 %v654
        %1636 = vmatprep.subr.mxu0 %v663
        %1637 = vmatpush1.msra.mxu0 %v662
        %1638 = vmatprep.subr.mxu0 %v671
        %1639 = vmatpush1.msra.mxu0 %v670
        %1640 = vmatprep.subr.mxu0 %v679
        %1641 = vmatpush1.msra.mxu0 %v678
        %1642 = vmatprep.subr.mxu0 %v687
        %1643 = vmatpush1.msra.mxu0 %v686
        %1644 = vmatprep.subr.mxu0 %v695
        %1645 = vmatpush1.msra.mxu0 %v694
        %1646 = vmatprep.subr.mxu0 %v703
        %1647 = vmatpush1.msra.mxu0 %v702
        %1648 = vmatprep.subr.mxu0 %v711
        %1649 = vmatpush1.msra.mxu0 %v710
        %1650 = vmatprep.subr.mxu0 %v719
        %1651 = vmatpush1.msra.mxu0 %v718
        %1652 = vmatprep.subr.mxu0 %v727
        %1653 = vmatpush1.msra.mxu0 %v726
        %1654 = vmatprep.subr.mxu0 %v735
        %1655 = vmatpush1.msra.mxu0 %v734
        %1656 = vmatprep.subr.mxu0 %v743
        %1657 = vmatpush1.msra.mxu0 %v742
        %1658 = vmatprep.subr.mxu0 %v751
        %1659 = vmatpush1.msra.mxu0 %v750
        %1660 = vmatprep.subr.mxu0 %v759
        %1661 = vmatpush1.msra.mxu0 %v758
        %1662 = vmatprep.subr.mxu0 %v767
        %1663 = vmatpush1.msra.mxu0 %v766
        %1664 = vmatprep.subr.mxu0 %v775
        %1665 = vmatpush1.msra.mxu0 %v774
        %1666 = vmatprep.subr.mxu0 %v783
        %1667 = vmatpush1.msra.mxu0 %v782
        %1668 = vmatprep.subr.mxu0 %v791
        %1669 = vmatpush1.msra.mxu0 %v790
        %1670 = vmatprep.subr.mxu0 %v799
        %1671 = vmatpush1.msra.mxu0 %v798
        %1672 = vmatprep.mubr.f32.mxu0 %v1063
        %1673 = vmatmul.mubr.f32.gmra.mrb[0].mxu0 %v1062
        %v1674 = vpop.f32.mrb[0].mxu0
        %v1675 = vadd.f32 %v1562, %v1674
        %v1676 = vpop.f32.mrb[0].mxu0
        %v1677 = vadd.f32 %v1564, %v1676
        %1678 = vmatprep.mubr.f32.mxu0 %v1069
        %1679 = vmatmul.mubr.f32.gmra.mrb[0].mxu0 %v1068
        %v1680 = vpop.f32.mrb[0].mxu0
        %v1681 = vadd.f32 %v1568, %v1680
        %v1682 = vpop.f32.mrb[0].mxu0
        %v1683 = vadd.f32 %v1570, %v1682
        %1684 = vmatprep.mubr.f32.mxu0 %v1075
        %1685 = vmatmul.mubr.f32.gmra.mrb[0].mxu0 %v1074
        %v1686 = vpop.f32.mrb[0].mxu0
        %v1687 = vadd.f32 %v1574, %v1686
        %v1688 = vpop.f32.mrb[0].mxu0
        %v1689 = vadd.f32 %v1576, %v1688
        %1690 = vmatprep.mubr.f32.mxu0 %v1081
        %1691 = vmatmul.mubr.f32.gmra.mrb[0].mxu0 %v1080
        %v1692 = vpop.f32.mrb[0].mxu0
        %v1693 = vadd.f32 %v1580, %v1692
        %v1694 = vpop.f32.mrb[0].mxu0
        %v1695 = vadd.f32 %v1582, %v1694
        %1696 = vmatprep.mubr.f32.mxu0 %v1087
        %1697 = vmatmul.mubr.f32.gmra.mrb[0].mxu0 %v1086
        %v1698 = vpop.f32.mrb[0].mxu0
        %v1699 = vadd.f32 %v1586, %v1698
        %v1700 = vpop.f32.mrb[0].mxu0
        %v1701 = vadd.f32 %v1588, %v1700
        %1702 = vmatprep.mubr.f32.mxu0 %v1093
        %1703 = vmatmul.mubr.f32.gmra.mrb[0].mxu0 %v1092
        %v1704 = vpop.f32.mrb[0].mxu0
        %v1705 = vadd.f32 %v1592, %v1704
        %v1706 = vpop.f32.mrb[0].mxu0
        %v1707 = vadd.f32 %v1594, %v1706
        %1708 = vmatprep.mubr.f32.mxu0 %v1099
        %1709 = vmatmul.mubr.f32.gmra.mrb[0].mxu0 %v1098
        %v1710 = vpop.f32.mrb[0].mxu0
        %v1711 = vadd.f32 %v1598, %v1710
        %v1712 = vpop.f32.mrb[0].mxu0
        %v1713 = vadd.f32 %v1600, %v1712
        %1714 = vmatprep.mubr.f32.mxu0 %v1105
        %1715 = vmatmul.mubr.f32.gmra.mrb[0].mxu0 %v1104
        %v1716 = vpop.f32.mrb[0].mxu0
        %v1717 = vadd.f32 %v1604, %v1716
        %v1718 = vpop.f32.mrb[0].mxu0
        %v1719 = vadd.f32 %v1606, %v1718
        %1720 = vdwg.mxu0
        %1721 = vmatprep.subr.mxu0 %v807
        %1722 = vmatpush1.msra.mxu0 %v806
        %1723 = vmatprep.subr.mxu0 %v815
        %1724 = vmatpush1.msra.mxu0 %v814
        %1725 = vmatprep.subr.mxu0 %v823
        %1726 = vmatpush1.msra.mxu0 %v822
        %1727 = vmatprep.subr.mxu0 %v831
        %1728 = vmatpush1.msra.mxu0 %v830
        %1729 = vmatprep.subr.mxu0 %v839
        %1730 = vmatpush1.msra.mxu0 %v838
        %1731 = vmatprep.subr.mxu0 %v847
        %1732 = vmatpush1.msra.mxu0 %v846
        %1733 = vmatprep.subr.mxu0 %v855
        %1734 = vmatpush1.msra.mxu0 %v854
        %1735 = vmatprep.subr.mxu0 %v863
        %1736 = vmatpush1.msra.mxu0 %v862
        %1737 = vmatprep.subr.mxu0 %v871
        %1738 = vmatpush1.msra.mxu0 %v870
        %1739 = vmatprep.subr.mxu0 %v879
        %1740 = vmatpush1.msra.mxu0 %v878
        %1741 = vmatprep.subr.mxu0 %v887
        %1742 = vmatpush1.msra.mxu0 %v886
        %1743 = vmatprep.subr.mxu0 %v895
        %1744 = vmatpush1.msra.mxu0 %v894
        %1745 = vmatprep.subr.mxu0 %v903
        %1746 = vmatpush1.msra.mxu0 %v902
        %1747 = vmatprep.subr.mxu0 %v911
        %1748 = vmatpush1.msra.mxu0 %v910
        %1749 = vmatprep.subr.mxu0 %v919
        %1750 = vmatpush1.msra.mxu0 %v918
        %1751 = vmatprep.subr.mxu0 %v927
        %1752 = vmatpush1.msra.mxu0 %v926
        %1753 = vmatprep.subr.mxu0 %v935
        %1754 = vmatpush1.msra.mxu0 %v934
        %1755 = vmatprep.subr.mxu0 %v943
        %1756 = vmatpush1.msra.mxu0 %v942
        %1757 = vmatprep.subr.mxu0 %v951
        %1758 = vmatpush1.msra.mxu0 %v950
        %1759 = vmatprep.subr.mxu0 %v959
        %1760 = vmatpush1.msra.mxu0 %v958
        %1761 = vmatprep.subr.mxu0 %v967
        %1762 = vmatpush1.msra.mxu0 %v966
        %1763 = vmatprep.subr.mxu0 %v975
        %1764 = vmatpush1.msra.mxu0 %v974
        %1765 = vmatprep.subr.mxu0 %v983
        %1766 = vmatpush1.msra.mxu0 %v982
        %1767 = vmatprep.subr.mxu0 %v991
        %1768 = vmatpush1.msra.mxu0 %v990
        %1769 = vmatprep.subr.mxu0 %v999
        %1770 = vmatpush1.msra.mxu0 %v998
        %1771 = vmatprep.subr.mxu0 %v1007
        %1772 = vmatpush1.msra.mxu0 %v1006
        %1773 = vmatprep.subr.mxu0 %v1015
        %1774 = vmatpush1.msra.mxu0 %v1014
        %1775 = vmatprep.subr.mxu0 %v1023
        %1776 = vmatpush1.msra.mxu0 %v1022
        %1777 = vmatprep.subr.mxu0 %v1031
        %1778 = vmatpush1.msra.mxu0 %v1030
        %1779 = vmatprep.subr.mxu0 %v1039
        %1780 = vmatpush1.msra.mxu0 %v1038
        %1781 = vmatprep.subr.mxu0 %v1047
        %1782 = vmatpush1.msra.mxu0 %v1046
        %1783 = vmatprep.subr.mxu0 %v1055
        %1784 = vmatpush1.msra.mxu0 %v1054
        %1785 = vmatprep.mubr.f32.mxu0 %v1065
        %1786 = vmatmul.mubr.f32.gmra.mrb[0].mxu0 %v1064
        %v1787 = vpop.f32.mrb[0].mxu0
        %v1788 = vadd.f32 %v1675, %v1787
        %v1789 = vpop.f32.mrb[0].mxu0
        %v1790 = vadd.f32 %v1677, %v1789
        %1791 = vmatprep.mubr.f32.mxu0 %v1071
        %1792 = vmatmul.mubr.f32.gmra.mrb[0].mxu0 %v1070
        %v1793 = vpop.f32.mrb[0].mxu0
        %v1794 = vadd.f32 %v1681, %v1793
        %v1795 = vpop.f32.mrb[0].mxu0
        %v1796 = vadd.f32 %v1683, %v1795
        %1797 = vmatprep.mubr.f32.mxu0 %v1077
        %1798 = vmatmul.mubr.f32.gmra.mrb[0].mxu0 %v1076
        %v1799 = vpop.f32.mrb[0].mxu0
        %v1800 = vadd.f32 %v1687, %v1799
        %v1801 = vpop.f32.mrb[0].mxu0
        %v1802 = vadd.f32 %v1689, %v1801
        %1803 = vmatprep.mubr.f32.mxu0 %v1083
        %1804 = vmatmul.mubr.f32.gmra.mrb[0].mxu0 %v1082
        %v1805 = vpop.f32.mrb[0].mxu0
        %v1806 = vadd.f32 %v1693, %v1805
        %v1807 = vpop.f32.mrb[0].mxu0
        %v1808 = vadd.f32 %v1695, %v1807
        %1809 = vmatprep.mubr.f32.mxu0 %v1089
        %1810 = vmatmul.mubr.f32.gmra.mrb[0].mxu0 %v1088
        %v1811 = vpop.f32.mrb[0].mxu0
        %v1812 = vadd.f32 %v1699, %v1811
        %v1813 = vpop.f32.mrb[0].mxu0
        %v1814 = vadd.f32 %v1701, %v1813
        %1815 = vmatprep.mubr.f32.mxu0 %v1095
        %1816 = vmatmul.mubr.f32.gmra.mrb[0].mxu0 %v1094
        %v1817 = vpop.f32.mrb[0].mxu0
        %v1818 = vadd.f32 %v1705, %v1817
        %v1819 = vpop.f32.mrb[0].mxu0
        %v1820 = vadd.f32 %v1707, %v1819
        %1821 = vmatprep.mubr.f32.mxu0 %v1101
        %1822 = vmatmul.mubr.f32.gmra.mrb[0].mxu0 %v1100
        %v1823 = vpop.f32.mrb[0].mxu0
        %v1824 = vadd.f32 %v1711, %v1823
        %v1825 = vpop.f32.mrb[0].mxu0
        %v1826 = vadd.f32 %v1713, %v1825
        %1827 = vmatprep.mubr.f32.mxu0 %v1107
        %1828 = vmatmul.mubr.f32.gmra.mrb[0].mxu0 %v1106
        %v1829 = vpop.f32.mrb[0].mxu0
        %v1830 = vadd.f32 %v1717, %v1829
        %v1831 = vpop.f32.mrb[0].mxu0
        %v1832 = vadd.f32 %v1719, %v1831
        %1833 = vdwg.mxu0
        %1834 = vmatprep.subr.mxu0 %v297
        %1835 = vmatpush1.msra.mxu0 %v296
        %1836 = vmatprep.subr.mxu0 %v305
        %1837 = vmatpush1.msra.mxu0 %v304
        %1838 = vmatprep.subr.mxu0 %v313
        %1839 = vmatpush1.msra.mxu0 %v312
        %1840 = vmatprep.subr.mxu0 %v321
        %1841 = vmatpush1.msra.mxu0 %v320
        %1842 = vmatprep.subr.mxu0 %v329
        %1843 = vmatpush1.msra.mxu0 %v328
        %1844 = vmatprep.subr.mxu0 %v337
        %1845 = vmatpush1.msra.mxu0 %v336
        %1846 = vmatprep.subr.mxu0 %v345
        %1847 = vmatpush1.msra.mxu0 %v344
        %1848 = vmatprep.subr.mxu0 %v353
        %1849 = vmatpush1.msra.mxu0 %v352
        %1850 = vmatprep.subr.mxu0 %v361
        %1851 = vmatpush1.msra.mxu0 %v360
        %1852 = vmatprep.subr.mxu0 %v369
        %1853 = vmatpush1.msra.mxu0 %v368
        %1854 = vmatprep.subr.mxu0 %v377
        %1855 = vmatpush1.msra.mxu0 %v376
        %1856 = vmatprep.subr.mxu0 %v385
        %1857 = vmatpush1.msra.mxu0 %v384
        %1858 = vmatprep.subr.mxu0 %v393
        %1859 = vmatpush1.msra.mxu0 %v392
        %1860 = vmatprep.subr.mxu0 %v401
        %1861 = vmatpush1.msra.mxu0 %v400
        %1862 = vmatprep.subr.mxu0 %v409
        %1863 = vmatpush1.msra.mxu0 %v408
        %1864 = vmatprep.subr.mxu0 %v417
        %1865 = vmatpush1.msra.mxu0 %v416
        %1866 = vmatprep.subr.mxu0 %v425
        %1867 = vmatpush1.msra.mxu0 %v424
        %1868 = vmatprep.subr.mxu0 %v433
        %1869 = vmatpush1.msra.mxu0 %v432
        %1870 = vmatprep.subr.mxu0 %v441
        %1871 = vmatpush1.msra.mxu0 %v440
        %1872 = vmatprep.subr.mxu0 %v449
        %1873 = vmatpush1.msra.mxu0 %v448
        %1874 = vmatprep.subr.mxu0 %v457
        %1875 = vmatpush1.msra.mxu0 %v456
        %1876 = vmatprep.subr.mxu0 %v465
        %1877 = vmatpush1.msra.mxu0 %v464
        %1878 = vmatprep.subr.mxu0 %v473
        %1879 = vmatpush1.msra.mxu0 %v472
        %1880 = vmatprep.subr.mxu0 %v481
        %1881 = vmatpush1.msra.mxu0 %v480
        %1882 = vmatprep.subr.mxu0 %v489
        %1883 = vmatpush1.msra.mxu0 %v488
        %1884 = vmatprep.subr.mxu0 %v497
        %1885 = vmatpush1.msra.mxu0 %v496
        %1886 = vmatprep.subr.mxu0 %v505
        %1887 = vmatpush1.msra.mxu0 %v504
        %1888 = vmatprep.subr.mxu0 %v513
        %1889 = vmatpush1.msra.mxu0 %v512
        %1890 = vmatprep.subr.mxu0 %v521
        %1891 = vmatpush1.msra.mxu0 %v520
        %1892 = vmatprep.subr.mxu0 %v529
        %1893 = vmatpush1.msra.mxu0 %v528
        %1894 = vmatprep.subr.mxu0 %v537
        %1895 = vmatpush1.msra.mxu0 %v536
        %1896 = vmatprep.subr.mxu0 %v545
        %1897 = vmatpush1.msra.mxu0 %v544
        %1898 = vmatprep.mubr.f32.mxu0 %v1061
        %1899 = vmatmul.mubr.f32.gmra.mrb[0].mxu0 %v1060
        %v1900 = vpop.f32.mrb[0].mxu0
        %v1901 = vadd.f32 %v1119, %v1900
        %v1902 = vpop.f32.mrb[0].mxu0
        %v1903 = vadd.f32 %v1119, %v1902
        %1904 = vmatprep.mubr.f32.mxu0 %v1067
        %1905 = vmatmul.mubr.f32.gmra.mrb[0].mxu0 %v1066
        %v1906 = vpop.f32.mrb[0].mxu0
        %v1907 = vadd.f32 %v1124, %v1906
        %v1908 = vpop.f32.mrb[0].mxu0
        %v1909 = vadd.f32 %v1124, %v1908
        %1910 = vmatprep.mubr.f32.mxu0 %v1073
        %1911 = vmatmul.mubr.f32.gmra.mrb[0].mxu0 %v1072
        %v1912 = vpop.f32.mrb[0].mxu0
        %v1913 = vadd.f32 %v1129, %v1912
        %v1914 = vpop.f32.mrb[0].mxu0
        %v1915 = vadd.f32 %v1129, %v1914
        %1916 = vmatprep.mubr.f32.mxu0 %v1079
        %1917 = vmatmul.mubr.f32.gmra.mrb[0].mxu0 %v1078
        %v1918 = vpop.f32.mrb[0].mxu0
        %v1919 = vadd.f32 %v1134, %v1918
        %v1920 = vpop.f32.mrb[0].mxu0
        %v1921 = vadd.f32 %v1134, %v1920
        %1922 = vmatprep.mubr.f32.mxu0 %v1085
        %1923 = vmatmul.mubr.f32.gmra.mrb[0].mxu0 %v1084
        %v1924 = vpop.f32.mrb[0].mxu0
        %v1925 = vadd.f32 %v1139, %v1924
        %v1926 = vpop.f32.mrb[0].mxu0
        %v1927 = vadd.f32 %v1139, %v1926
        %1928 = vmatprep.mubr.f32.mxu0 %v1091
        %1929 = vmatmul.mubr.f32.gmra.mrb[0].mxu0 %v1090
        %v1930 = vpop.f32.mrb[0].mxu0
        %v1931 = vadd.f32 %v1144, %v1930
        %v1932 = vpop.f32.mrb[0].mxu0
        %v1933 = vadd.f32 %v1144, %v1932
        %1934 = vmatprep.mubr.f32.mxu0 %v1097
        %1935 = vmatmul.mubr.f32.gmra.mrb[0].mxu0 %v1096
        %v1936 = vpop.f32.mrb[0].mxu0
        %v1937 = vadd.f32 %v1149, %v1936
        %v1938 = vpop.f32.mrb[0].mxu0
        %v1939 = vadd.f32 %v1149, %v1938
        %1940 = vmatprep.mubr.f32.mxu0 %v1103
        %1941 = vmatmul.mubr.f32.gmra.mrb[0].mxu0 %v1102
        %v1942 = vpop.f32.mrb[0].mxu0
        %v1943 = vadd.f32 %v1154, %v1942
        %v1944 = vpop.f32.mrb[0].mxu0
        %v1945 = vadd.f32 %v1154, %v1944
        %1946 = vdwg.mxu0
        %1947 = vmatprep.subr.mxu0 %v553
        %1948 = vmatpush1.msra.mxu0 %v552
        %1949 = vmatprep.subr.mxu0 %v561
        %1950 = vmatpush1.msra.mxu0 %v560
        %1951 = vmatprep.subr.mxu0 %v569
        %1952 = vmatpush1.msra.mxu0 %v568
        %1953 = vmatprep.subr.mxu0 %v577
        %1954 = vmatpush1.msra.mxu0 %v576
        %1955 = vmatprep.subr.mxu0 %v585
        %1956 = vmatpush1.msra.mxu0 %v584
        %1957 = vmatprep.subr.mxu0 %v593
        %1958 = vmatpush1.msra.mxu0 %v592
        %1959 = vmatprep.subr.mxu0 %v601
        %1960 = vmatpush1.msra.mxu0 %v600
        %1961 = vmatprep.subr.mxu0 %v609
        %1962 = vmatpush1.msra.mxu0 %v608
        %1963 = vmatprep.subr.mxu0 %v617
        %1964 = vmatpush1.msra.mxu0 %v616
        %1965 = vmatprep.subr.mxu0 %v625
        %1966 = vmatpush1.msra.mxu0 %v624
        %1967 = vmatprep.subr.mxu0 %v633
        %1968 = vmatpush1.msra.mxu0 %v632
        %1969 = vmatprep.subr.mxu0 %v641
        %1970 = vmatpush1.msra.mxu0 %v640
        %1971 = vmatprep.subr.mxu0 %v649
        %1972 = vmatpush1.msra.mxu0 %v648
        %1973 = vmatprep.subr.mxu0 %v657
        %1974 = vmatpush1.msra.mxu0 %v656
        %1975 = vmatprep.subr.mxu0 %v665
        %1976 = vmatpush1.msra.mxu0 %v664
        %1977 = vmatprep.subr.mxu0 %v673
        %1978 = vmatpush1.msra.mxu0 %v672
        %1979 = vmatprep.subr.mxu0 %v681
        %1980 = vmatpush1.msra.mxu0 %v680
        %1981 = vmatprep.subr.mxu0 %v689
        %1982 = vmatpush1.msra.mxu0 %v688
        %1983 = vmatprep.subr.mxu0 %v697
        %1984 = vmatpush1.msra.mxu0 %v696
        %1985 = vmatprep.subr.mxu0 %v705
        %1986 = vmatpush1.msra.mxu0 %v704
        %1987 = vmatprep.subr.mxu0 %v713
        %1988 = vmatpush1.msra.mxu0 %v712
        %1989 = vmatprep.subr.mxu0 %v721
        %1990 = vmatpush1.msra.mxu0 %v720
        %1991 = vmatprep.subr.mxu0 %v729
        %1992 = vmatpush1.msra.mxu0 %v728
        %1993 = vmatprep.subr.mxu0 %v737
        %1994 = vmatpush1.msra.mxu0 %v736
        %1995 = vmatprep.subr.mxu0 %v745
        %1996 = vmatpush1.msra.mxu0 %v744
        %1997 = vmatprep.subr.mxu0 %v753
        %1998 = vmatpush1.msra.mxu0 %v752
        %1999 = vmatprep.subr.mxu0 %v761
        %2000 = vmatpush1.msra.mxu0 %v760
        %2001 = vmatprep.subr.mxu0 %v769
        %2002 = vmatpush1.msra.mxu0 %v768
        %2003 = vmatprep.subr.mxu0 %v777
        %2004 = vmatpush1.msra.mxu0 %v776
        %2005 = vmatprep.subr.mxu0 %v785
        %2006 = vmatpush1.msra.mxu0 %v784
        %2007 = vmatprep.subr.mxu0 %v793
        %2008 = vmatpush1.msra.mxu0 %v792
        %2009 = vmatprep.subr.mxu0 %v801
        %2010 = vmatpush1.msra.mxu0 %v800
        %2011 = vmatprep.mubr.f32.mxu0 %v1063
        %2012 = vmatmul.mubr.f32.gmra.mrb[0].mxu0 %v1062
        %v2013 = vpop.f32.mrb[0].mxu0
        %v2014 = vadd.f32 %v1901, %v2013
        %v2015 = vpop.f32.mrb[0].mxu0
        %v2016 = vadd.f32 %v1903, %v2015
        %2017 = vmatprep.mubr.f32.mxu0 %v1069
        %2018 = vmatmul.mubr.f32.gmra.mrb[0].mxu0 %v1068
        %v2019 = vpop.f32.mrb[0].mxu0
        %v2020 = vadd.f32 %v1907, %v2019
        %v2021 = vpop.f32.mrb[0].mxu0
        %v2022 = vadd.f32 %v1909, %v2021
        %2023 = vmatprep.mubr.f32.mxu0 %v1075
        %2024 = vmatmul.mubr.f32.gmra.mrb[0].mxu0 %v1074
        %v2025 = vpop.f32.mrb[0].mxu0
        %v2026 = vadd.f32 %v1913, %v2025
        %v2027 = vpop.f32.mrb[0].mxu0
        %v2028 = vadd.f32 %v1915, %v2027
        %2029 = vmatprep.mubr.f32.mxu0 %v1081
        %2030 = vmatmul.mubr.f32.gmra.mrb[0].mxu0 %v1080
        %v2031 = vpop.f32.mrb[0].mxu0
        %v2032 = vadd.f32 %v1919, %v2031
        %v2033 = vpop.f32.mrb[0].mxu0
        %v2034 = vadd.f32 %v1921, %v2033
        %2035 = vmatprep.mubr.f32.mxu0 %v1087
        %2036 = vmatmul.mubr.f32.gmra.mrb[0].mxu0 %v1086
        %v2037 = vpop.f32.mrb[0].mxu0
        %v2038 = vadd.f32 %v1925, %v2037
        %v2039 = vpop.f32.mrb[0].mxu0
        %v2040 = vadd.f32 %v1927, %v2039
        %2041 = vmatprep.mubr.f32.mxu0 %v1093
        %2042 = vmatmul.mubr.f32.gmra.mrb[0].mxu0 %v1092
        %v2043 = vpop.f32.mrb[0].mxu0
        %v2044 = vadd.f32 %v1931, %v2043
        %v2045 = vpop.f32.mrb[0].mxu0
        %v2046 = vadd.f32 %v1933, %v2045
        %2047 = vmatprep.mubr.f32.mxu0 %v1099
        %2048 = vmatmul.mubr.f32.gmra.mrb[0].mxu0 %v1098
        %v2049 = vpop.f32.mrb[0].mxu0
        %v2050 = vadd.f32 %v1937, %v2049
        %v2051 = vpop.f32.mrb[0].mxu0
        %v2052 = vadd.f32 %v1939, %v2051
        %2053 = vmatprep.mubr.f32.mxu0 %v1105
        %2054 = vmatmul.mubr.f32.gmra.mrb[0].mxu0 %v1104
        %v2055 = vpop.f32.mrb[0].mxu0
        %v2056 = vadd.f32 %v1943, %v2055
        %v2057 = vpop.f32.mrb[0].mxu0
        %v2058 = vadd.f32 %v1945, %v2057
        %2059 = vdwg.mxu0
        %2060 = vmatprep.subr.mxu0 %v809
        %2061 = vmatpush1.msra.mxu0 %v808
        %2062 = vmatprep.subr.mxu0 %v817
        %2063 = vmatpush1.msra.mxu0 %v816
        %2064 = vmatprep.subr.mxu0 %v825
        %2065 = vmatpush1.msra.mxu0 %v824
        %2066 = vmatprep.subr.mxu0 %v833
        %2067 = vmatpush1.msra.mxu0 %v832
        %2068 = vmatprep.subr.mxu0 %v841
        %2069 = vmatpush1.msra.mxu0 %v840
        %2070 = vmatprep.subr.mxu0 %v849
        %2071 = vmatpush1.msra.mxu0 %v848
        %2072 = vmatprep.subr.mxu0 %v857
        %2073 = vmatpush1.msra.mxu0 %v856
        %2074 = vmatprep.subr.mxu0 %v865
        %2075 = vmatpush1.msra.mxu0 %v864
        %2076 = vmatprep.subr.mxu0 %v873
        %2077 = vmatpush1.msra.mxu0 %v872
        %2078 = vmatprep.subr.mxu0 %v881
        %2079 = vmatpush1.msra.mxu0 %v880
        %2080 = vmatprep.subr.mxu0 %v889
        %2081 = vmatpush1.msra.mxu0 %v888
        %2082 = vmatprep.subr.mxu0 %v897
        %2083 = vmatpush1.msra.mxu0 %v896
        %2084 = vmatprep.subr.mxu0 %v905
        %2085 = vmatpush1.msra.mxu0 %v904
        %2086 = vmatprep.subr.mxu0 %v913
        %2087 = vmatpush1.msra.mxu0 %v912
        %2088 = vmatprep.subr.mxu0 %v921
        %2089 = vmatpush1.msra.mxu0 %v920
        %2090 = vmatprep.subr.mxu0 %v929
        %2091 = vmatpush1.msra.mxu0 %v928
        %2092 = vmatprep.subr.mxu0 %v937
        %2093 = vmatpush1.msra.mxu0 %v936
        %2094 = vmatprep.subr.mxu0 %v945
        %2095 = vmatpush1.msra.mxu0 %v944
        %2096 = vmatprep.subr.mxu0 %v953
        %2097 = vmatpush1.msra.mxu0 %v952
        %2098 = vmatprep.subr.mxu0 %v961
        %2099 = vmatpush1.msra.mxu0 %v960
        %2100 = vmatprep.subr.mxu0 %v969
        %2101 = vmatpush1.msra.mxu0 %v968
        %2102 = vmatprep.subr.mxu0 %v977
        %2103 = vmatpush1.msra.mxu0 %v976
        %2104 = vmatprep.subr.mxu0 %v985
        %2105 = vmatpush1.msra.mxu0 %v984
        %2106 = vmatprep.subr.mxu0 %v993
        %2107 = vmatpush1.msra.mxu0 %v992
        %2108 = vmatprep.subr.mxu0 %v1001
        %2109 = vmatpush1.msra.mxu0 %v1000
        %2110 = vmatprep.subr.mxu0 %v1009
        %2111 = vmatpush1.msra.mxu0 %v1008
        %2112 = vmatprep.subr.mxu0 %v1017
        %2113 = vmatpush1.msra.mxu0 %v1016
        %2114 = vmatprep.subr.mxu0 %v1025
        %2115 = vmatpush1.msra.mxu0 %v1024
        %2116 = vmatprep.subr.mxu0 %v1033
        %2117 = vmatpush1.msra.mxu0 %v1032
        %2118 = vmatprep.subr.mxu0 %v1041
        %2119 = vmatpush1.msra.mxu0 %v1040
        %2120 = vmatprep.subr.mxu0 %v1049
        %2121 = vmatpush1.msra.mxu0 %v1048
        %2122 = vmatprep.subr.mxu0 %v1057
        %2123 = vmatpush1.msra.mxu0 %v1056
        %2124 = vmatprep.mubr.f32.mxu0 %v1065
        %2125 = vmatmul.mubr.f32.gmra.mrb[0].mxu0 %v1064
        %v2126 = vpop.f32.mrb[0].mxu0
        %v2127 = vadd.f32 %v2014, %v2126
        %v2128 = vpop.f32.mrb[0].mxu0
        %v2129 = vadd.f32 %v2016, %v2128
        %2130 = vmatprep.mubr.f32.mxu0 %v1071
        %2131 = vmatmul.mubr.f32.gmra.mrb[0].mxu0 %v1070
        %v2132 = vpop.f32.mrb[0].mxu0
        %v2133 = vadd.f32 %v2020, %v2132
        %v2134 = vpop.f32.mrb[0].mxu0
        %v2135 = vadd.f32 %v2022, %v2134
        %2136 = vmatprep.mubr.f32.mxu0 %v1077
        %2137 = vmatmul.mubr.f32.gmra.mrb[0].mxu0 %v1076
        %v2138 = vpop.f32.mrb[0].mxu0
        %v2139 = vadd.f32 %v2026, %v2138
        %v2140 = vpop.f32.mrb[0].mxu0
        %v2141 = vadd.f32 %v2028, %v2140
        %2142 = vmatprep.mubr.f32.mxu0 %v1083
        %2143 = vmatmul.mubr.f32.gmra.mrb[0].mxu0 %v1082
        %v2144 = vpop.f32.mrb[0].mxu0
        %v2145 = vadd.f32 %v2032, %v2144
        %v2146 = vpop.f32.mrb[0].mxu0
        %v2147 = vadd.f32 %v2034, %v2146
        %2148 = vmatprep.mubr.f32.mxu0 %v1089
        %2149 = vmatmul.mubr.f32.gmra.mrb[0].mxu0 %v1088
        %v2150 = vpop.f32.mrb[0].mxu0
        %v2151 = vadd.f32 %v2038, %v2150
        %v2152 = vpop.f32.mrb[0].mxu0
        %v2153 = vadd.f32 %v2040, %v2152
        %2154 = vmatprep.mubr.f32.mxu0 %v1095
        %2155 = vmatmul.mubr.f32.gmra.mrb[0].mxu0 %v1094
        %v2156 = vpop.f32.mrb[0].mxu0
        %v2157 = vadd.f32 %v2044, %v2156
        %v2158 = vpop.f32.mrb[0].mxu0
        %v2159 = vadd.f32 %v2046, %v2158
        %2160 = vmatprep.mubr.f32.mxu0 %v1101
        %2161 = vmatmul.mubr.f32.gmra.mrb[0].mxu0 %v1100
        %v2162 = vpop.f32.mrb[0].mxu0
        %v2163 = vadd.f32 %v2050, %v2162
        %v2164 = vpop.f32.mrb[0].mxu0
        %v2165 = vadd.f32 %v2052, %v2164
        %2166 = vmatprep.mubr.f32.mxu0 %v1107
        %2167 = vmatmul.mubr.f32.gmra.mrb[0].mxu0 %v1106
        %v2168 = vpop.f32.mrb[0].mxu0
        %v2169 = vadd.f32 %v2056, %v2168
        %v2170 = vpop.f32.mrb[0].mxu0
        %v2171 = vadd.f32 %v2058, %v2170
        %2172 = vdwg.mxu0
        %2173 = vmatprep.subr.mxu0 %v299
        %2174 = vmatpush1.msra.mxu0 %v298
        %2175 = vmatprep.subr.mxu0 %v307
        %2176 = vmatpush1.msra.mxu0 %v306
        %2177 = vmatprep.subr.mxu0 %v315
        %2178 = vmatpush1.msra.mxu0 %v314
        %2179 = vmatprep.subr.mxu0 %v323
        %2180 = vmatpush1.msra.mxu0 %v322
        %2181 = vmatprep.subr.mxu0 %v331
        %2182 = vmatpush1.msra.mxu0 %v330
        %2183 = vmatprep.subr.mxu0 %v339
        %2184 = vmatpush1.msra.mxu0 %v338
        %2185 = vmatprep.subr.mxu0 %v347
        %2186 = vmatpush1.msra.mxu0 %v346
        %2187 = vmatprep.subr.mxu0 %v355
        %2188 = vmatpush1.msra.mxu0 %v354
        %2189 = vmatprep.subr.mxu0 %v363
        %2190 = vmatpush1.msra.mxu0 %v362
        %2191 = vmatprep.subr.mxu0 %v371
        %2192 = vmatpush1.msra.mxu0 %v370
        %2193 = vmatprep.subr.mxu0 %v379
        %2194 = vmatpush1.msra.mxu0 %v378
        %2195 = vmatprep.subr.mxu0 %v387
        %2196 = vmatpush1.msra.mxu0 %v386
        %2197 = vmatprep.subr.mxu0 %v395
        %2198 = vmatpush1.msra.mxu0 %v394
        %2199 = vmatprep.subr.mxu0 %v403
        %2200 = vmatpush1.msra.mxu0 %v402
        %2201 = vmatprep.subr.mxu0 %v411
        %2202 = vmatpush1.msra.mxu0 %v410
        %2203 = vmatprep.subr.mxu0 %v419
        %2204 = vmatpush1.msra.mxu0 %v418
        %2205 = vmatprep.subr.mxu0 %v427
        %2206 = vmatpush1.msra.mxu0 %v426
        %2207 = vmatprep.subr.mxu0 %v435
        %2208 = vmatpush1.msra.mxu0 %v434
        %2209 = vmatprep.subr.mxu0 %v443
        %2210 = vmatpush1.msra.mxu0 %v442
        %2211 = vmatprep.subr.mxu0 %v451
        %2212 = vmatpush1.msra.mxu0 %v450
        %2213 = vmatprep.subr.mxu0 %v459
        %2214 = vmatpush1.msra.mxu0 %v458
        %2215 = vmatprep.subr.mxu0 %v467
        %2216 = vmatpush1.msra.mxu0 %v466
        %2217 = vmatprep.subr.mxu0 %v475
        %2218 = vmatpush1.msra.mxu0 %v474
        %2219 = vmatprep.subr.mxu0 %v483
        %2220 = vmatpush1.msra.mxu0 %v482
        %2221 = vmatprep.subr.mxu0 %v491
        %2222 = vmatpush1.msra.mxu0 %v490
        %2223 = vmatprep.subr.mxu0 %v499
        %2224 = vmatpush1.msra.mxu0 %v498
        %2225 = vmatprep.subr.mxu0 %v507
        %2226 = vmatpush1.msra.mxu0 %v506
        %2227 = vmatprep.subr.mxu0 %v515
        %2228 = vmatpush1.msra.mxu0 %v514
        %2229 = vmatprep.subr.mxu0 %v523
        %2230 = vmatpush1.msra.mxu0 %v522
        %2231 = vmatprep.subr.mxu0 %v531
        %2232 = vmatpush1.msra.mxu0 %v530
        %2233 = vmatprep.subr.mxu0 %v539
        %2234 = vmatpush1.msra.mxu0 %v538
        %2235 = vmatprep.subr.mxu0 %v547
        %2236 = vmatpush1.msra.mxu0 %v546
        %2237 = vmatprep.mubr.f32.mxu0 %v1061
        %2238 = vmatmul.mubr.f32.gmra.mrb[0].mxu0 %v1060
        %v2239 = vpop.f32.mrb[0].mxu0
        %v2240 = vadd.f32 %v1119, %v2239
        %v2241 = vpop.f32.mrb[0].mxu0
        %v2242 = vadd.f32 %v1119, %v2241
        %2243 = vmatprep.mubr.f32.mxu0 %v1067
        %2244 = vmatmul.mubr.f32.gmra.mrb[0].mxu0 %v1066
        %v2245 = vpop.f32.mrb[0].mxu0
        %v2246 = vadd.f32 %v1124, %v2245
        %v2247 = vpop.f32.mrb[0].mxu0
        %v2248 = vadd.f32 %v1124, %v2247
        %2249 = vmatprep.mubr.f32.mxu0 %v1073
        %2250 = vmatmul.mubr.f32.gmra.mrb[0].mxu0 %v1072
        %v2251 = vpop.f32.mrb[0].mxu0
        %v2252 = vadd.f32 %v1129, %v2251
        %v2253 = vpop.f32.mrb[0].mxu0
        %v2254 = vadd.f32 %v1129, %v2253
        %2255 = vmatprep.mubr.f32.mxu0 %v1079
        %2256 = vmatmul.mubr.f32.gmra.mrb[0].mxu0 %v1078
        %v2257 = vpop.f32.mrb[0].mxu0
        %v2258 = vadd.f32 %v1134, %v2257
        %v2259 = vpop.f32.mrb[0].mxu0
        %v2260 = vadd.f32 %v1134, %v2259
        %2261 = vmatprep.mubr.f32.mxu0 %v1085
        %2262 = vmatmul.mubr.f32.gmra.mrb[0].mxu0 %v1084
        %v2263 = vpop.f32.mrb[0].mxu0
        %v2264 = vadd.f32 %v1139, %v2263
        %v2265 = vpop.f32.mrb[0].mxu0
        %v2266 = vadd.f32 %v1139, %v2265
        %2267 = vmatprep.mubr.f32.mxu0 %v1091
        %2268 = vmatmul.mubr.f32.gmra.mrb[0].mxu0 %v1090
        %v2269 = vpop.f32.mrb[0].mxu0
        %v2270 = vadd.f32 %v1144, %v2269
        %v2271 = vpop.f32.mrb[0].mxu0
        %v2272 = vadd.f32 %v1144, %v2271
        %2273 = vmatprep.mubr.f32.mxu0 %v1097
        %2274 = vmatmul.mubr.f32.gmra.mrb[0].mxu0 %v1096
        %v2275 = vpop.f32.mrb[0].mxu0
        %v2276 = vadd.f32 %v1149, %v2275
        %v2277 = vpop.f32.mrb[0].mxu0
        %v2278 = vadd.f32 %v1149, %v2277
        %2279 = vmatprep.mubr.f32.mxu0 %v1103
        %2280 = vmatmul.mubr.f32.gmra.mrb[0].mxu0 %v1102
        %v2281 = vpop.f32.mrb[0].mxu0
        %v2282 = vadd.f32 %v1154, %v2281
        %v2283 = vpop.f32.mrb[0].mxu0
        %v2284 = vadd.f32 %v1154, %v2283
        %2285 = vdwg.mxu0
        %2286 = vmatprep.subr.mxu0 %v555
        %2287 = vmatpush1.msra.mxu0 %v554
        %2288 = vmatprep.subr.mxu0 %v563
        %2289 = vmatpush1.msra.mxu0 %v562
        %2290 = vmatprep.subr.mxu0 %v571
        %2291 = vmatpush1.msra.mxu0 %v570
        %2292 = vmatprep.subr.mxu0 %v579
        %2293 = vmatpush1.msra.mxu0 %v578
        %2294 = vmatprep.subr.mxu0 %v587
        %2295 = vmatpush1.msra.mxu0 %v586
        %2296 = vmatprep.subr.mxu0 %v595
        %2297 = vmatpush1.msra.mxu0 %v594
        %2298 = vmatprep.subr.mxu0 %v603
        %2299 = vmatpush1.msra.mxu0 %v602
        %2300 = vmatprep.subr.mxu0 %v611
        %2301 = vmatpush1.msra.mxu0 %v610
        %2302 = vmatprep.subr.mxu0 %v619
        %2303 = vmatpush1.msra.mxu0 %v618
        %2304 = vmatprep.subr.mxu0 %v627
        %2305 = vmatpush1.msra.mxu0 %v626
        %2306 = vmatprep.subr.mxu0 %v635
        %2307 = vmatpush1.msra.mxu0 %v634
        %2308 = vmatprep.subr.mxu0 %v643
        %2309 = vmatpush1.msra.mxu0 %v642
        %2310 = vmatprep.subr.mxu0 %v651
        %2311 = vmatpush1.msra.mxu0 %v650
        %2312 = vmatprep.subr.mxu0 %v659
        %2313 = vmatpush1.msra.mxu0 %v658
        %2314 = vmatprep.subr.mxu0 %v667
        %2315 = vmatpush1.msra.mxu0 %v666
        %2316 = vmatprep.subr.mxu0 %v675
        %2317 = vmatpush1.msra.mxu0 %v674
        %2318 = vmatprep.subr.mxu0 %v683
        %2319 = vmatpush1.msra.mxu0 %v682
        %2320 = vmatprep.subr.mxu0 %v691
        %2321 = vmatpush1.msra.mxu0 %v690
        %2322 = vmatprep.subr.mxu0 %v699
        %2323 = vmatpush1.msra.mxu0 %v698
        %2324 = vmatprep.subr.mxu0 %v707
        %2325 = vmatpush1.msra.mxu0 %v706
        %2326 = vmatprep.subr.mxu0 %v715
        %2327 = vmatpush1.msra.mxu0 %v714
        %2328 = vmatprep.subr.mxu0 %v723
        %2329 = vmatpush1.msra.mxu0 %v722
        %2330 = vmatprep.subr.mxu0 %v731
        %2331 = vmatpush1.msra.mxu0 %v730
        %2332 = vmatprep.subr.mxu0 %v739
        %2333 = vmatpush1.msra.mxu0 %v738
        %2334 = vmatprep.subr.mxu0 %v747
        %2335 = vmatpush1.msra.mxu0 %v746
        %2336 = vmatprep.subr.mxu0 %v755
        %2337 = vmatpush1.msra.mxu0 %v754
        %2338 = vmatprep.subr.mxu0 %v763
        %2339 = vmatpush1.msra.mxu0 %v762
        %2340 = vmatprep.subr.mxu0 %v771
        %2341 = vmatpush1.msra.mxu0 %v770
        %2342 = vmatprep.subr.mxu0 %v779
        %2343 = vmatpush1.msra.mxu0 %v778
        %2344 = vmatprep.subr.mxu0 %v787
        %2345 = vmatpush1.msra.mxu0 %v786
        %2346 = vmatprep.subr.mxu0 %v795
        %2347 = vmatpush1.msra.mxu0 %v794
        %2348 = vmatprep.subr.mxu0 %v803
        %2349 = vmatpush1.msra.mxu0 %v802
        %2350 = vmatprep.mubr.f32.mxu0 %v1063
        %2351 = vmatmul.mubr.f32.gmra.mrb[0].mxu0 %v1062
        %v2352 = vpop.f32.mrb[0].mxu0
        %v2353 = vadd.f32 %v2240, %v2352
        %v2354 = vpop.f32.mrb[0].mxu0
        %v2355 = vadd.f32 %v2242, %v2354
        %2356 = vmatprep.mubr.f32.mxu0 %v1069
        %2357 = vmatmul.mubr.f32.gmra.mrb[0].mxu0 %v1068
        %v2358 = vpop.f32.mrb[0].mxu0
        %v2359 = vadd.f32 %v2246, %v2358
        %v2360 = vpop.f32.mrb[0].mxu0
        %v2361 = vadd.f32 %v2248, %v2360
        %2362 = vmatprep.mubr.f32.mxu0 %v1075
        %2363 = vmatmul.mubr.f32.gmra.mrb[0].mxu0 %v1074
        %v2364 = vpop.f32.mrb[0].mxu0
        %v2365 = vadd.f32 %v2252, %v2364
        %v2366 = vpop.f32.mrb[0].mxu0
        %v2367 = vadd.f32 %v2254, %v2366
        %2368 = vmatprep.mubr.f32.mxu0 %v1081
        %2369 = vmatmul.mubr.f32.gmra.mrb[0].mxu0 %v1080
        %v2370 = vpop.f32.mrb[0].mxu0
        %v2371 = vadd.f32 %v2258, %v2370
        %v2372 = vpop.f32.mrb[0].mxu0
        %v2373 = vadd.f32 %v2260, %v2372
        %2374 = vmatprep.mubr.f32.mxu0 %v1087
        %2375 = vmatmul.mubr.f32.gmra.mrb[0].mxu0 %v1086
        %v2376 = vpop.f32.mrb[0].mxu0
        %v2377 = vadd.f32 %v2264, %v2376
        %v2378 = vpop.f32.mrb[0].mxu0
        %v2379 = vadd.f32 %v2266, %v2378
        %2380 = vmatprep.mubr.f32.mxu0 %v1093
        %2381 = vmatmul.mubr.f32.gmra.mrb[0].mxu0 %v1092
        %v2382 = vpop.f32.mrb[0].mxu0
        %v2383 = vadd.f32 %v2270, %v2382
        %v2384 = vpop.f32.mrb[0].mxu0
        %v2385 = vadd.f32 %v2272, %v2384
        %2386 = vmatprep.mubr.f32.mxu0 %v1099
        %2387 = vmatmul.mubr.f32.gmra.mrb[0].mxu0 %v1098
        %v2388 = vpop.f32.mrb[0].mxu0
        %v2389 = vadd.f32 %v2276, %v2388
        %v2390 = vpop.f32.mrb[0].mxu0
        %v2391 = vadd.f32 %v2278, %v2390
        %2392 = vmatprep.mubr.f32.mxu0 %v1105
        %2393 = vmatmul.mubr.f32.gmra.mrb[0].mxu0 %v1104
        %v2394 = vpop.f32.mrb[0].mxu0
        %v2395 = vadd.f32 %v2282, %v2394
        %v2396 = vpop.f32.mrb[0].mxu0
        %v2397 = vadd.f32 %v2284, %v2396
        %2398 = vdwg.mxu0
        %2399 = vmatprep.subr.mxu0 %v811
        %2400 = vmatpush1.msra.mxu0 %v810
        %2401 = vmatprep.subr.mxu0 %v819
        %2402 = vmatpush1.msra.mxu0 %v818
        %2403 = vmatprep.subr.mxu0 %v827
        %2404 = vmatpush1.msra.mxu0 %v826
        %2405 = vmatprep.subr.mxu0 %v835
        %2406 = vmatpush1.msra.mxu0 %v834
        %2407 = vmatprep.subr.mxu0 %v843
        %2408 = vmatpush1.msra.mxu0 %v842
        %2409 = vmatprep.subr.mxu0 %v851
        %2410 = vmatpush1.msra.mxu0 %v850
        %2411 = vmatprep.subr.mxu0 %v859
        %2412 = vmatpush1.msra.mxu0 %v858
        %2413 = vmatprep.subr.mxu0 %v867
        %2414 = vmatpush1.msra.mxu0 %v866
        %2415 = vmatprep.subr.mxu0 %v875
        %2416 = vmatpush1.msra.mxu0 %v874
        %2417 = vmatprep.subr.mxu0 %v883
        %2418 = vmatpush1.msra.mxu0 %v882
        %2419 = vmatprep.subr.mxu0 %v891
        %2420 = vmatpush1.msra.mxu0 %v890
        %2421 = vmatprep.subr.mxu0 %v899
        %2422 = vmatpush1.msra.mxu0 %v898
        %2423 = vmatprep.subr.mxu0 %v907
        %2424 = vmatpush1.msra.mxu0 %v906
        %2425 = vmatprep.subr.mxu0 %v915
        %2426 = vmatpush1.msra.mxu0 %v914
        %2427 = vmatprep.subr.mxu0 %v923
        %2428 = vmatpush1.msra.mxu0 %v922
        %2429 = vmatprep.subr.mxu0 %v931
        %2430 = vmatpush1.msra.mxu0 %v930
        %2431 = vmatprep.subr.mxu0 %v939
        %2432 = vmatpush1.msra.mxu0 %v938
        %2433 = vmatprep.subr.mxu0 %v947
        %2434 = vmatpush1.msra.mxu0 %v946
        %2435 = vmatprep.subr.mxu0 %v955
        %2436 = vmatpush1.msra.mxu0 %v954
        %2437 = vmatprep.subr.mxu0 %v963
        %2438 = vmatpush1.msra.mxu0 %v962
        %2439 = vmatprep.subr.mxu0 %v971
        %2440 = vmatpush1.msra.mxu0 %v970
        %2441 = vmatprep.subr.mxu0 %v979
        %2442 = vmatpush1.msra.mxu0 %v978
        %2443 = vmatprep.subr.mxu0 %v987
        %2444 = vmatpush1.msra.mxu0 %v986
        %2445 = vmatprep.subr.mxu0 %v995
        %2446 = vmatpush1.msra.mxu0 %v994
        %2447 = vmatprep.subr.mxu0 %v1003
        %2448 = vmatpush1.msra.mxu0 %v1002
        %2449 = vmatprep.subr.mxu0 %v1011
        %2450 = vmatpush1.msra.mxu0 %v1010
        %2451 = vmatprep.subr.mxu0 %v1019
        %2452 = vmatpush1.msra.mxu0 %v1018
        %2453 = vmatprep.subr.mxu0 %v1027
        %2454 = vmatpush1.msra.mxu0 %v1026
        %2455 = vmatprep.subr.mxu0 %v1035
        %2456 = vmatpush1.msra.mxu0 %v1034
        %2457 = vmatprep.subr.mxu0 %v1043
        %2458 = vmatpush1.msra.mxu0 %v1042
        %2459 = vmatprep.subr.mxu0 %v1051
        %2460 = vmatpush1.msra.mxu0 %v1050
        %2461 = vmatprep.subr.mxu0 %v1059
        %2462 = vmatpush1.msra.mxu0 %v1058
        %2463 = vmatprep.mubr.f32.mxu0 %v1065
        %2464 = vmatmul.mubr.f32.gmra.mrb[0].mxu0 %v1064
        %v2465 = vpop.f32.mrb[0].mxu0
        %v2466 = vadd.f32 %v2353, %v2465
        %v2467 = vpop.f32.mrb[0].mxu0
        %v2468 = vadd.f32 %v2355, %v2467
        %2469 = vmatprep.mubr.f32.mxu0 %v1071
        %2470 = vmatmul.mubr.f32.gmra.mrb[0].mxu0 %v1070
        %v2471 = vpop.f32.mrb[0].mxu0
        %v2472 = vadd.f32 %v2359, %v2471
        %v2473 = vpop.f32.mrb[0].mxu0
        %v2474 = vadd.f32 %v2361, %v2473
        %2475 = vmatprep.mubr.f32.mxu0 %v1077
        %2476 = vmatmul.mubr.f32.gmra.mrb[0].mxu0 %v1076
        %v2477 = vpop.f32.mrb[0].mxu0
        %v2478 = vadd.f32 %v2365, %v2477
        %v2479 = vpop.f32.mrb[0].mxu0
        %v2480 = vadd.f32 %v2367, %v2479
        %2481 = vmatprep.mubr.f32.mxu0 %v1083
        %2482 = vmatmul.mubr.f32.gmra.mrb[0].mxu0 %v1082
        %v2483 = vpop.f32.mrb[0].mxu0
        %v2484 = vadd.f32 %v2371, %v2483
        %v2485 = vpop.f32.mrb[0].mxu0
        %v2486 = vadd.f32 %v2373, %v2485
        %2487 = vmatprep.mubr.f32.mxu0 %v1089
        %2488 = vmatmul.mubr.f32.gmra.mrb[0].mxu0 %v1088
        %v2489 = vpop.f32.mrb[0].mxu0
        %v2490 = vadd.f32 %v2377, %v2489
        %v2491 = vpop.f32.mrb[0].mxu0
        %v2492 = vadd.f32 %v2379, %v2491
        %2493 = vmatprep.mubr.f32.mxu0 %v1095
        %2494 = vmatmul.mubr.f32.gmra.mrb[0].mxu0 %v1094
        %v2495 = vpop.f32.mrb[0].mxu0
        %v2496 = vadd.f32 %v2383, %v2495
        %v2497 = vpop.f32.mrb[0].mxu0
        %v2498 = vadd.f32 %v2385, %v2497
        %2499 = vmatprep.mubr.f32.mxu0 %v1101
        %2500 = vmatmul.mubr.f32.gmra.mrb[0].mxu0 %v1100
        %v2501 = vpop.f32.mrb[0].mxu0
        %v2502 = vadd.f32 %v2389, %v2501
        %v2503 = vpop.f32.mrb[0].mxu0
        %v2504 = vadd.f32 %v2391, %v2503
        %2505 = vmatprep.mubr.f32.mxu0 %v1107
        %2506 = vmatmul.mubr.f32.gmra.mrb[0].mxu0 %v1106
        %v2507 = vpop.f32.mrb[0].mxu0
        %v2508 = vadd.f32 %v2395, %v2507
        %v2509 = vpop.f32.mrb[0].mxu0
        %v2510 = vadd.f32 %v2397, %v2509
        %2511 = vdwg.mxu0
        %v2512 = vmul.f32 %v1449, 0.5
        %v2513 = vmul.f32 %v1451, 0.5
        %v2514 = vmul.f32 %v1788, 0.5
        %v2515 = vmul.f32 %v1790, 0.5
        %v2516 = vmul.f32 %v2127, 0.5
        %v2517 = vmul.f32 %v2129, 0.5
        %v2518 = vmul.f32 %v2466, 0.5
        %v2519 = vmul.f32 %v2468, 0.5
        %v2520 = vmul.f32 %v1455, 0.5
        %v2521 = vmul.f32 %v1457, 0.5
        %v2522 = vmul.f32 %v1794, 0.5
        %v2523 = vmul.f32 %v1796, 0.5
        %v2524 = vmul.f32 %v2133, 0.5
        %v2525 = vmul.f32 %v2135, 0.5
        %v2526 = vmul.f32 %v2472, 0.5
        %v2527 = vmul.f32 %v2474, 0.5
        %v2528 = vmul.f32 %v1461, 0.5
        %v2529 = vmul.f32 %v1463, 0.5
        %v2530 = vmul.f32 %v1800, 0.5
        %v2531 = vmul.f32 %v1802, 0.5
        %v2532 = vmul.f32 %v2139, 0.5
        %v2533 = vmul.f32 %v2141, 0.5
        %v2534 = vmul.f32 %v2478, 0.5
        %v2535 = vmul.f32 %v2480, 0.5
        %v2536 = vmul.f32 %v1467, 0.5
        %v2537 = vmul.f32 %v1469, 0.5
        %v2538 = vmul.f32 %v1806, 0.5
        %v2539 = vmul.f32 %v1808, 0.5
        %v2540 = vmul.f32 %v2145, 0.5
        %v2541 = vmul.f32 %v2147, 0.5
        %v2542 = vmul.f32 %v2484, 0.5
        %v2543 = vmul.f32 %v2486, 0.5
        %v2544 = vmul.f32 %v1473, 0.5
        %v2545 = vmul.f32 %v1475, 0.5
        %v2546 = vmul.f32 %v1812, 0.5
        %v2547 = vmul.f32 %v1814, 0.5
        %v2548 = vmul.f32 %v2151, 0.5
        %v2549 = vmul.f32 %v2153, 0.5
        %v2550 = vmul.f32 %v2490, 0.5
        %v2551 = vmul.f32 %v2492, 0.5
        %v2552 = vmul.f32 %v1479, 0.5
        %v2553 = vmul.f32 %v1481, 0.5
        %v2554 = vmul.f32 %v1818, 0.5
        %v2555 = vmul.f32 %v1820, 0.5
        %v2556 = vmul.f32 %v2157, 0.5
        %v2557 = vmul.f32 %v2159, 0.5
        %v2558 = vmul.f32 %v2496, 0.5
        %v2559 = vmul.f32 %v2498, 0.5
        %v2560 = vmul.f32 %v1485, 0.5
        %v2561 = vmul.f32 %v1487, 0.5
        %v2562 = vmul.f32 %v1824, 0.5
        %v2563 = vmul.f32 %v1826, 0.5
        %v2564 = vmul.f32 %v2163, 0.5
        %v2565 = vmul.f32 %v2165, 0.5
        %v2566 = vmul.f32 %v2502, 0.5
        %v2567 = vmul.f32 %v2504, 0.5
        %v2568 = vmul.f32 %v1491, 0.5
        %v2569 = vmul.f32 %v1493, 0.5
        %v2570 = vmul.f32 %v1830, 0.5
        %v2571 = vmul.f32 %v1832, 0.5
        %v2572 = vmul.f32 %v2169, 0.5
        %v2573 = vmul.f32 %v2171, 0.5
        %v2574 = vmul.f32 %v2508, 0.5
        %v2575 = vmul.f32 %v2510, 0.5
        %v2576 = vmul.f32 %v1449, 0.70710677
        %v2577 = vmul.f32 %v1451, 0.70710677
        %v2578 = vmul.f32 %v1788, 0.70710677
        %v2579 = vmul.f32 %v1790, 0.70710677
        %v2580 = vmul.f32 %v2127, 0.70710677
        %v2581 = vmul.f32 %v2129, 0.70710677
        %v2582 = vmul.f32 %v2466, 0.70710677
        %v2583 = vmul.f32 %v2468, 0.70710677
        %v2584 = vmul.f32 %v1455, 0.70710677
        %v2585 = vmul.f32 %v1457, 0.70710677
        %v2586 = vmul.f32 %v1794, 0.70710677
        %v2587 = vmul.f32 %v1796, 0.70710677
        %v2588 = vmul.f32 %v2133, 0.70710677
        %v2589 = vmul.f32 %v2135, 0.70710677
        %v2590 = vmul.f32 %v2472, 0.70710677
        %v2591 = vmul.f32 %v2474, 0.70710677
        %v2592 = vmul.f32 %v1461, 0.70710677
        %v2593 = vmul.f32 %v1463, 0.70710677
        %v2594 = vmul.f32 %v1800, 0.70710677
        %v2595 = vmul.f32 %v1802, 0.70710677
        %v2596 = vmul.f32 %v2139, 0.70710677
        %v2597 = vmul.f32 %v2141, 0.70710677
        %v2598 = vmul.f32 %v2478, 0.70710677
        %v2599 = vmul.f32 %v2480, 0.70710677
        %v2600 = vmul.f32 %v1467, 0.70710677
        %v2601 = vmul.f32 %v1469, 0.70710677
        %v2602 = vmul.f32 %v1806, 0.70710677
        %v2603 = vmul.f32 %v1808, 0.70710677
        %v2604 = vmul.f32 %v2145, 0.70710677
        %v2605 = vmul.f32 %v2147, 0.70710677
        %v2606 = vmul.f32 %v2484, 0.70710677
        %v2607 = vmul.f32 %v2486, 0.70710677
        %v2608 = vmul.f32 %v1473, 0.70710677
        %v2609 = vmul.f32 %v1475, 0.70710677
        %v2610 = vmul.f32 %v1812, 0.70710677
        %v2611 = vmul.f32 %v1814, 0.70710677
        %v2612 = vmul.f32 %v2151, 0.70710677
        %v2613 = vmul.f32 %v2153, 0.70710677
        %v2614 = vmul.f32 %v2490, 0.70710677
        %v2615 = vmul.f32 %v2492, 0.70710677
        %v2616 = vmul.f32 %v1479, 0.70710677
        %v2617 = vmul.f32 %v1481, 0.70710677
        %v2618 = vmul.f32 %v1818, 0.70710677
        %v2619 = vmul.f32 %v1820, 0.70710677
        %v2620 = vmul.f32 %v2157, 0.70710677
        %v2621 = vmul.f32 %v2159, 0.70710677
        %v2622 = vmul.f32 %v2496, 0.70710677
        %v2623 = vmul.f32 %v2498, 0.70710677
        %v2624 = vmul.f32 %v1485, 0.70710677
        %v2625 = vmul.f32 %v1487, 0.70710677
        %v2626 = vmul.f32 %v1824, 0.70710677
        %v2627 = vmul.f32 %v1826, 0.70710677
        %v2628 = vmul.f32 %v2163, 0.70710677
        %v2629 = vmul.f32 %v2165, 0.70710677
        %v2630 = vmul.f32 %v2502, 0.70710677
        %v2631 = vmul.f32 %v2504, 0.70710677
        %v2632 = vmul.f32 %v1491, 0.70710677
        %v2633 = vmul.f32 %v1493, 0.70710677
        %v2634 = vmul.f32 %v1830, 0.70710677
        %v2635 = vmul.f32 %v1832, 0.70710677
        %v2636 = vmul.f32 %v2169, 0.70710677
        %v2637 = vmul.f32 %v2171, 0.70710677
        %v2638 = vmul.f32 %v2508, 0.70710677
        %v2639 = vmul.f32 %v2510, 0.70710677
        %v2640 = vmax.f32 %v2576, -4.0
        %v2641 = vmax.f32 %v2577, -4.0
        %v2642 = vmax.f32 %v2578, -4.0
        %v2643 = vmax.f32 %v2579, -4.0
        %v2644 = vmax.f32 %v2580, -4.0
        %v2645 = vmax.f32 %v2581, -4.0
        %v2646 = vmax.f32 %v2582, -4.0
        %v2647 = vmax.f32 %v2583, -4.0
        %v2648 = vmax.f32 %v2584, -4.0
        %v2649 = vmax.f32 %v2585, -4.0
        %v2650 = vmax.f32 %v2586, -4.0
        %v2651 = vmax.f32 %v2587, -4.0
        %v2652 = vmax.f32 %v2588, -4.0
        %v2653 = vmax.f32 %v2589, -4.0
        %v2654 = vmax.f32 %v2590, -4.0
        %v2655 = vmax.f32 %v2591, -4.0
        %v2656 = vmax.f32 %v2592, -4.0
        %v2657 = vmax.f32 %v2593, -4.0
        %v2658 = vmax.f32 %v2594, -4.0
        %v2659 = vmax.f32 %v2595, -4.0
        %v2660 = vmax.f32 %v2596, -4.0
        %v2661 = vmax.f32 %v2597, -4.0
        %v2662 = vmax.f32 %v2598, -4.0
        %v2663 = vmax.f32 %v2599, -4.0
        %v2664 = vmax.f32 %v2600, -4.0
        %v2665 = vmax.f32 %v2601, -4.0
        %v2666 = vmax.f32 %v2602, -4.0
        %v2667 = vmax.f32 %v2603, -4.0
        %v2668 = vmax.f32 %v2604, -4.0
        %v2669 = vmax.f32 %v2605, -4.0
        %v2670 = vmax.f32 %v2606, -4.0
        %v2671 = vmax.f32 %v2607, -4.0
        %v2672 = vmax.f32 %v2608, -4.0
        %v2673 = vmax.f32 %v2609, -4.0
        %v2674 = vmax.f32 %v2610, -4.0
        %v2675 = vmax.f32 %v2611, -4.0
        %v2676 = vmax.f32 %v2612, -4.0
        %v2677 = vmax.f32 %v2613, -4.0
        %v2678 = vmax.f32 %v2614, -4.0
        %v2679 = vmax.f32 %v2615, -4.0
        %v2680 = vmax.f32 %v2616, -4.0
        %v2681 = vmax.f32 %v2617, -4.0
        %v2682 = vmax.f32 %v2618, -4.0
        %v2683 = vmax.f32 %v2619, -4.0
        %v2684 = vmax.f32 %v2620, -4.0
        %v2685 = vmax.f32 %v2621, -4.0
        %v2686 = vmax.f32 %v2622, -4.0
        %v2687 = vmax.f32 %v2623, -4.0
        %v2688 = vmax.f32 %v2624, -4.0
        %v2689 = vmax.f32 %v2625, -4.0
        %v2690 = vmax.f32 %v2626, -4.0
        %v2691 = vmax.f32 %v2627, -4.0
        %v2692 = vmax.f32 %v2628, -4.0
        %v2693 = vmax.f32 %v2629, -4.0
        %v2694 = vmax.f32 %v2630, -4.0
        %v2695 = vmax.f32 %v2631, -4.0
        %v2696 = vmax.f32 %v2632, -4.0
        %v2697 = vmax.f32 %v2633, -4.0
        %v2698 = vmax.f32 %v2634, -4.0
        %v2699 = vmax.f32 %v2635, -4.0
        %v2700 = vmax.f32 %v2636, -4.0
        %v2701 = vmax.f32 %v2637, -4.0
        %v2702 = vmax.f32 %v2638, -4.0
        %v2703 = vmax.f32 %v2639, -4.0
        %v2704 = vmin.f32 %v2640, 4.0
        %v2705 = vmin.f32 %v2641, 4.0
        %v2706 = vmin.f32 %v2642, 4.0
        %v2707 = vmin.f32 %v2643, 4.0
        %v2708 = vmin.f32 %v2644, 4.0
        %v2709 = vmin.f32 %v2645, 4.0
        %v2710 = vmin.f32 %v2646, 4.0
        %v2711 = vmin.f32 %v2647, 4.0
        %v2712 = vmin.f32 %v2648, 4.0
        %v2713 = vmin.f32 %v2649, 4.0
        %v2714 = vmin.f32 %v2650, 4.0
        %v2715 = vmin.f32 %v2651, 4.0
        %v2716 = vmin.f32 %v2652, 4.0
        %v2717 = vmin.f32 %v2653, 4.0
        %v2718 = vmin.f32 %v2654, 4.0
        %v2719 = vmin.f32 %v2655, 4.0
        %v2720 = vmin.f32 %v2656, 4.0
        %v2721 = vmin.f32 %v2657, 4.0
        %v2722 = vmin.f32 %v2658, 4.0
        %v2723 = vmin.f32 %v2659, 4.0
        %v2724 = vmin.f32 %v2660, 4.0
        %v2725 = vmin.f32 %v2661, 4.0
        %v2726 = vmin.f32 %v2662, 4.0
        %v2727 = vmin.f32 %v2663, 4.0
        %v2728 = vmin.f32 %v2664, 4.0
        %v2729 = vmin.f32 %v2665, 4.0
        %v2730 = vmin.f32 %v2666, 4.0
        %v2731 = vmin.f32 %v2667, 4.0
        %v2732 = vmin.f32 %v2668, 4.0
        %v2733 = vmin.f32 %v2669, 4.0
        %v2734 = vmin.f32 %v2670, 4.0
        %v2735 = vmin.f32 %v2671, 4.0
        %v2736 = vmin.f32 %v2672, 4.0
        %v2737 = vmin.f32 %v2673, 4.0
        %v2738 = vmin.f32 %v2674, 4.0
        %v2739 = vmin.f32 %v2675, 4.0
        %v2740 = vmin.f32 %v2676, 4.0
        %v2741 = vmin.f32 %v2677, 4.0
        %v2742 = vmin.f32 %v2678, 4.0
        %v2743 = vmin.f32 %v2679, 4.0
        %v2744 = vmin.f32 %v2680, 4.0
        %v2745 = vmin.f32 %v2681, 4.0
        %v2746 = vmin.f32 %v2682, 4.0
        %v2747 = vmin.f32 %v2683, 4.0
        %v2748 = vmin.f32 %v2684, 4.0
        %v2749 = vmin.f32 %v2685, 4.0
        %v2750 = vmin.f32 %v2686, 4.0
        %v2751 = vmin.f32 %v2687, 4.0
        %v2752 = vmin.f32 %v2688, 4.0
        %v2753 = vmin.f32 %v2689, 4.0
        %v2754 = vmin.f32 %v2690, 4.0
        %v2755 = vmin.f32 %v2691, 4.0
        %v2756 = vmin.f32 %v2692, 4.0
        %v2757 = vmin.f32 %v2693, 4.0
        %v2758 = vmin.f32 %v2694, 4.0
        %v2759 = vmin.f32 %v2695, 4.0
        %v2760 = vmin.f32 %v2696, 4.0
        %v2761 = vmin.f32 %v2697, 4.0
        %v2762 = vmin.f32 %v2698, 4.0
        %v2763 = vmin.f32 %v2699, 4.0
        %v2764 = vmin.f32 %v2700, 4.0
        %v2765 = vmin.f32 %v2701, 4.0
        %v2766 = vmin.f32 %v2702, 4.0
        %v2767 = vmin.f32 %v2703, 4.0
        %v2768 = vmul.f32 %v2704, %v2704
        %v2769 = vmul.f32 %v2705, %v2705
        %v2770 = vmul.f32 %v2706, %v2706
        %v2771 = vmul.f32 %v2707, %v2707
        %v2772 = vmul.f32 %v2708, %v2708
        %v2773 = vmul.f32 %v2709, %v2709
        %v2774 = vmul.f32 %v2710, %v2710
        %v2775 = vmul.f32 %v2711, %v2711
        %v2776 = vmul.f32 %v2712, %v2712
        %v2777 = vmul.f32 %v2713, %v2713
        %v2778 = vmul.f32 %v2714, %v2714
        %v2779 = vmul.f32 %v2715, %v2715
        %v2780 = vmul.f32 %v2716, %v2716
        %v2781 = vmul.f32 %v2717, %v2717
        %v2782 = vmul.f32 %v2718, %v2718
        %v2783 = vmul.f32 %v2719, %v2719
        %v2784 = vmul.f32 %v2720, %v2720
        %v2785 = vmul.f32 %v2721, %v2721
        %v2786 = vmul.f32 %v2722, %v2722
        %v2787 = vmul.f32 %v2723, %v2723
        %v2788 = vmul.f32 %v2724, %v2724
        %v2789 = vmul.f32 %v2725, %v2725
        %v2790 = vmul.f32 %v2726, %v2726
        %v2791 = vmul.f32 %v2727, %v2727
        %v2792 = vmul.f32 %v2728, %v2728
        %v2793 = vmul.f32 %v2729, %v2729
        %v2794 = vmul.f32 %v2730, %v2730
        %v2795 = vmul.f32 %v2731, %v2731
        %v2796 = vmul.f32 %v2732, %v2732
        %v2797 = vmul.f32 %v2733, %v2733
        %v2798 = vmul.f32 %v2734, %v2734
        %v2799 = vmul.f32 %v2735, %v2735
        %v2800 = vmul.f32 %v2736, %v2736
        %v2801 = vmul.f32 %v2737, %v2737
        %v2802 = vmul.f32 %v2738, %v2738
        %v2803 = vmul.f32 %v2739, %v2739
        %v2804 = vmul.f32 %v2740, %v2740
        %v2805 = vmul.f32 %v2741, %v2741
        %v2806 = vmul.f32 %v2742, %v2742
        %v2807 = vmul.f32 %v2743, %v2743
        %v2808 = vmul.f32 %v2744, %v2744
        %v2809 = vmul.f32 %v2745, %v2745
        %v2810 = vmul.f32 %v2746, %v2746
        %v2811 = vmul.f32 %v2747, %v2747
        %v2812 = vmul.f32 %v2748, %v2748
        %v2813 = vmul.f32 %v2749, %v2749
        %v2814 = vmul.f32 %v2750, %v2750
        %v2815 = vmul.f32 %v2751, %v2751
        %v2816 = vmul.f32 %v2752, %v2752
        %v2817 = vmul.f32 %v2753, %v2753
        %v2818 = vmul.f32 %v2754, %v2754
        %v2819 = vmul.f32 %v2755, %v2755
        %v2820 = vmul.f32 %v2756, %v2756
        %v2821 = vmul.f32 %v2757, %v2757
        %v2822 = vmul.f32 %v2758, %v2758
        %v2823 = vmul.f32 %v2759, %v2759
        %v2824 = vmul.f32 %v2760, %v2760
        %v2825 = vmul.f32 %v2761, %v2761
        %v2826 = vmul.f32 %v2762, %v2762
        %v2827 = vmul.f32 %v2763, %v2763
        %v2828 = vmul.f32 %v2764, %v2764
        %v2829 = vmul.f32 %v2765, %v2765
        %v2830 = vmul.f32 %v2766, %v2766
        %v2831 = vmul.f32 %v2767, %v2767
        %v2832 = vmul.f32 %v2768, -2.7261424e-10
        %v2833 = vmul.f32 %v2769, -2.7261424e-10
        %v2834 = vmul.f32 %v2770, -2.7261424e-10
        %v2835 = vmul.f32 %v2771, -2.7261424e-10
        %v2836 = vmul.f32 %v2772, -2.7261424e-10
        %v2837 = vmul.f32 %v2773, -2.7261424e-10
        %v2838 = vmul.f32 %v2774, -2.7261424e-10
        %v2839 = vmul.f32 %v2775, -2.7261424e-10
        %v2840 = vmul.f32 %v2776, -2.7261424e-10
        %v2841 = vmul.f32 %v2777, -2.7261424e-10
        %v2842 = vmul.f32 %v2778, -2.7261424e-10
        %v2843 = vmul.f32 %v2779, -2.7261424e-10
        %v2844 = vmul.f32 %v2780, -2.7261424e-10
        %v2845 = vmul.f32 %v2781, -2.7261424e-10
        %v2846 = vmul.f32 %v2782, -2.7261424e-10
        %v2847 = vmul.f32 %v2783, -2.7261424e-10
        %v2848 = vmul.f32 %v2784, -2.7261424e-10
        %v2849 = vmul.f32 %v2785, -2.7261424e-10
        %v2850 = vmul.f32 %v2786, -2.7261424e-10
        %v2851 = vmul.f32 %v2787, -2.7261424e-10
        %v2852 = vmul.f32 %v2788, -2.7261424e-10
        %v2853 = vmul.f32 %v2789, -2.7261424e-10
        %v2854 = vmul.f32 %v2790, -2.7261424e-10
        %v2855 = vmul.f32 %v2791, -2.7261424e-10
        %v2856 = vmul.f32 %v2792, -2.7261424e-10
        %v2857 = vmul.f32 %v2793, -2.7261424e-10
        %v2858 = vmul.f32 %v2794, -2.7261424e-10
        %v2859 = vmul.f32 %v2795, -2.7261424e-10
        %v2860 = vmul.f32 %v2796, -2.7261424e-10
        %v2861 = vmul.f32 %v2797, -2.7261424e-10
        %v2862 = vmul.f32 %v2798, -2.7261424e-10
        %v2863 = vmul.f32 %v2799, -2.7261424e-10
        %v2864 = vmul.f32 %v2800, -2.7261424e-10
        %v2865 = vmul.f32 %v2801, -2.7261424e-10
        %v2866 = vmul.f32 %v2802, -2.7261424e-10
        %v2867 = vmul.f32 %v2803, -2.7261424e-10
        %v2868 = vmul.f32 %v2804, -2.7261424e-10
        %v2869 = vmul.f32 %v2805, -2.7261424e-10
        %v2870 = vmul.f32 %v2806, -2.7261424e-10
        %v2871 = vmul.f32 %v2807, -2.7261424e-10
        %v2872 = vmul.f32 %v2808, -2.7261424e-10
        %v2873 = vmul.f32 %v2809, -2.7261424e-10
        %v2874 = vmul.f32 %v2810, -2.7261424e-10
        %v2875 = vmul.f32 %v2811, -2.7261424e-10
        %v2876 = vmul.f32 %v2812, -2.7261424e-10
        %v2877 = vmul.f32 %v2813, -2.7261424e-10
        %v2878 = vmul.f32 %v2814, -2.7261424e-10
        %v2879 = vmul.f32 %v2815, -2.7261424e-10
        %v2880 = vmul.f32 %v2816, -2.7261424e-10
        %v2881 = vmul.f32 %v2817, -2.7261424e-10
        %v2882 = vmul.f32 %v2818, -2.7261424e-10
        %v2883 = vmul.f32 %v2819, -2.7261424e-10
        %v2884 = vmul.f32 %v2820, -2.7261424e-10
        %v2885 = vmul.f32 %v2821, -2.7261424e-10
        %v2886 = vmul.f32 %v2822, -2.7261424e-10
        %v2887 = vmul.f32 %v2823, -2.7261424e-10
        %v2888 = vmul.f32 %v2824, -2.7261424e-10
        %v2889 = vmul.f32 %v2825, -2.7261424e-10
        %v2890 = vmul.f32 %v2826, -2.7261424e-10
        %v2891 = vmul.f32 %v2827, -2.7261424e-10
        %v2892 = vmul.f32 %v2828, -2.7261424e-10
        %v2893 = vmul.f32 %v2829, -2.7261424e-10
        %v2894 = vmul.f32 %v2830, -2.7261424e-10
        %v2895 = vmul.f32 %v2831, -2.7261424e-10
        %v2896 = vadd.f32 %v2832, 2.7706815e-08
        %v2897 = vadd.f32 %v2833, 2.7706815e-08
        %v2898 = vadd.f32 %v2834, 2.7706815e-08
        %v2899 = vadd.f32 %v2835, 2.7706815e-08
        %v2900 = vadd.f32 %v2836, 2.7706815e-08
        %v2901 = vadd.f32 %v2837, 2.7706815e-08
        %v2902 = vadd.f32 %v2838, 2.7706815e-08
        %v2903 = vadd.f32 %v2839, 2.7706815e-08
        %v2904 = vadd.f32 %v2840, 2.7706815e-08
        %v2905 = vadd.f32 %v2841, 2.7706815e-08
        %v2906 = vadd.f32 %v2842, 2.7706815e-08
        %v2907 = vadd.f32 %v2843, 2.7706815e-08
        %v2908 = vadd.f32 %v2844, 2.7706815e-08
        %v2909 = vadd.f32 %v2845, 2.7706815e-08
        %v2910 = vadd.f32 %v2846, 2.7706815e-08
        %v2911 = vadd.f32 %v2847, 2.7706815e-08
        %v2912 = vadd.f32 %v2848, 2.7706815e-08
        %v2913 = vadd.f32 %v2849, 2.7706815e-08
        %v2914 = vadd.f32 %v2850, 2.7706815e-08
        %v2915 = vadd.f32 %v2851, 2.7706815e-08
        %v2916 = vadd.f32 %v2852, 2.7706815e-08
        %v2917 = vadd.f32 %v2853, 2.7706815e-08
        %v2918 = vadd.f32 %v2854, 2.7706815e-08
        %v2919 = vadd.f32 %v2855, 2.7706815e-08
        %v2920 = vadd.f32 %v2856, 2.7706815e-08
        %v2921 = vadd.f32 %v2857, 2.7706815e-08
        %v2922 = vadd.f32 %v2858, 2.7706815e-08
        %v2923 = vadd.f32 %v2859, 2.7706815e-08
        %v2924 = vadd.f32 %v2860, 2.7706815e-08
        %v2925 = vadd.f32 %v2861, 2.7706815e-08
        %v2926 = vadd.f32 %v2862, 2.7706815e-08
        %v2927 = vadd.f32 %v2863, 2.7706815e-08
        %v2928 = vadd.f32 %v2864, 2.7706815e-08
        %v2929 = vadd.f32 %v2865, 2.7706815e-08
        %v2930 = vadd.f32 %v2866, 2.7706815e-08
        %v2931 = vadd.f32 %v2867, 2.7706815e-08
        %v2932 = vadd.f32 %v2868, 2.7706815e-08
        %v2933 = vadd.f32 %v2869, 2.7706815e-08
        %v2934 = vadd.f32 %v2870, 2.7706815e-08
        %v2935 = vadd.f32 %v2871, 2.7706815e-08
        %v2936 = vadd.f32 %v2872, 2.7706815e-08
        %v2937 = vadd.f32 %v2873, 2.7706815e-08
        %v2938 = vadd.f32 %v2874, 2.7706815e-08
        %v2939 = vadd.f32 %v2875, 2.7706815e-08
        %v2940 = vadd.f32 %v2876, 2.7706815e-08
        %v2941 = vadd.f32 %v2877, 2.7706815e-08
        %v2942 = vadd.f32 %v2878, 2.7706815e-08
        %v2943 = vadd.f32 %v2879, 2.7706815e-08
        %v2944 = vadd.f32 %v2880, 2.7706815e-08
        %v2945 = vadd.f32 %v2881, 2.7706815e-08
        %v2946 = vadd.f32 %v2882, 2.7706815e-08
        %v2947 = vadd.f32 %v2883, 2.7706815e-08
        %v2948 = vadd.f32 %v2884, 2.7706815e-08
        %v2949 = vadd.f32 %v2885, 2.7706815e-08
        %v2950 = vadd.f32 %v2886, 2.7706815e-08
        %v2951 = vadd.f32 %v2887, 2.7706815e-08
        %v2952 = vadd.f32 %v2888, 2.7706815e-08
        %v2953 = vadd.f32 %v2889, 2.7706815e-08
        %v2954 = vadd.f32 %v2890, 2.7706815e-08
        %v2955 = vadd.f32 %v2891, 2.7706815e-08
        %v2956 = vadd.f32 %v2892, 2.7706815e-08
        %v2957 = vadd.f32 %v2893, 2.7706815e-08
        %v2958 = vadd.f32 %v2894, 2.7706815e-08
        %v2959 = vadd.f32 %v2895, 2.7706815e-08
        %v2960 = vmul.f32 %v2896, %v2768
        %v2961 = vmul.f32 %v2897, %v2769
        %v2962 = vmul.f32 %v2898, %v2770
        %v2963 = vmul.f32 %v2899, %v2771
        %v2964 = vmul.f32 %v2900, %v2772
        %v2965 = vmul.f32 %v2901, %v2773
        %v2966 = vmul.f32 %v2902, %v2774
        %v2967 = vmul.f32 %v2903, %v2775
        %v2968 = vmul.f32 %v2904, %v2776
        %v2969 = vmul.f32 %v2905, %v2777
        %v2970 = vmul.f32 %v2906, %v2778
        %v2971 = vmul.f32 %v2907, %v2779
        %v2972 = vmul.f32 %v2908, %v2780
        %v2973 = vmul.f32 %v2909, %v2781
        %v2974 = vmul.f32 %v2910, %v2782
        %v2975 = vmul.f32 %v2911, %v2783
        %v2976 = vmul.f32 %v2912, %v2784
        %v2977 = vmul.f32 %v2913, %v2785
        %v2978 = vmul.f32 %v2914, %v2786
        %v2979 = vmul.f32 %v2915, %v2787
        %v2980 = vmul.f32 %v2916, %v2788
        %v2981 = vmul.f32 %v2917, %v2789
        %v2982 = vmul.f32 %v2918, %v2790
        %v2983 = vmul.f32 %v2919, %v2791
        %v2984 = vmul.f32 %v2920, %v2792
        %v2985 = vmul.f32 %v2921, %v2793
        %v2986 = vmul.f32 %v2922, %v2794
        %v2987 = vmul.f32 %v2923, %v2795
        %v2988 = vmul.f32 %v2924, %v2796
        %v2989 = vmul.f32 %v2925, %v2797
        %v2990 = vmul.f32 %v2926, %v2798
        %v2991 = vmul.f32 %v2927, %v2799
        %v2992 = vmul.f32 %v2928, %v2800
        %v2993 = vmul.f32 %v2929, %v2801
        %v2994 = vmul.f32 %v2930, %v2802
        %v2995 = vmul.f32 %v2931, %v2803
        %v2996 = vmul.f32 %v2932, %v2804
        %v2997 = vmul.f32 %v2933, %v2805
        %v2998 = vmul.f32 %v2934, %v2806
        %v2999 = vmul.f32 %v2935, %v2807
        %v3000 = vmul.f32 %v2936, %v2808
        %v3001 = vmul.f32 %v2937, %v2809
        %v3002 = vmul.f32 %v2938, %v2810
        %v3003 = vmul.f32 %v2939, %v2811
        %v3004 = vmul.f32 %v2940, %v2812
        %v3005 = vmul.f32 %v2941, %v2813
        %v3006 = vmul.f32 %v2942, %v2814
        %v3007 = vmul.f32 %v2943, %v2815
        %v3008 = vmul.f32 %v2944, %v2816
        %v3009 = vmul.f32 %v2945, %v2817
        %v3010 = vmul.f32 %v2946, %v2818
        %v3011 = vmul.f32 %v2947, %v2819
        %v3012 = vmul.f32 %v2948, %v2820
        %v3013 = vmul.f32 %v2949, %v2821
        %v3014 = vmul.f32 %v2950, %v2822
        %v3015 = vmul.f32 %v2951, %v2823
        %v3016 = vmul.f32 %v2952, %v2824
        %v3017 = vmul.f32 %v2953, %v2825
        %v3018 = vmul.f32 %v2954, %v2826
        %v3019 = vmul.f32 %v2955, %v2827
        %v3020 = vmul.f32 %v2956, %v2828
        %v3021 = vmul.f32 %v2957, %v2829
        %v3022 = vmul.f32 %v2958, %v2830
        %v3023 = vmul.f32 %v2959, %v2831
        %v3024 = vadd.f32 %v2960, -2.101024e-06
        %v3025 = vadd.f32 %v2961, -2.101024e-06
        %v3026 = vadd.f32 %v2962, -2.101024e-06
        %v3027 = vadd.f32 %v2963, -2.101024e-06
        %v3028 = vadd.f32 %v2964, -2.101024e-06
        %v3029 = vadd.f32 %v2965, -2.101024e-06
        %v3030 = vadd.f32 %v2966, -2.101024e-06
        %v3031 = vadd.f32 %v2967, -2.101024e-06
        %v3032 = vadd.f32 %v2968, -2.101024e-06
        %v3033 = vadd.f32 %v2969, -2.101024e-06
        %v3034 = vadd.f32 %v2970, -2.101024e-06
        %v3035 = vadd.f32 %v2971, -2.101024e-06
        %v3036 = vadd.f32 %v2972, -2.101024e-06
        %v3037 = vadd.f32 %v2973, -2.101024e-06
        %v3038 = vadd.f32 %v2974, -2.101024e-06
        %v3039 = vadd.f32 %v2975, -2.101024e-06
        %v3040 = vadd.f32 %v2976, -2.101024e-06
        %v3041 = vadd.f32 %v2977, -2.101024e-06
        %v3042 = vadd.f32 %v2978, -2.101024e-06
        %v3043 = vadd.f32 %v2979, -2.101024e-06
        %v3044 = vadd.f32 %v2980, -2.101024e-06
        %v3045 = vadd.f32 %v2981, -2.101024e-06
        %v3046 = vadd.f32 %v2982, -2.101024e-06
        %v3047 = vadd.f32 %v2983, -2.101024e-06
        %v3048 = vadd.f32 %v2984, -2.101024e-06
        %v3049 = vadd.f32 %v2985, -2.101024e-06
        %v3050 = vadd.f32 %v2986, -2.101024e-06
        %v3051 = vadd.f32 %v2987, -2.101024e-06
        %v3052 = vadd.f32 %v2988, -2.101024e-06
        %v3053 = vadd.f32 %v2989, -2.101024e-06
        %v3054 = vadd.f32 %v2990, -2.101024e-06
        %v3055 = vadd.f32 %v2991, -2.101024e-06
        %v3056 = vadd.f32 %v2992, -2.101024e-06
        %v3057 = vadd.f32 %v2993, -2.101024e-06
        %v3058 = vadd.f32 %v2994, -2.101024e-06
        %v3059 = vadd.f32 %v2995, -2.101024e-06
        %v3060 = vadd.f32 %v2996, -2.101024e-06
        %v3061 = vadd.f32 %v2997, -2.101024e-06
        %v3062 = vadd.f32 %v2998, -2.101024e-06
        %v3063 = vadd.f32 %v2999, -2.101024e-06
        %v3064 = vadd.f32 %v3000, -2.101024e-06
        %v3065 = vadd.f32 %v3001, -2.101024e-06
        %v3066 = vadd.f32 %v3002, -2.101024e-06
        %v3067 = vadd.f32 %v3003, -2.101024e-06
        %v3068 = vadd.f32 %v3004, -2.101024e-06
        %v3069 = vadd.f32 %v3005, -2.101024e-06
        %v3070 = vadd.f32 %v3006, -2.101024e-06
        %v3071 = vadd.f32 %v3007, -2.101024e-06
        %v3072 = vadd.f32 %v3008, -2.101024e-06
        %v3073 = vadd.f32 %v3009, -2.101024e-06
        %v3074 = vadd.f32 %v3010, -2.101024e-06
        %v3075 = vadd.f32 %v3011, -2.101024e-06
        %v3076 = vadd.f32 %v3012, -2.101024e-06
        %v3077 = vadd.f32 %v3013, -2.101024e-06
        %v3078 = vadd.f32 %v3014, -2.101024e-06
        %v3079 = vadd.f32 %v3015, -2.101024e-06
        %v3080 = vadd.f32 %v3016, -2.101024e-06
        %v3081 = vadd.f32 %v3017, -2.101024e-06
        %v3082 = vadd.f32 %v3018, -2.101024e-06
        %v3083 = vadd.f32 %v3019, -2.101024e-06
        %v3084 = vadd.f32 %v3020, -2.101024e-06
        %v3085 = vadd.f32 %v3021, -2.101024e-06
        %v3086 = vadd.f32 %v3022, -2.101024e-06
        %v3087 = vadd.f32 %v3023, -2.101024e-06
        %v3088 = vmul.f32 %v3024, %v2768
        %v3089 = vmul.f32 %v3025, %v2769
        %v3090 = vmul.f32 %v3026, %v2770
        %v3091 = vmul.f32 %v3027, %v2771
        %v3092 = vmul.f32 %v3028, %v2772
        %v3093 = vmul.f32 %v3029, %v2773
        %v3094 = vmul.f32 %v3030, %v2774
        %v3095 = vmul.f32 %v3031, %v2775
        %v3096 = vmul.f32 %v3032, %v2776
        %v3097 = vmul.f32 %v3033, %v2777
        %v3098 = vmul.f32 %v3034, %v2778
        %v3099 = vmul.f32 %v3035, %v2779
        %v3100 = vmul.f32 %v3036, %v2780
        %v3101 = vmul.f32 %v3037, %v2781
        %v3102 = vmul.f32 %v3038, %v2782
        %v3103 = vmul.f32 %v3039, %v2783
        %v3104 = vmul.f32 %v3040, %v2784
        %v3105 = vmul.f32 %v3041, %v2785
        %v3106 = vmul.f32 %v3042, %v2786
        %v3107 = vmul.f32 %v3043, %v2787
        %v3108 = vmul.f32 %v3044, %v2788
        %v3109 = vmul.f32 %v3045, %v2789
        %v3110 = vmul.f32 %v3046, %v2790
        %v3111 = vmul.f32 %v3047, %v2791
        %v3112 = vmul.f32 %v3048, %v2792
        %v3113 = vmul.f32 %v3049, %v2793
        %v3114 = vmul.f32 %v3050, %v2794
        %v3115 = vmul.f32 %v3051, %v2795
        %v3116 = vmul.f32 %v3052, %v2796
        %v3117 = vmul.f32 %v3053, %v2797
        %v3118 = vmul.f32 %v3054, %v2798
        %v3119 = vmul.f32 %v3055, %v2799
        %v3120 = vmul.f32 %v3056, %v2800
        %v3121 = vmul.f32 %v3057, %v2801
        %v3122 = vmul.f32 %v3058, %v2802
        %v3123 = vmul.f32 %v3059, %v2803
        %v3124 = vmul.f32 %v3060, %v2804
        %v3125 = vmul.f32 %v3061, %v2805
        %v3126 = vmul.f32 %v3062, %v2806
        %v3127 = vmul.f32 %v3063, %v2807
        %v3128 = vmul.f32 %v3064, %v2808
        %v3129 = vmul.f32 %v3065, %v2809
        %v3130 = vmul.f32 %v3066, %v2810
        %v3131 = vmul.f32 %v3067, %v2811
        %v3132 = vmul.f32 %v3068, %v2812
        %v3133 = vmul.f32 %v3069, %v2813
        %v3134 = vmul.f32 %v3070, %v2814
        %v3135 = vmul.f32 %v3071, %v2815
        %v3136 = vmul.f32 %v3072, %v2816
        %v3137 = vmul.f32 %v3073, %v2817
        %v3138 = vmul.f32 %v3074, %v2818
        %v3139 = vmul.f32 %v3075, %v2819
        %v3140 = vmul.f32 %v3076, %v2820
        %v3141 = vmul.f32 %v3077, %v2821
        %v3142 = vmul.f32 %v3078, %v2822
        %v3143 = vmul.f32 %v3079, %v2823
        %v3144 = vmul.f32 %v3080, %v2824
        %v3145 = vmul.f32 %v3081, %v2825
        %v3146 = vmul.f32 %v3082, %v2826
        %v3147 = vmul.f32 %v3083, %v2827
        %v3148 = vmul.f32 %v3084, %v2828
        %v3149 = vmul.f32 %v3085, %v2829
        %v3150 = vmul.f32 %v3086, %v2830
        %v3151 = vmul.f32 %v3087, %v2831
        %v3152 = vadd.f32 %v3088, -5.6925062e-05
        %v3153 = vadd.f32 %v3089, -5.6925062e-05
        %v3154 = vadd.f32 %v3090, -5.6925062e-05
        %v3155 = vadd.f32 %v3091, -5.6925062e-05
        %v3156 = vadd.f32 %v3092, -5.6925062e-05
        %v3157 = vadd.f32 %v3093, -5.6925062e-05
        %v3158 = vadd.f32 %v3094, -5.6925062e-05
        %v3159 = vadd.f32 %v3095, -5.6925062e-05
        %v3160 = vadd.f32 %v3096, -5.6925062e-05
        %v3161 = vadd.f32 %v3097, -5.6925062e-05
        %v3162 = vadd.f32 %v3098, -5.6925062e-05
        %v3163 = vadd.f32 %v3099, -5.6925062e-05
        %v3164 = vadd.f32 %v3100, -5.6925062e-05
        %v3165 = vadd.f32 %v3101, -5.6925062e-05
        %v3166 = vadd.f32 %v3102, -5.6925062e-05
        %v3167 = vadd.f32 %v3103, -5.6925062e-05
        %v3168 = vadd.f32 %v3104, -5.6925062e-05
        %v3169 = vadd.f32 %v3105, -5.6925062e-05
        %v3170 = vadd.f32 %v3106, -5.6925062e-05
        %v3171 = vadd.f32 %v3107, -5.6925062e-05
        %v3172 = vadd.f32 %v3108, -5.6925062e-05
        %v3173 = vadd.f32 %v3109, -5.6925062e-05
        %v3174 = vadd.f32 %v3110, -5.6925062e-05
        %v3175 = vadd.f32 %v3111, -5.6925062e-05
        %v3176 = vadd.f32 %v3112, -5.6925062e-05
        %v3177 = vadd.f32 %v3113, -5.6925062e-05
        %v3178 = vadd.f32 %v3114, -5.6925062e-05
        %v3179 = vadd.f32 %v3115, -5.6925062e-05
        %v3180 = vadd.f32 %v3116, -5.6925062e-05
        %v3181 = vadd.f32 %v3117, -5.6925062e-05
        %v3182 = vadd.f32 %v3118, -5.6925062e-05
        %v3183 = vadd.f32 %v3119, -5.6925062e-05
        %v3184 = vadd.f32 %v3120, -5.6925062e-05
        %v3185 = vadd.f32 %v3121, -5.6925062e-05
        %v3186 = vadd.f32 %v3122, -5.6925062e-05
        %v3187 = vadd.f32 %v3123, -5.6925062e-05
        %v3188 = vadd.f32 %v3124, -5.6925062e-05
        %v3189 = vadd.f32 %v3125, -5.6925062e-05
        %v3190 = vadd.f32 %v3126, -5.6925062e-05
        %v3191 = vadd.f32 %v3127, -5.6925062e-05
        %v3192 = vadd.f32 %v3128, -5.6925062e-05
        %v3193 = vadd.f32 %v3129, -5.6925062e-05
        %v3194 = vadd.f32 %v3130, -5.6925062e-05
        %v3195 = vadd.f32 %v3131, -5.6925062e-05
        %v3196 = vadd.f32 %v3132, -5.6925062e-05
        %v3197 = vadd.f32 %v3133, -5.6925062e-05
        %v3198 = vadd.f32 %v3134, -5.6925062e-05
        %v3199 = vadd.f32 %v3135, -5.6925062e-05
        %v3200 = vadd.f32 %v3136, -5.6925062e-05
        %v3201 = vadd.f32 %v3137, -5.6925062e-05
        %v3202 = vadd.f32 %v3138, -5.6925062e-05
        %v3203 = vadd.f32 %v3139, -5.6925062e-05
        %v3204 = vadd.f32 %v3140, -5.6925062e-05
        %v3205 = vadd.f32 %v3141, -5.6925062e-05
        %v3206 = vadd.f32 %v3142, -5.6925062e-05
        %v3207 = vadd.f32 %v3143, -5.6925062e-05
        %v3208 = vadd.f32 %v3144, -5.6925062e-05
        %v3209 = vadd.f32 %v3145, -5.6925062e-05
        %v3210 = vadd.f32 %v3146, -5.6925062e-05
        %v3211 = vadd.f32 %v3147, -5.6925062e-05
        %v3212 = vadd.f32 %v3148, -5.6925062e-05
        %v3213 = vadd.f32 %v3149, -5.6925062e-05
        %v3214 = vadd.f32 %v3150, -5.6925062e-05
        %v3215 = vadd.f32 %v3151, -5.6925062e-05
        %v3216 = vmul.f32 %v3152, %v2768
        %v3217 = vmul.f32 %v3153, %v2769
        %v3218 = vmul.f32 %v3154, %v2770
        %v3219 = vmul.f32 %v3155, %v2771
        %v3220 = vmul.f32 %v3156, %v2772
        %v3221 = vmul.f32 %v3157, %v2773
        %v3222 = vmul.f32 %v3158, %v2774
        %v3223 = vmul.f32 %v3159, %v2775
        %v3224 = vmul.f32 %v3160, %v2776
        %v3225 = vmul.f32 %v3161, %v2777
        %v3226 = vmul.f32 %v3162, %v2778
        %v3227 = vmul.f32 %v3163, %v2779
        %v3228 = vmul.f32 %v3164, %v2780
        %v3229 = vmul.f32 %v3165, %v2781
        %v3230 = vmul.f32 %v3166, %v2782
        %v3231 = vmul.f32 %v3167, %v2783
        %v3232 = vmul.f32 %v3168, %v2784
        %v3233 = vmul.f32 %v3169, %v2785
        %v3234 = vmul.f32 %v3170, %v2786
        %v3235 = vmul.f32 %v3171, %v2787
        %v3236 = vmul.f32 %v3172, %v2788
        %v3237 = vmul.f32 %v3173, %v2789
        %v3238 = vmul.f32 %v3174, %v2790
        %v3239 = vmul.f32 %v3175, %v2791
        %v3240 = vmul.f32 %v3176, %v2792
        %v3241 = vmul.f32 %v3177, %v2793
        %v3242 = vmul.f32 %v3178, %v2794
        %v3243 = vmul.f32 %v3179, %v2795
        %v3244 = vmul.f32 %v3180, %v2796
        %v3245 = vmul.f32 %v3181, %v2797
        %v3246 = vmul.f32 %v3182, %v2798
        %v3247 = vmul.f32 %v3183, %v2799
        %v3248 = vmul.f32 %v3184, %v2800
        %v3249 = vmul.f32 %v3185, %v2801
        %v3250 = vmul.f32 %v3186, %v2802
        %v3251 = vmul.f32 %v3187, %v2803
        %v3252 = vmul.f32 %v3188, %v2804
        %v3253 = vmul.f32 %v3189, %v2805
        %v3254 = vmul.f32 %v3190, %v2806
        %v3255 = vmul.f32 %v3191, %v2807
        %v3256 = vmul.f32 %v3192, %v2808
        %v3257 = vmul.f32 %v3193, %v2809
        %v3258 = vmul.f32 %v3194, %v2810
        %v3259 = vmul.f32 %v3195, %v2811
        %v3260 = vmul.f32 %v3196, %v2812
        %v3261 = vmul.f32 %v3197, %v2813
        %v3262 = vmul.f32 %v3198, %v2814
        %v3263 = vmul.f32 %v3199, %v2815
        %v3264 = vmul.f32 %v3200, %v2816
        %v3265 = vmul.f32 %v3201, %v2817
        %v3266 = vmul.f32 %v3202, %v2818
        %v3267 = vmul.f32 %v3203, %v2819
        %v3268 = vmul.f32 %v3204, %v2820
        %v3269 = vmul.f32 %v3205, %v2821
        %v3270 = vmul.f32 %v3206, %v2822
        %v3271 = vmul.f32 %v3207, %v2823
        %v3272 = vmul.f32 %v3208, %v2824
        %v3273 = vmul.f32 %v3209, %v2825
        %v3274 = vmul.f32 %v3210, %v2826
        %v3275 = vmul.f32 %v3211, %v2827
        %v3276 = vmul.f32 %v3212, %v2828
        %v3277 = vmul.f32 %v3213, %v2829
        %v3278 = vmul.f32 %v3214, %v2830
        %v3279 = vmul.f32 %v3215, %v2831
        %v3280 = vadd.f32 %v3216, -0.00073499064
        %v3281 = vadd.f32 %v3217, -0.00073499064
        %v3282 = vadd.f32 %v3218, -0.00073499064
        %v3283 = vadd.f32 %v3219, -0.00073499064
        %v3284 = vadd.f32 %v3220, -0.00073499064
        %v3285 = vadd.f32 %v3221, -0.00073499064
        %v3286 = vadd.f32 %v3222, -0.00073499064
        %v3287 = vadd.f32 %v3223, -0.00073499064
        %v3288 = vadd.f32 %v3224, -0.00073499064
        %v3289 = vadd.f32 %v3225, -0.00073499064
        %v3290 = vadd.f32 %v3226, -0.00073499064
        %v3291 = vadd.f32 %v3227, -0.00073499064
        %v3292 = vadd.f32 %v3228, -0.00073499064
        %v3293 = vadd.f32 %v3229, -0.00073499064
        %v3294 = vadd.f32 %v3230, -0.00073499064
        %v3295 = vadd.f32 %v3231, -0.00073499064
        %v3296 = vadd.f32 %v3232, -0.00073499064
        %v3297 = vadd.f32 %v3233, -0.00073499064
        %v3298 = vadd.f32 %v3234, -0.00073499064
        %v3299 = vadd.f32 %v3235, -0.00073499064
        %v3300 = vadd.f32 %v3236, -0.00073499064
        %v3301 = vadd.f32 %v3237, -0.00073499064
        %v3302 = vadd.f32 %v3238, -0.00073499064
        %v3303 = vadd.f32 %v3239, -0.00073499064
        %v3304 = vadd.f32 %v3240, -0.00073499064
        %v3305 = vadd.f32 %v3241, -0.00073499064
        %v3306 = vadd.f32 %v3242, -0.00073499064
        %v3307 = vadd.f32 %v3243, -0.00073499064
        %v3308 = vadd.f32 %v3244, -0.00073499064
        %v3309 = vadd.f32 %v3245, -0.00073499064
        %v3310 = vadd.f32 %v3246, -0.00073499064
        %v3311 = vadd.f32 %v3247, -0.00073499064
        %v3312 = vadd.f32 %v3248, -0.00073499064
        %v3313 = vadd.f32 %v3249, -0.00073499064
        %v3314 = vadd.f32 %v3250, -0.00073499064
        %v3315 = vadd.f32 %v3251, -0.00073499064
        %v3316 = vadd.f32 %v3252, -0.00073499064
        %v3317 = vadd.f32 %v3253, -0.00073499064
        %v3318 = vadd.f32 %v3254, -0.00073499064
        %v3319 = vadd.f32 %v3255, -0.00073499064
        %v3320 = vadd.f32 %v3256, -0.00073499064
        %v3321 = vadd.f32 %v3257, -0.00073499064
        %v3322 = vadd.f32 %v3258, -0.00073499064
        %v3323 = vadd.f32 %v3259, -0.00073499064
        %v3324 = vadd.f32 %v3260, -0.00073499064
        %v3325 = vadd.f32 %v3261, -0.00073499064
        %v3326 = vadd.f32 %v3262, -0.00073499064
        %v3327 = vadd.f32 %v3263, -0.00073499064
        %v3328 = vadd.f32 %v3264, -0.00073499064
        %v3329 = vadd.f32 %v3265, -0.00073499064
        %v3330 = vadd.f32 %v3266, -0.00073499064
        %v3331 = vadd.f32 %v3267, -0.00073499064
        %v3332 = vadd.f32 %v3268, -0.00073499064
        %v3333 = vadd.f32 %v3269, -0.00073499064
        %v3334 = vadd.f32 %v3270, -0.00073499064
        %v3335 = vadd.f32 %v3271, -0.00073499064
        %v3336 = vadd.f32 %v3272, -0.00073499064
        %v3337 = vadd.f32 %v3273, -0.00073499064
        %v3338 = vadd.f32 %v3274, -0.00073499064
        %v3339 = vadd.f32 %v3275, -0.00073499064
        %v3340 = vadd.f32 %v3276, -0.00073499064
        %v3341 = vadd.f32 %v3277, -0.00073499064
        %v3342 = vadd.f32 %v3278, -0.00073499064
        %v3343 = vadd.f32 %v3279, -0.00073499064
        %v3344 = vmul.f32 %v3280, %v2768
        %v3345 = vmul.f32 %v3281, %v2769
        %v3346 = vmul.f32 %v3282, %v2770
        %v3347 = vmul.f32 %v3283, %v2771
        %v3348 = vmul.f32 %v3284, %v2772
        %v3349 = vmul.f32 %v3285, %v2773
        %v3350 = vmul.f32 %v3286, %v2774
        %v3351 = vmul.f32 %v3287, %v2775
        %v3352 = vmul.f32 %v3288, %v2776
        %v3353 = vmul.f32 %v3289, %v2777
        %v3354 = vmul.f32 %v3290, %v2778
        %v3355 = vmul.f32 %v3291, %v2779
        %v3356 = vmul.f32 %v3292, %v2780
        %v3357 = vmul.f32 %v3293, %v2781
        %v3358 = vmul.f32 %v3294, %v2782
        %v3359 = vmul.f32 %v3295, %v2783
        %v3360 = vmul.f32 %v3296, %v2784
        %v3361 = vmul.f32 %v3297, %v2785
        %v3362 = vmul.f32 %v3298, %v2786
        %v3363 = vmul.f32 %v3299, %v2787
        %v3364 = vmul.f32 %v3300, %v2788
        %v3365 = vmul.f32 %v3301, %v2789
        %v3366 = vmul.f32 %v3302, %v2790
        %v3367 = vmul.f32 %v3303, %v2791
        %v3368 = vmul.f32 %v3304, %v2792
        %v3369 = vmul.f32 %v3305, %v2793
        %v3370 = vmul.f32 %v3306, %v2794
        %v3371 = vmul.f32 %v3307, %v2795
        %v3372 = vmul.f32 %v3308, %v2796
        %v3373 = vmul.f32 %v3309, %v2797
        %v3374 = vmul.f32 %v3310, %v2798
        %v3375 = vmul.f32 %v3311, %v2799
        %v3376 = vmul.f32 %v3312, %v2800
        %v3377 = vmul.f32 %v3313, %v2801
        %v3378 = vmul.f32 %v3314, %v2802
        %v3379 = vmul.f32 %v3315, %v2803
        %v3380 = vmul.f32 %v3316, %v2804
        %v3381 = vmul.f32 %v3317, %v2805
        %v3382 = vmul.f32 %v3318, %v2806
        %v3383 = vmul.f32 %v3319, %v2807
        %v3384 = vmul.f32 %v3320, %v2808
        %v3385 = vmul.f32 %v3321, %v2809
        %v3386 = vmul.f32 %v3322, %v2810
        %v3387 = vmul.f32 %v3323, %v2811
        %v3388 = vmul.f32 %v3324, %v2812
        %v3389 = vmul.f32 %v3325, %v2813
        %v3390 = vmul.f32 %v3326, %v2814
        %v3391 = vmul.f32 %v3327, %v2815
        %v3392 = vmul.f32 %v3328, %v2816
        %v3393 = vmul.f32 %v3329, %v2817
        %v3394 = vmul.f32 %v3330, %v2818
        %v3395 = vmul.f32 %v3331, %v2819
        %v3396 = vmul.f32 %v3332, %v2820
        %v3397 = vmul.f32 %v3333, %v2821
        %v3398 = vmul.f32 %v3334, %v2822
        %v3399 = vmul.f32 %v3335, %v2823
        %v3400 = vmul.f32 %v3336, %v2824
        %v3401 = vmul.f32 %v3337, %v2825
        %v3402 = vmul.f32 %v3338, %v2826
        %v3403 = vmul.f32 %v3339, %v2827
        %v3404 = vmul.f32 %v3340, %v2828
        %v3405 = vmul.f32 %v3341, %v2829
        %v3406 = vmul.f32 %v3342, %v2830
        %v3407 = vmul.f32 %v3343, %v2831
        %v3408 = vadd.f32 %v3344, -0.0029546
        %v3409 = vadd.f32 %v3345, -0.0029546
        %v3410 = vadd.f32 %v3346, -0.0029546
        %v3411 = vadd.f32 %v3347, -0.0029546
        %v3412 = vadd.f32 %v3348, -0.0029546
        %v3413 = vadd.f32 %v3349, -0.0029546
        %v3414 = vadd.f32 %v3350, -0.0029546
        %v3415 = vadd.f32 %v3351, -0.0029546
        %v3416 = vadd.f32 %v3352, -0.0029546
        %v3417 = vadd.f32 %v3353, -0.0029546
        %v3418 = vadd.f32 %v3354, -0.0029546
        %v3419 = vadd.f32 %v3355, -0.0029546
        %v3420 = vadd.f32 %v3356, -0.0029546
        %v3421 = vadd.f32 %v3357, -0.0029546
        %v3422 = vadd.f32 %v3358, -0.0029546
        %v3423 = vadd.f32 %v3359, -0.0029546
        %v3424 = vadd.f32 %v3360, -0.0029546
        %v3425 = vadd.f32 %v3361, -0.0029546
        %v3426 = vadd.f32 %v3362, -0.0029546
        %v3427 = vadd.f32 %v3363, -0.0029546
        %v3428 = vadd.f32 %v3364, -0.0029546
        %v3429 = vadd.f32 %v3365, -0.0029546
        %v3430 = vadd.f32 %v3366, -0.0029546
        %v3431 = vadd.f32 %v3367, -0.0029546
        %v3432 = vadd.f32 %v3368, -0.0029546
        %v3433 = vadd.f32 %v3369, -0.0029546
        %v3434 = vadd.f32 %v3370, -0.0029546
        %v3435 = vadd.f32 %v3371, -0.0029546
        %v3436 = vadd.f32 %v3372, -0.0029546
        %v3437 = vadd.f32 %v3373, -0.0029546
        %v3438 = vadd.f32 %v3374, -0.0029546
        %v3439 = vadd.f32 %v3375, -0.0029546
        %v3440 = vadd.f32 %v3376, -0.0029546
        %v3441 = vadd.f32 %v3377, -0.0029546
        %v3442 = vadd.f32 %v3378, -0.0029546
        %v3443 = vadd.f32 %v3379, -0.0029546
        %v3444 = vadd.f32 %v3380, -0.0029546
        %v3445 = vadd.f32 %v3381, -0.0029546
        %v3446 = vadd.f32 %v3382, -0.0029546
        %v3447 = vadd.f32 %v3383, -0.0029546
        %v3448 = vadd.f32 %v3384, -0.0029546
        %v3449 = vadd.f32 %v3385, -0.0029546
        %v3450 = vadd.f32 %v3386, -0.0029546
        %v3451 = vadd.f32 %v3387, -0.0029546
        %v3452 = vadd.f32 %v3388, -0.0029546
        %v3453 = vadd.f32 %v3389, -0.0029546
        %v3454 = vadd.f32 %v3390, -0.0029546
        %v3455 = vadd.f32 %v3391, -0.0029546
        %v3456 = vadd.f32 %v3392, -0.0029546
        %v3457 = vadd.f32 %v3393, -0.0029546
        %v3458 = vadd.f32 %v3394, -0.0029546
        %v3459 = vadd.f32 %v3395, -0.0029546
        %v3460 = vadd.f32 %v3396, -0.0029546
        %v3461 = vadd.f32 %v3397, -0.0029546
        %v3462 = vadd.f32 %v3398, -0.0029546
        %v3463 = vadd.f32 %v3399, -0.0029546
        %v3464 = vadd.f32 %v3400, -0.0029546
        %v3465 = vadd.f32 %v3401, -0.0029546
        %v3466 = vadd.f32 %v3402, -0.0029546
        %v3467 = vadd.f32 %v3403, -0.0029546
        %v3468 = vadd.f32 %v3404, -0.0029546
        %v3469 = vadd.f32 %v3405, -0.0029546
        %v3470 = vadd.f32 %v3406, -0.0029546
        %v3471 = vadd.f32 %v3407, -0.0029546
        %v3472 = vmul.f32 %v3408, %v2768
        %v3473 = vmul.f32 %v3409, %v2769
        %v3474 = vmul.f32 %v3410, %v2770
        %v3475 = vmul.f32 %v3411, %v2771
        %v3476 = vmul.f32 %v3412, %v2772
        %v3477 = vmul.f32 %v3413, %v2773
        %v3478 = vmul.f32 %v3414, %v2774
        %v3479 = vmul.f32 %v3415, %v2775
        %v3480 = vmul.f32 %v3416, %v2776
        %v3481 = vmul.f32 %v3417, %v2777
        %v3482 = vmul.f32 %v3418, %v2778
        %v3483 = vmul.f32 %v3419, %v2779
        %v3484 = vmul.f32 %v3420, %v2780
        %v3485 = vmul.f32 %v3421, %v2781
        %v3486 = vmul.f32 %v3422, %v2782
        %v3487 = vmul.f32 %v3423, %v2783
        %v3488 = vmul.f32 %v3424, %v2784
        %v3489 = vmul.f32 %v3425, %v2785
        %v3490 = vmul.f32 %v3426, %v2786
        %v3491 = vmul.f32 %v3427, %v2787
        %v3492 = vmul.f32 %v3428, %v2788
        %v3493 = vmul.f32 %v3429, %v2789
        %v3494 = vmul.f32 %v3430, %v2790
        %v3495 = vmul.f32 %v3431, %v2791
        %v3496 = vmul.f32 %v3432, %v2792
        %v3497 = vmul.f32 %v3433, %v2793
        %v3498 = vmul.f32 %v3434, %v2794
        %v3499 = vmul.f32 %v3435, %v2795
        %v3500 = vmul.f32 %v3436, %v2796
        %v3501 = vmul.f32 %v3437, %v2797
        %v3502 = vmul.f32 %v3438, %v2798
        %v3503 = vmul.f32 %v3439, %v2799
        %v3504 = vmul.f32 %v3440, %v2800
        %v3505 = vmul.f32 %v3441, %v2801
        %v3506 = vmul.f32 %v3442, %v2802
        %v3507 = vmul.f32 %v3443, %v2803
        %v3508 = vmul.f32 %v3444, %v2804
        %v3509 = vmul.f32 %v3445, %v2805
        %v3510 = vmul.f32 %v3446, %v2806
        %v3511 = vmul.f32 %v3447, %v2807
        %v3512 = vmul.f32 %v3448, %v2808
        %v3513 = vmul.f32 %v3449, %v2809
        %v3514 = vmul.f32 %v3450, %v2810
        %v3515 = vmul.f32 %v3451, %v2811
        %v3516 = vmul.f32 %v3452, %v2812
        %v3517 = vmul.f32 %v3453, %v2813
        %v3518 = vmul.f32 %v3454, %v2814
        %v3519 = vmul.f32 %v3455, %v2815
        %v3520 = vmul.f32 %v3456, %v2816
        %v3521 = vmul.f32 %v3457, %v2817
        %v3522 = vmul.f32 %v3458, %v2818
        %v3523 = vmul.f32 %v3459, %v2819
        %v3524 = vmul.f32 %v3460, %v2820
        %v3525 = vmul.f32 %v3461, %v2821
        %v3526 = vmul.f32 %v3462, %v2822
        %v3527 = vmul.f32 %v3463, %v2823
        %v3528 = vmul.f32 %v3464, %v2824
        %v3529 = vmul.f32 %v3465, %v2825
        %v3530 = vmul.f32 %v3466, %v2826
        %v3531 = vmul.f32 %v3467, %v2827
        %v3532 = vmul.f32 %v3468, %v2828
        %v3533 = vmul.f32 %v3469, %v2829
        %v3534 = vmul.f32 %v3470, %v2830
        %v3535 = vmul.f32 %v3471, %v2831
        %v3536 = vadd.f32 %v3472, -0.016096033
        %v3537 = vadd.f32 %v3473, -0.016096033
        %v3538 = vadd.f32 %v3474, -0.016096033
        %v3539 = vadd.f32 %v3475, -0.016096033
        %v3540 = vadd.f32 %v3476, -0.016096033
        %v3541 = vadd.f32 %v3477, -0.016096033
        %v3542 = vadd.f32 %v3478, -0.016096033
        %v3543 = vadd.f32 %v3479, -0.016096033
        %v3544 = vadd.f32 %v3480, -0.016096033
        %v3545 = vadd.f32 %v3481, -0.016096033
        %v3546 = vadd.f32 %v3482, -0.016096033
        %v3547 = vadd.f32 %v3483, -0.016096033
        %v3548 = vadd.f32 %v3484, -0.016096033
        %v3549 = vadd.f32 %v3485, -0.016096033
        %v3550 = vadd.f32 %v3486, -0.016096033
        %v3551 = vadd.f32 %v3487, -0.016096033
        %v3552 = vadd.f32 %v3488, -0.016096033
        %v3553 = vadd.f32 %v3489, -0.016096033
        %v3554 = vadd.f32 %v3490, -0.016096033
        %v3555 = vadd.f32 %v3491, -0.016096033
        %v3556 = vadd.f32 %v3492, -0.016096033
        %v3557 = vadd.f32 %v3493, -0.016096033
        %v3558 = vadd.f32 %v3494, -0.016096033
        %v3559 = vadd.f32 %v3495, -0.016096033
        %v3560 = vadd.f32 %v3496, -0.016096033
        %v3561 = vadd.f32 %v3497, -0.016096033
        %v3562 = vadd.f32 %v3498, -0.016096033
        %v3563 = vadd.f32 %v3499, -0.016096033
        %v3564 = vadd.f32 %v3500, -0.016096033
        %v3565 = vadd.f32 %v3501, -0.016096033
        %v3566 = vadd.f32 %v3502, -0.016096033
        %v3567 = vadd.f32 %v3503, -0.016096033
        %v3568 = vadd.f32 %v3504, -0.016096033
        %v3569 = vadd.f32 %v3505, -0.016096033
        %v3570 = vadd.f32 %v3506, -0.016096033
        %v3571 = vadd.f32 %v3507, -0.016096033
        %v3572 = vadd.f32 %v3508, -0.016096033
        %v3573 = vadd.f32 %v3509, -0.016096033
        %v3574 = vadd.f32 %v3510, -0.016096033
        %v3575 = vadd.f32 %v3511, -0.016096033
        %v3576 = vadd.f32 %v3512, -0.016096033
        %v3577 = vadd.f32 %v3513, -0.016096033
        %v3578 = vadd.f32 %v3514, -0.016096033
        %v3579 = vadd.f32 %v3515, -0.016096033
        %v3580 = vadd.f32 %v3516, -0.016096033
        %v3581 = vadd.f32 %v3517, -0.016096033
        %v3582 = vadd.f32 %v3518, -0.016096033
        %v3583 = vadd.f32 %v3519, -0.016096033
        %v3584 = vadd.f32 %v3520, -0.016096033
        %v3585 = vadd.f32 %v3521, -0.016096033
        %v3586 = vadd.f32 %v3522, -0.016096033
        %v3587 = vadd.f32 %v3523, -0.016096033
        %v3588 = vadd.f32 %v3524, -0.016096033
        %v3589 = vadd.f32 %v3525, -0.016096033
        %v3590 = vadd.f32 %v3526, -0.016096033
        %v3591 = vadd.f32 %v3527, -0.016096033
        %v3592 = vadd.f32 %v3528, -0.016096033
        %v3593 = vadd.f32 %v3529, -0.016096033
        %v3594 = vadd.f32 %v3530, -0.016096033
        %v3595 = vadd.f32 %v3531, -0.016096033
        %v3596 = vadd.f32 %v3532, -0.016096033
        %v3597 = vadd.f32 %v3533, -0.016096033
        %v3598 = vadd.f32 %v3534, -0.016096033
        %v3599 = vadd.f32 %v3535, -0.016096033
        %v3600 = vmul.f32 %v2768, -1.45660715e-05
        %v3601 = vmul.f32 %v2769, -1.45660715e-05
        %v3602 = vmul.f32 %v2770, -1.45660715e-05
        %v3603 = vmul.f32 %v2771, -1.45660715e-05
        %v3604 = vmul.f32 %v2772, -1.45660715e-05
        %v3605 = vmul.f32 %v2773, -1.45660715e-05
        %v3606 = vmul.f32 %v2774, -1.45660715e-05
        %v3607 = vmul.f32 %v2775, -1.45660715e-05
        %v3608 = vmul.f32 %v2776, -1.45660715e-05
        %v3609 = vmul.f32 %v2777, -1.45660715e-05
        %v3610 = vmul.f32 %v2778, -1.45660715e-05
        %v3611 = vmul.f32 %v2779, -1.45660715e-05
        %v3612 = vmul.f32 %v2780, -1.45660715e-05
        %v3613 = vmul.f32 %v2781, -1.45660715e-05
        %v3614 = vmul.f32 %v2782, -1.45660715e-05
        %v3615 = vmul.f32 %v2783, -1.45660715e-05
        %v3616 = vmul.f32 %v2784, -1.45660715e-05
        %v3617 = vmul.f32 %v2785, -1.45660715e-05
        %v3618 = vmul.f32 %v2786, -1.45660715e-05
        %v3619 = vmul.f32 %v2787, -1.45660715e-05
        %v3620 = vmul.f32 %v2788, -1.45660715e-05
        %v3621 = vmul.f32 %v2789, -1.45660715e-05
        %v3622 = vmul.f32 %v2790, -1.45660715e-05
        %v3623 = vmul.f32 %v2791, -1.45660715e-05
        %v3624 = vmul.f32 %v2792, -1.45660715e-05
        %v3625 = vmul.f32 %v2793, -1.45660715e-05
        %v3626 = vmul.f32 %v2794, -1.45660715e-05
        %v3627 = vmul.f32 %v2795, -1.45660715e-05
        %v3628 = vmul.f32 %v2796, -1.45660715e-05
        %v3629 = vmul.f32 %v2797, -1.45660715e-05
        %v3630 = vmul.f32 %v2798, -1.45660715e-05
        %v3631 = vmul.f32 %v2799, -1.45660715e-05
        %v3632 = vmul.f32 %v2800, -1.45660715e-05
        %v3633 = vmul.f32 %v2801, -1.45660715e-05
        %v3634 = vmul.f32 %v2802, -1.45660715e-05
        %v3635 = vmul.f32 %v2803, -1.45660715e-05
        %v3636 = vmul.f32 %v2804, -1.45660715e-05
        %v3637 = vmul.f32 %v2805, -1.45660715e-05
        %v3638 = vmul.f32 %v2806, -1.45660715e-05
        %v3639 = vmul.f32 %v2807, -1.45660715e-05
        %v3640 = vmul.f32 %v2808, -1.45660715e-05
        %v3641 = vmul.f32 %v2809, -1.45660715e-05
        %v3642 = vmul.f32 %v2810, -1.45660715e-05
        %v3643 = vmul.f32 %v2811, -1.45660715e-05
        %v3644 = vmul.f32 %v2812, -1.45660715e-05
        %v3645 = vmul.f32 %v2813, -1.45660715e-05
        %v3646 = vmul.f32 %v2814, -1.45660715e-05
        %v3647 = vmul.f32 %v2815, -1.45660715e-05
        %v3648 = vmul.f32 %v2816, -1.45660715e-05
        %v3649 = vmul.f32 %v2817, -1.45660715e-05
        %v3650 = vmul.f32 %v2818, -1.45660715e-05
        %v3651 = vmul.f32 %v2819, -1.45660715e-05
        %v3652 = vmul.f32 %v2820, -1.45660715e-05
        %v3653 = vmul.f32 %v2821, -1.45660715e-05
        %v3654 = vmul.f32 %v2822, -1.45660715e-05
        %v3655 = vmul.f32 %v2823, -1.45660715e-05
        %v3656 = vmul.f32 %v2824, -1.45660715e-05
        %v3657 = vmul.f32 %v2825, -1.45660715e-05
        %v3658 = vmul.f32 %v2826, -1.45660715e-05
        %v3659 = vmul.f32 %v2827, -1.45660715e-05
        %v3660 = vmul.f32 %v2828, -1.45660715e-05
        %v3661 = vmul.f32 %v2829, -1.45660715e-05
        %v3662 = vmul.f32 %v2830, -1.45660715e-05
        %v3663 = vmul.f32 %v2831, -1.45660715e-05
        %v3664 = vadd.f32 %v3600, -0.00021337405
        %v3665 = vadd.f32 %v3601, -0.00021337405
        %v3666 = vadd.f32 %v3602, -0.00021337405
        %v3667 = vadd.f32 %v3603, -0.00021337405
        %v3668 = vadd.f32 %v3604, -0.00021337405
        %v3669 = vadd.f32 %v3605, -0.00021337405
        %v3670 = vadd.f32 %v3606, -0.00021337405
        %v3671 = vadd.f32 %v3607, -0.00021337405
        %v3672 = vadd.f32 %v3608, -0.00021337405
        %v3673 = vadd.f32 %v3609, -0.00021337405
        %v3674 = vadd.f32 %v3610, -0.00021337405
        %v3675 = vadd.f32 %v3611, -0.00021337405
        %v3676 = vadd.f32 %v3612, -0.00021337405
        %v3677 = vadd.f32 %v3613, -0.00021337405
        %v3678 = vadd.f32 %v3614, -0.00021337405
        %v3679 = vadd.f32 %v3615, -0.00021337405
        %v3680 = vadd.f32 %v3616, -0.00021337405
        %v3681 = vadd.f32 %v3617, -0.00021337405
        %v3682 = vadd.f32 %v3618, -0.00021337405
        %v3683 = vadd.f32 %v3619, -0.00021337405
        %v3684 = vadd.f32 %v3620, -0.00021337405
        %v3685 = vadd.f32 %v3621, -0.00021337405
        %v3686 = vadd.f32 %v3622, -0.00021337405
        %v3687 = vadd.f32 %v3623, -0.00021337405
        %v3688 = vadd.f32 %v3624, -0.00021337405
        %v3689 = vadd.f32 %v3625, -0.00021337405
        %v3690 = vadd.f32 %v3626, -0.00021337405
        %v3691 = vadd.f32 %v3627, -0.00021337405
        %v3692 = vadd.f32 %v3628, -0.00021337405
        %v3693 = vadd.f32 %v3629, -0.00021337405
        %v3694 = vadd.f32 %v3630, -0.00021337405
        %v3695 = vadd.f32 %v3631, -0.00021337405
        %v3696 = vadd.f32 %v3632, -0.00021337405
        %v3697 = vadd.f32 %v3633, -0.00021337405
        %v3698 = vadd.f32 %v3634, -0.00021337405
        %v3699 = vadd.f32 %v3635, -0.00021337405
        %v3700 = vadd.f32 %v3636, -0.00021337405
        %v3701 = vadd.f32 %v3637, -0.00021337405
        %v3702 = vadd.f32 %v3638, -0.00021337405
        %v3703 = vadd.f32 %v3639, -0.00021337405
        %v3704 = vadd.f32 %v3640, -0.00021337405
        %v3705 = vadd.f32 %v3641, -0.00021337405
        %v3706 = vadd.f32 %v3642, -0.00021337405
        %v3707 = vadd.f32 %v3643, -0.00021337405
        %v3708 = vadd.f32 %v3644, -0.00021337405
        %v3709 = vadd.f32 %v3645, -0.00021337405
        %v3710 = vadd.f32 %v3646, -0.00021337405
        %v3711 = vadd.f32 %v3647, -0.00021337405
        %v3712 = vadd.f32 %v3648, -0.00021337405
        %v3713 = vadd.f32 %v3649, -0.00021337405
        %v3714 = vadd.f32 %v3650, -0.00021337405
        %v3715 = vadd.f32 %v3651, -0.00021337405
        %v3716 = vadd.f32 %v3652, -0.00021337405
        %v3717 = vadd.f32 %v3653, -0.00021337405
        %v3718 = vadd.f32 %v3654, -0.00021337405
        %v3719 = vadd.f32 %v3655, -0.00021337405
        %v3720 = vadd.f32 %v3656, -0.00021337405
        %v3721 = vadd.f32 %v3657, -0.00021337405
        %v3722 = vadd.f32 %v3658, -0.00021337405
        %v3723 = vadd.f32 %v3659, -0.00021337405
        %v3724 = vadd.f32 %v3660, -0.00021337405
        %v3725 = vadd.f32 %v3661, -0.00021337405
        %v3726 = vadd.f32 %v3662, -0.00021337405
        %v3727 = vadd.f32 %v3663, -0.00021337405
        %v3728 = vmul.f32 %v3664, %v2768
        %v3729 = vmul.f32 %v3665, %v2769
        %v3730 = vmul.f32 %v3666, %v2770
        %v3731 = vmul.f32 %v3667, %v2771
        %v3732 = vmul.f32 %v3668, %v2772
        %v3733 = vmul.f32 %v3669, %v2773
        %v3734 = vmul.f32 %v3670, %v2774
        %v3735 = vmul.f32 %v3671, %v2775
        %v3736 = vmul.f32 %v3672, %v2776
        %v3737 = vmul.f32 %v3673, %v2777
        %v3738 = vmul.f32 %v3674, %v2778
        %v3739 = vmul.f32 %v3675, %v2779
        %v3740 = vmul.f32 %v3676, %v2780
        %v3741 = vmul.f32 %v3677, %v2781
        %v3742 = vmul.f32 %v3678, %v2782
        %v3743 = vmul.f32 %v3679, %v2783
        %v3744 = vmul.f32 %v3680, %v2784
        %v3745 = vmul.f32 %v3681, %v2785
        %v3746 = vmul.f32 %v3682, %v2786
        %v3747 = vmul.f32 %v3683, %v2787
        %v3748 = vmul.f32 %v3684, %v2788
        %v3749 = vmul.f32 %v3685, %v2789
        %v3750 = vmul.f32 %v3686, %v2790
        %v3751 = vmul.f32 %v3687, %v2791
        %v3752 = vmul.f32 %v3688, %v2792
        %v3753 = vmul.f32 %v3689, %v2793
        %v3754 = vmul.f32 %v3690, %v2794
        %v3755 = vmul.f32 %v3691, %v2795
        %v3756 = vmul.f32 %v3692, %v2796
        %v3757 = vmul.f32 %v3693, %v2797
        %v3758 = vmul.f32 %v3694, %v2798
        %v3759 = vmul.f32 %v3695, %v2799
        %v3760 = vmul.f32 %v3696, %v2800
        %v3761 = vmul.f32 %v3697, %v2801
        %v3762 = vmul.f32 %v3698, %v2802
        %v3763 = vmul.f32 %v3699, %v2803
        %v3764 = vmul.f32 %v3700, %v2804
        %v3765 = vmul.f32 %v3701, %v2805
        %v3766 = vmul.f32 %v3702, %v2806
        %v3767 = vmul.f32 %v3703, %v2807
        %v3768 = vmul.f32 %v3704, %v2808
        %v3769 = vmul.f32 %v3705, %v2809
        %v3770 = vmul.f32 %v3706, %v2810
        %v3771 = vmul.f32 %v3707, %v2811
        %v3772 = vmul.f32 %v3708, %v2812
        %v3773 = vmul.f32 %v3709, %v2813
        %v3774 = vmul.f32 %v3710, %v2814
        %v3775 = vmul.f32 %v3711, %v2815
        %v3776 = vmul.f32 %v3712, %v2816
        %v3777 = vmul.f32 %v3713, %v2817
        %v3778 = vmul.f32 %v3714, %v2818
        %v3779 = vmul.f32 %v3715, %v2819
        %v3780 = vmul.f32 %v3716, %v2820
        %v3781 = vmul.f32 %v3717, %v2821
        %v3782 = vmul.f32 %v3718, %v2822
        %v3783 = vmul.f32 %v3719, %v2823
        %v3784 = vmul.f32 %v3720, %v2824
        %v3785 = vmul.f32 %v3721, %v2825
        %v3786 = vmul.f32 %v3722, %v2826
        %v3787 = vmul.f32 %v3723, %v2827
        %v3788 = vmul.f32 %v3724, %v2828
        %v3789 = vmul.f32 %v3725, %v2829
        %v3790 = vmul.f32 %v3726, %v2830
        %v3791 = vmul.f32 %v3727, %v2831
        %v3792 = vadd.f32 %v3728, -0.001682827
        %v3793 = vadd.f32 %v3729, -0.001682827
        %v3794 = vadd.f32 %v3730, -0.001682827
        %v3795 = vadd.f32 %v3731, -0.001682827
        %v3796 = vadd.f32 %v3732, -0.001682827
        %v3797 = vadd.f32 %v3733, -0.001682827
        %v3798 = vadd.f32 %v3734, -0.001682827
        %v3799 = vadd.f32 %v3735, -0.001682827
        %v3800 = vadd.f32 %v3736, -0.001682827
        %v3801 = vadd.f32 %v3737, -0.001682827
        %v3802 = vadd.f32 %v3738, -0.001682827
        %v3803 = vadd.f32 %v3739, -0.001682827
        %v3804 = vadd.f32 %v3740, -0.001682827
        %v3805 = vadd.f32 %v3741, -0.001682827
        %v3806 = vadd.f32 %v3742, -0.001682827
        %v3807 = vadd.f32 %v3743, -0.001682827
        %v3808 = vadd.f32 %v3744, -0.001682827
        %v3809 = vadd.f32 %v3745, -0.001682827
        %v3810 = vadd.f32 %v3746, -0.001682827
        %v3811 = vadd.f32 %v3747, -0.001682827
        %v3812 = vadd.f32 %v3748, -0.001682827
        %v3813 = vadd.f32 %v3749, -0.001682827
        %v3814 = vadd.f32 %v3750, -0.001682827
        %v3815 = vadd.f32 %v3751, -0.001682827
        %v3816 = vadd.f32 %v3752, -0.001682827
        %v3817 = vadd.f32 %v3753, -0.001682827
        %v3818 = vadd.f32 %v3754, -0.001682827
        %v3819 = vadd.f32 %v3755, -0.001682827
        %v3820 = vadd.f32 %v3756, -0.001682827
        %v3821 = vadd.f32 %v3757, -0.001682827
        %v3822 = vadd.f32 %v3758, -0.001682827
        %v3823 = vadd.f32 %v3759, -0.001682827
        %v3824 = vadd.f32 %v3760, -0.001682827
        %v3825 = vadd.f32 %v3761, -0.001682827
        %v3826 = vadd.f32 %v3762, -0.001682827
        %v3827 = vadd.f32 %v3763, -0.001682827
        %v3828 = vadd.f32 %v3764, -0.001682827
        %v3829 = vadd.f32 %v3765, -0.001682827
        %v3830 = vadd.f32 %v3766, -0.001682827
        %v3831 = vadd.f32 %v3767, -0.001682827
        %v3832 = vadd.f32 %v3768, -0.001682827
        %v3833 = vadd.f32 %v3769, -0.001682827
        %v3834 = vadd.f32 %v3770, -0.001682827
        %v3835 = vadd.f32 %v3771, -0.001682827
        %v3836 = vadd.f32 %v3772, -0.001682827
        %v3837 = vadd.f32 %v3773, -0.001682827
        %v3838 = vadd.f32 %v3774, -0.001682827
        %v3839 = vadd.f32 %v3775, -0.001682827
        %v3840 = vadd.f32 %v3776, -0.001682827
        %v3841 = vadd.f32 %v3777, -0.001682827
        %v3842 = vadd.f32 %v3778, -0.001682827
        %v3843 = vadd.f32 %v3779, -0.001682827
        %v3844 = vadd.f32 %v3780, -0.001682827
        %v3845 = vadd.f32 %v3781, -0.001682827
        %v3846 = vadd.f32 %v3782, -0.001682827
        %v3847 = vadd.f32 %v3783, -0.001682827
        %v3848 = vadd.f32 %v3784, -0.001682827
        %v3849 = vadd.f32 %v3785, -0.001682827
        %v3850 = vadd.f32 %v3786, -0.001682827
        %v3851 = vadd.f32 %v3787, -0.001682827
        %v3852 = vadd.f32 %v3788, -0.001682827
        %v3853 = vadd.f32 %v3789, -0.001682827
        %v3854 = vadd.f32 %v3790, -0.001682827
        %v3855 = vadd.f32 %v3791, -0.001682827
        %v3856 = vmul.f32 %v3792, %v2768
        %v3857 = vmul.f32 %v3793, %v2769
        %v3858 = vmul.f32 %v3794, %v2770
        %v3859 = vmul.f32 %v3795, %v2771
        %v3860 = vmul.f32 %v3796, %v2772
        %v3861 = vmul.f32 %v3797, %v2773
        %v3862 = vmul.f32 %v3798, %v2774
        %v3863 = vmul.f32 %v3799, %v2775
        %v3864 = vmul.f32 %v3800, %v2776
        %v3865 = vmul.f32 %v3801, %v2777
        %v3866 = vmul.f32 %v3802, %v2778
        %v3867 = vmul.f32 %v3803, %v2779
        %v3868 = vmul.f32 %v3804, %v2780
        %v3869 = vmul.f32 %v3805, %v2781
        %v3870 = vmul.f32 %v3806, %v2782
        %v3871 = vmul.f32 %v3807, %v2783
        %v3872 = vmul.f32 %v3808, %v2784
        %v3873 = vmul.f32 %v3809, %v2785
        %v3874 = vmul.f32 %v3810, %v2786
        %v3875 = vmul.f32 %v3811, %v2787
        %v3876 = vmul.f32 %v3812, %v2788
        %v3877 = vmul.f32 %v3813, %v2789
        %v3878 = vmul.f32 %v3814, %v2790
        %v3879 = vmul.f32 %v3815, %v2791
        %v3880 = vmul.f32 %v3816, %v2792
        %v3881 = vmul.f32 %v3817, %v2793
        %v3882 = vmul.f32 %v3818, %v2794
        %v3883 = vmul.f32 %v3819, %v2795
        %v3884 = vmul.f32 %v3820, %v2796
        %v3885 = vmul.f32 %v3821, %v2797
        %v3886 = vmul.f32 %v3822, %v2798
        %v3887 = vmul.f32 %v3823, %v2799
        %v3888 = vmul.f32 %v3824, %v2800
        %v3889 = vmul.f32 %v3825, %v2801
        %v3890 = vmul.f32 %v3826, %v2802
        %v3891 = vmul.f32 %v3827, %v2803
        %v3892 = vmul.f32 %v3828, %v2804
        %v3893 = vmul.f32 %v3829, %v2805
        %v3894 = vmul.f32 %v3830, %v2806
        %v3895 = vmul.f32 %v3831, %v2807
        %v3896 = vmul.f32 %v3832, %v2808
        %v3897 = vmul.f32 %v3833, %v2809
        %v3898 = vmul.f32 %v3834, %v2810
        %v3899 = vmul.f32 %v3835, %v2811
        %v3900 = vmul.f32 %v3836, %v2812
        %v3901 = vmul.f32 %v3837, %v2813
        %v3902 = vmul.f32 %v3838, %v2814
        %v3903 = vmul.f32 %v3839, %v2815
        %v3904 = vmul.f32 %v3840, %v2816
        %v3905 = vmul.f32 %v3841, %v2817
        %v3906 = vmul.f32 %v3842, %v2818
        %v3907 = vmul.f32 %v3843, %v2819
        %v3908 = vmul.f32 %v3844, %v2820
        %v3909 = vmul.f32 %v3845, %v2821
        %v3910 = vmul.f32 %v3846, %v2822
        %v3911 = vmul.f32 %v3847, %v2823
        %v3912 = vmul.f32 %v3848, %v2824
        %v3913 = vmul.f32 %v3849, %v2825
        %v3914 = vmul.f32 %v3850, %v2826
        %v3915 = vmul.f32 %v3851, %v2827
        %v3916 = vmul.f32 %v3852, %v2828
        %v3917 = vmul.f32 %v3853, %v2829
        %v3918 = vmul.f32 %v3854, %v2830
        %v3919 = vmul.f32 %v3855, %v2831
        %v3920 = vadd.f32 %v3856, -0.0073733293
        %v3921 = vadd.f32 %v3857, -0.0073733293
        %v3922 = vadd.f32 %v3858, -0.0073733293
        %v3923 = vadd.f32 %v3859, -0.0073733293
        %v3924 = vadd.f32 %v3860, -0.0073733293
        %v3925 = vadd.f32 %v3861, -0.0073733293
        %v3926 = vadd.f32 %v3862, -0.0073733293
        %v3927 = vadd.f32 %v3863, -0.0073733293
        %v3928 = vadd.f32 %v3864, -0.0073733293
        %v3929 = vadd.f32 %v3865, -0.0073733293
        %v3930 = vadd.f32 %v3866, -0.0073733293
        %v3931 = vadd.f32 %v3867, -0.0073733293
        %v3932 = vadd.f32 %v3868, -0.0073733293
        %v3933 = vadd.f32 %v3869, -0.0073733293
        %v3934 = vadd.f32 %v3870, -0.0073733293
        %v3935 = vadd.f32 %v3871, -0.0073733293
        %v3936 = vadd.f32 %v3872, -0.0073733293
        %v3937 = vadd.f32 %v3873, -0.0073733293
        %v3938 = vadd.f32 %v3874, -0.0073733293
        %v3939 = vadd.f32 %v3875, -0.0073733293
        %v3940 = vadd.f32 %v3876, -0.0073733293
        %v3941 = vadd.f32 %v3877, -0.0073733293
        %v3942 = vadd.f32 %v3878, -0.0073733293
        %v3943 = vadd.f32 %v3879, -0.0073733293
        %v3944 = vadd.f32 %v3880, -0.0073733293
        %v3945 = vadd.f32 %v3881, -0.0073733293
        %v3946 = vadd.f32 %v3882, -0.0073733293
        %v3947 = vadd.f32 %v3883, -0.0073733293
        %v3948 = vadd.f32 %v3884, -0.0073733293
        %v3949 = vadd.f32 %v3885, -0.0073733293
        %v3950 = vadd.f32 %v3886, -0.0073733293
        %v3951 = vadd.f32 %v3887, -0.0073733293
        %v3952 = vadd.f32 %v3888, -0.0073733293
        %v3953 = vadd.f32 %v3889, -0.0073733293
        %v3954 = vadd.f32 %v3890, -0.0073733293
        %v3955 = vadd.f32 %v3891, -0.0073733293
        %v3956 = vadd.f32 %v3892, -0.0073733293
        %v3957 = vadd.f32 %v3893, -0.0073733293
        %v3958 = vadd.f32 %v3894, -0.0073733293
        %v3959 = vadd.f32 %v3895, -0.0073733293
        %v3960 = vadd.f32 %v3896, -0.0073733293
        %v3961 = vadd.f32 %v3897, -0.0073733293
        %v3962 = vadd.f32 %v3898, -0.0073733293
        %v3963 = vadd.f32 %v3899, -0.0073733293
        %v3964 = vadd.f32 %v3900, -0.0073733293
        %v3965 = vadd.f32 %v3901, -0.0073733293
        %v3966 = vadd.f32 %v3902, -0.0073733293
        %v3967 = vadd.f32 %v3903, -0.0073733293
        %v3968 = vadd.f32 %v3904, -0.0073733293
        %v3969 = vadd.f32 %v3905, -0.0073733293
        %v3970 = vadd.f32 %v3906, -0.0073733293
        %v3971 = vadd.f32 %v3907, -0.0073733293
        %v3972 = vadd.f32 %v3908, -0.0073733293
        %v3973 = vadd.f32 %v3909, -0.0073733293
        %v3974 = vadd.f32 %v3910, -0.0073733293
        %v3975 = vadd.f32 %v3911, -0.0073733293
        %v3976 = vadd.f32 %v3912, -0.0073733293
        %v3977 = vadd.f32 %v3913, -0.0073733293
        %v3978 = vadd.f32 %v3914, -0.0073733293
        %v3979 = vadd.f32 %v3915, -0.0073733293
        %v3980 = vadd.f32 %v3916, -0.0073733293
        %v3981 = vadd.f32 %v3917, -0.0073733293
        %v3982 = vadd.f32 %v3918, -0.0073733293
        %v3983 = vadd.f32 %v3919, -0.0073733293
        %v3984 = vmul.f32 %v3920, %v2768
        %v3985 = vmul.f32 %v3921, %v2769
        %v3986 = vmul.f32 %v3922, %v2770
        %v3987 = vmul.f32 %v3923, %v2771
        %v3988 = vmul.f32 %v3924, %v2772
        %v3989 = vmul.f32 %v3925, %v2773
        %v3990 = vmul.f32 %v3926, %v2774
        %v3991 = vmul.f32 %v3927, %v2775
        %v3992 = vmul.f32 %v3928, %v2776
        %v3993 = vmul.f32 %v3929, %v2777
        %v3994 = vmul.f32 %v3930, %v2778
        %v3995 = vmul.f32 %v3931, %v2779
        %v3996 = vmul.f32 %v3932, %v2780
        %v3997 = vmul.f32 %v3933, %v2781
        %v3998 = vmul.f32 %v3934, %v2782
        %v3999 = vmul.f32 %v3935, %v2783
        %v4000 = vmul.f32 %v3936, %v2784
        %v4001 = vmul.f32 %v3937, %v2785
        %v4002 = vmul.f32 %v3938, %v2786
        %v4003 = vmul.f32 %v3939, %v2787
        %v4004 = vmul.f32 %v3940, %v2788
        %v4005 = vmul.f32 %v3941, %v2789
        %v4006 = vmul.f32 %v3942, %v2790
        %v4007 = vmul.f32 %v3943, %v2791
        %v4008 = vmul.f32 %v3944, %v2792
        %v4009 = vmul.f32 %v3945, %v2793
        %v4010 = vmul.f32 %v3946, %v2794
        %v4011 = vmul.f32 %v3947, %v2795
        %v4012 = vmul.f32 %v3948, %v2796
        %v4013 = vmul.f32 %v3949, %v2797
        %v4014 = vmul.f32 %v3950, %v2798
        %v4015 = vmul.f32 %v3951, %v2799
        %v4016 = vmul.f32 %v3952, %v2800
        %v4017 = vmul.f32 %v3953, %v2801
        %v4018 = vmul.f32 %v3954, %v2802
        %v4019 = vmul.f32 %v3955, %v2803
        %v4020 = vmul.f32 %v3956, %v2804
        %v4021 = vmul.f32 %v3957, %v2805
        %v4022 = vmul.f32 %v3958, %v2806
        %v4023 = vmul.f32 %v3959, %v2807
        %v4024 = vmul.f32 %v3960, %v2808
        %v4025 = vmul.f32 %v3961, %v2809
        %v4026 = vmul.f32 %v3962, %v2810
        %v4027 = vmul.f32 %v3963, %v2811
        %v4028 = vmul.f32 %v3964, %v2812
        %v4029 = vmul.f32 %v3965, %v2813
        %v4030 = vmul.f32 %v3966, %v2814
        %v4031 = vmul.f32 %v3967, %v2815
        %v4032 = vmul.f32 %v3968, %v2816
        %v4033 = vmul.f32 %v3969, %v2817
        %v4034 = vmul.f32 %v3970, %v2818
        %v4035 = vmul.f32 %v3971, %v2819
        %v4036 = vmul.f32 %v3972, %v2820
        %v4037 = vmul.f32 %v3973, %v2821
        %v4038 = vmul.f32 %v3974, %v2822
        %v4039 = vmul.f32 %v3975, %v2823
        %v4040 = vmul.f32 %v3976, %v2824
        %v4041 = vmul.f32 %v3977, %v2825
        %v4042 = vmul.f32 %v3978, %v2826
        %v4043 = vmul.f32 %v3979, %v2827
        %v4044 = vmul.f32 %v3980, %v2828
        %v4045 = vmul.f32 %v3981, %v2829
        %v4046 = vmul.f32 %v3982, %v2830
        %v4047 = vmul.f32 %v3983, %v2831
        %v4048 = vadd.f32 %v3984, -0.014264739
        %v4049 = vadd.f32 %v3985, -0.014264739
        %v4050 = vadd.f32 %v3986, -0.014264739
        %v4051 = vadd.f32 %v3987, -0.014264739
        %v4052 = vadd.f32 %v3988, -0.014264739
        %v4053 = vadd.f32 %v3989, -0.014264739
        %v4054 = vadd.f32 %v3990, -0.014264739
        %v4055 = vadd.f32 %v3991, -0.014264739
        %v4056 = vadd.f32 %v3992, -0.014264739
        %v4057 = vadd.f32 %v3993, -0.014264739
        %v4058 = vadd.f32 %v3994, -0.014264739
        %v4059 = vadd.f32 %v3995, -0.014264739
        %v4060 = vadd.f32 %v3996, -0.014264739
        %v4061 = vadd.f32 %v3997, -0.014264739
        %v4062 = vadd.f32 %v3998, -0.014264739
        %v4063 = vadd.f32 %v3999, -0.014264739
        %v4064 = vadd.f32 %v4000, -0.014264739
        %v4065 = vadd.f32 %v4001, -0.014264739
        %v4066 = vadd.f32 %v4002, -0.014264739
        %v4067 = vadd.f32 %v4003, -0.014264739
        %v4068 = vadd.f32 %v4004, -0.014264739
        %v4069 = vadd.f32 %v4005, -0.014264739
        %v4070 = vadd.f32 %v4006, -0.014264739
        %v4071 = vadd.f32 %v4007, -0.014264739
        %v4072 = vadd.f32 %v4008, -0.014264739
        %v4073 = vadd.f32 %v4009, -0.014264739
        %v4074 = vadd.f32 %v4010, -0.014264739
        %v4075 = vadd.f32 %v4011, -0.014264739
        %v4076 = vadd.f32 %v4012, -0.014264739
        %v4077 = vadd.f32 %v4013, -0.014264739
        %v4078 = vadd.f32 %v4014, -0.014264739
        %v4079 = vadd.f32 %v4015, -0.014264739
        %v4080 = vadd.f32 %v4016, -0.014264739
        %v4081 = vadd.f32 %v4017, -0.014264739
        %v4082 = vadd.f32 %v4018, -0.014264739
        %v4083 = vadd.f32 %v4019, -0.014264739
        %v4084 = vadd.f32 %v4020, -0.014264739
        %v4085 = vadd.f32 %v4021, -0.014264739
        %v4086 = vadd.f32 %v4022, -0.014264739
        %v4087 = vadd.f32 %v4023, -0.014264739
        %v4088 = vadd.f32 %v4024, -0.014264739
        %v4089 = vadd.f32 %v4025, -0.014264739
        %v4090 = vadd.f32 %v4026, -0.014264739
        %v4091 = vadd.f32 %v4027, -0.014264739
        %v4092 = vadd.f32 %v4028, -0.014264739
        %v4093 = vadd.f32 %v4029, -0.014264739
        %v4094 = vadd.f32 %v4030, -0.014264739
        %v4095 = vadd.f32 %v4031, -0.014264739
        %v4096 = vadd.f32 %v4032, -0.014264739
        %v4097 = vadd.f32 %v4033, -0.014264739
        %v4098 = vadd.f32 %v4034, -0.014264739
        %v4099 = vadd.f32 %v4035, -0.014264739
        %v4100 = vadd.f32 %v4036, -0.014264739
        %v4101 = vadd.f32 %v4037, -0.014264739
        %v4102 = vadd.f32 %v4038, -0.014264739
        %v4103 = vadd.f32 %v4039, -0.014264739
        %v4104 = vadd.f32 %v4040, -0.014264739
        %v4105 = vadd.f32 %v4041, -0.014264739
        %v4106 = vadd.f32 %v4042, -0.014264739
        %v4107 = vadd.f32 %v4043, -0.014264739
        %v4108 = vadd.f32 %v4044, -0.014264739
        %v4109 = vadd.f32 %v4045, -0.014264739
        %v4110 = vadd.f32 %v4046, -0.014264739
        %v4111 = vadd.f32 %v4047, -0.014264739
        %v4112 = vmul.f32 %v2704, %v3536
        %v4113 = vmul.f32 %v2705, %v3537
        %v4114 = vmul.f32 %v2706, %v3538
        %v4115 = vmul.f32 %v2707, %v3539
        %v4116 = vmul.f32 %v2708, %v3540
        %v4117 = vmul.f32 %v2709, %v3541
        %v4118 = vmul.f32 %v2710, %v3542
        %v4119 = vmul.f32 %v2711, %v3543
        %v4120 = vmul.f32 %v2712, %v3544
        %v4121 = vmul.f32 %v2713, %v3545
        %v4122 = vmul.f32 %v2714, %v3546
        %v4123 = vmul.f32 %v2715, %v3547
        %v4124 = vmul.f32 %v2716, %v3548
        %v4125 = vmul.f32 %v2717, %v3549
        %v4126 = vmul.f32 %v2718, %v3550
        %v4127 = vmul.f32 %v2719, %v3551
        %v4128 = vmul.f32 %v2720, %v3552
        %v4129 = vmul.f32 %v2721, %v3553
        %v4130 = vmul.f32 %v2722, %v3554
        %v4131 = vmul.f32 %v2723, %v3555
        %v4132 = vmul.f32 %v2724, %v3556
        %v4133 = vmul.f32 %v2725, %v3557
        %v4134 = vmul.f32 %v2726, %v3558
        %v4135 = vmul.f32 %v2727, %v3559
        %v4136 = vmul.f32 %v2728, %v3560
        %v4137 = vmul.f32 %v2729, %v3561
        %v4138 = vmul.f32 %v2730, %v3562
        %v4139 = vmul.f32 %v2731, %v3563
        %v4140 = vmul.f32 %v2732, %v3564
        %v4141 = vmul.f32 %v2733, %v3565
        %v4142 = vmul.f32 %v2734, %v3566
        %v4143 = vmul.f32 %v2735, %v3567
        %v4144 = vmul.f32 %v2736, %v3568
        %v4145 = vmul.f32 %v2737, %v3569
        %v4146 = vmul.f32 %v2738, %v3570
        %v4147 = vmul.f32 %v2739, %v3571
        %v4148 = vmul.f32 %v2740, %v3572
        %v4149 = vmul.f32 %v2741, %v3573
        %v4150 = vmul.f32 %v2742, %v3574
        %v4151 = vmul.f32 %v2743, %v3575
        %v4152 = vmul.f32 %v2744, %v3576
        %v4153 = vmul.f32 %v2745, %v3577
        %v4154 = vmul.f32 %v2746, %v3578
        %v4155 = vmul.f32 %v2747, %v3579
        %v4156 = vmul.f32 %v2748, %v3580
        %v4157 = vmul.f32 %v2749, %v3581
        %v4158 = vmul.f32 %v2750, %v3582
        %v4159 = vmul.f32 %v2751, %v3583
        %v4160 = vmul.f32 %v2752, %v3584
        %v4161 = vmul.f32 %v2753, %v3585
        %v4162 = vmul.f32 %v2754, %v3586
        %v4163 = vmul.f32 %v2755, %v3587
        %v4164 = vmul.f32 %v2756, %v3588
        %v4165 = vmul.f32 %v2757, %v3589
        %v4166 = vmul.f32 %v2758, %v3590
        %v4167 = vmul.f32 %v2759, %v3591
        %v4168 = vmul.f32 %v2760, %v3592
        %v4169 = vmul.f32 %v2761, %v3593
        %v4170 = vmul.f32 %v2762, %v3594
        %v4171 = vmul.f32 %v2763, %v3595
        %v4172 = vmul.f32 %v2764, %v3596
        %v4173 = vmul.f32 %v2765, %v3597
        %v4174 = vmul.f32 %v2766, %v3598
        %v4175 = vmul.f32 %v2767, %v3599
        %v4176 = vrcp.pop %v4048
        %v4177 = vrcp.pop %v4049
        %v4178 = vrcp.pop %v4050
        %v4179 = vrcp.pop %v4051
        %v4180 = vrcp.pop %v4052
        %v4181 = vrcp.pop %v4053
        %v4182 = vrcp.pop %v4054
        %v4183 = vrcp.pop %v4055
        %v4184 = vrcp.pop %v4056
        %v4185 = vrcp.pop %v4057
        %v4186 = vrcp.pop %v4058
        %v4187 = vrcp.pop %v4059
        %v4188 = vrcp.pop %v4060
        %v4189 = vrcp.pop %v4061
        %v4190 = vrcp.pop %v4062
        %v4191 = vrcp.pop %v4063
        %v4192 = vrcp.pop %v4064
        %v4193 = vrcp.pop %v4065
        %v4194 = vrcp.pop %v4066
        %v4195 = vrcp.pop %v4067
        %v4196 = vrcp.pop %v4068
        %v4197 = vrcp.pop %v4069
        %v4198 = vrcp.pop %v4070
        %v4199 = vrcp.pop %v4071
        %v4200 = vrcp.pop %v4072
        %v4201 = vrcp.pop %v4073
        %v4202 = vrcp.pop %v4074
        %v4203 = vrcp.pop %v4075
        %v4204 = vrcp.pop %v4076
        %v4205 = vrcp.pop %v4077
        %v4206 = vrcp.pop %v4078
        %v4207 = vrcp.pop %v4079
        %v4208 = vrcp.pop %v4080
        %v4209 = vrcp.pop %v4081
        %v4210 = vrcp.pop %v4082
        %v4211 = vrcp.pop %v4083
        %v4212 = vrcp.pop %v4084
        %v4213 = vrcp.pop %v4085
        %v4214 = vrcp.pop %v4086
        %v4215 = vrcp.pop %v4087
        %v4216 = vrcp.pop %v4088
        %v4217 = vrcp.pop %v4089
        %v4218 = vrcp.pop %v4090
        %v4219 = vrcp.pop %v4091
        %v4220 = vrcp.pop %v4092
        %v4221 = vrcp.pop %v4093
        %v4222 = vrcp.pop %v4094
        %v4223 = vrcp.pop %v4095
        %v4224 = vrcp.pop %v4096
        %v4225 = vrcp.pop %v4097
        %v4226 = vrcp.pop %v4098
        %v4227 = vrcp.pop %v4099
        %v4228 = vrcp.pop %v4100
        %v4229 = vrcp.pop %v4101
        %v4230 = vrcp.pop %v4102
        %v4231 = vrcp.pop %v4103
        %v4232 = vrcp.pop %v4104
        %v4233 = vrcp.pop %v4105
        %v4234 = vrcp.pop %v4106
        %v4235 = vrcp.pop %v4107
        %v4236 = vrcp.pop %v4108
        %v4237 = vrcp.pop %v4109
        %v4238 = vrcp.pop %v4110
        %v4239 = vrcp.pop %v4111
        %v4240 = vmul.f32 %v4048, %v4176
        %v4241 = vmul.f32 %v4049, %v4177
        %v4242 = vmul.f32 %v4050, %v4178
        %v4243 = vmul.f32 %v4051, %v4179
        %v4244 = vmul.f32 %v4052, %v4180
        %v4245 = vmul.f32 %v4053, %v4181
        %v4246 = vmul.f32 %v4054, %v4182
        %v4247 = vmul.f32 %v4055, %v4183
        %v4248 = vmul.f32 %v4056, %v4184
        %v4249 = vmul.f32 %v4057, %v4185
        %v4250 = vmul.f32 %v4058, %v4186
        %v4251 = vmul.f32 %v4059, %v4187
        %v4252 = vmul.f32 %v4060, %v4188
        %v4253 = vmul.f32 %v4061, %v4189
        %v4254 = vmul.f32 %v4062, %v4190
        %v4255 = vmul.f32 %v4063, %v4191
        %v4256 = vmul.f32 %v4064, %v4192
        %v4257 = vmul.f32 %v4065, %v4193
        %v4258 = vmul.f32 %v4066, %v4194
        %v4259 = vmul.f32 %v4067, %v4195
        %v4260 = vmul.f32 %v4068, %v4196
        %v4261 = vmul.f32 %v4069, %v4197
        %v4262 = vmul.f32 %v4070, %v4198
        %v4263 = vmul.f32 %v4071, %v4199
        %v4264 = vmul.f32 %v4072, %v4200
        %v4265 = vmul.f32 %v4073, %v4201
        %v4266 = vmul.f32 %v4074, %v4202
        %v4267 = vmul.f32 %v4075, %v4203
        %v4268 = vmul.f32 %v4076, %v4204
        %v4269 = vmul.f32 %v4077, %v4205
        %v4270 = vmul.f32 %v4078, %v4206
        %v4271 = vmul.f32 %v4079, %v4207
        %v4272 = vmul.f32 %v4080, %v4208
        %v4273 = vmul.f32 %v4081, %v4209
        %v4274 = vmul.f32 %v4082, %v4210
        %v4275 = vmul.f32 %v4083, %v4211
        %v4276 = vmul.f32 %v4084, %v4212
        %v4277 = vmul.f32 %v4085, %v4213
        %v4278 = vmul.f32 %v4086, %v4214
        %v4279 = vmul.f32 %v4087, %v4215
        %v4280 = vmul.f32 %v4088, %v4216
        %v4281 = vmul.f32 %v4089, %v4217
        %v4282 = vmul.f32 %v4090, %v4218
        %v4283 = vmul.f32 %v4091, %v4219
        %v4284 = vmul.f32 %v4092, %v4220
        %v4285 = vmul.f32 %v4093, %v4221
        %v4286 = vmul.f32 %v4094, %v4222
        %v4287 = vmul.f32 %v4095, %v4223
        %v4288 = vmul.f32 %v4096, %v4224
        %v4289 = vmul.f32 %v4097, %v4225
        %v4290 = vmul.f32 %v4098, %v4226
        %v4291 = vmul.f32 %v4099, %v4227
        %v4292 = vmul.f32 %v4100, %v4228
        %v4293 = vmul.f32 %v4101, %v4229
        %v4294 = vmul.f32 %v4102, %v4230
        %v4295 = vmul.f32 %v4103, %v4231
        %v4296 = vmul.f32 %v4104, %v4232
        %v4297 = vmul.f32 %v4105, %v4233
        %v4298 = vmul.f32 %v4106, %v4234
        %v4299 = vmul.f32 %v4107, %v4235
        %v4300 = vmul.f32 %v4108, %v4236
        %v4301 = vmul.f32 %v4109, %v4237
        %v4302 = vmul.f32 %v4110, %v4238
        %v4303 = vmul.f32 %v4111, %v4239
        %v4304 = vsub.f32 2.0, %v4240
        %v4305 = vsub.f32 2.0, %v4241
        %v4306 = vsub.f32 2.0, %v4242
        %v4307 = vsub.f32 2.0, %v4243
        %v4308 = vsub.f32 2.0, %v4244
        %v4309 = vsub.f32 2.0, %v4245
        %v4310 = vsub.f32 2.0, %v4246
        %v4311 = vsub.f32 2.0, %v4247
        %v4312 = vsub.f32 2.0, %v4248
        %v4313 = vsub.f32 2.0, %v4249
        %v4314 = vsub.f32 2.0, %v4250
        %v4315 = vsub.f32 2.0, %v4251
        %v4316 = vsub.f32 2.0, %v4252
        %v4317 = vsub.f32 2.0, %v4253
        %v4318 = vsub.f32 2.0, %v4254
        %v4319 = vsub.f32 2.0, %v4255
        %v4320 = vsub.f32 2.0, %v4256
        %v4321 = vsub.f32 2.0, %v4257
        %v4322 = vsub.f32 2.0, %v4258
        %v4323 = vsub.f32 2.0, %v4259
        %v4324 = vsub.f32 2.0, %v4260
        %v4325 = vsub.f32 2.0, %v4261
        %v4326 = vsub.f32 2.0, %v4262
        %v4327 = vsub.f32 2.0, %v4263
        %v4328 = vsub.f32 2.0, %v4264
        %v4329 = vsub.f32 2.0, %v4265
        %v4330 = vsub.f32 2.0, %v4266
        %v4331 = vsub.f32 2.0, %v4267
        %v4332 = vsub.f32 2.0, %v4268
        %v4333 = vsub.f32 2.0, %v4269
        %v4334 = vsub.f32 2.0, %v4270
        %v4335 = vsub.f32 2.0, %v4271
        %v4336 = vsub.f32 2.0, %v4272
        %v4337 = vsub.f32 2.0, %v4273
        %v4338 = vsub.f32 2.0, %v4274
        %v4339 = vsub.f32 2.0, %v4275
        %v4340 = vsub.f32 2.0, %v4276
        %v4341 = vsub.f32 2.0, %v4277
        %v4342 = vsub.f32 2.0, %v4278
        %v4343 = vsub.f32 2.0, %v4279
        %v4344 = vsub.f32 2.0, %v4280
        %v4345 = vsub.f32 2.0, %v4281
        %v4346 = vsub.f32 2.0, %v4282
        %v4347 = vsub.f32 2.0, %v4283
        %v4348 = vsub.f32 2.0, %v4284
        %v4349 = vsub.f32 2.0, %v4285
        %v4350 = vsub.f32 2.0, %v4286
        %v4351 = vsub.f32 2.0, %v4287
        %v4352 = vsub.f32 2.0, %v4288
        %v4353 = vsub.f32 2.0, %v4289
        %v4354 = vsub.f32 2.0, %v4290
        %v4355 = vsub.f32 2.0, %v4291
        %v4356 = vsub.f32 2.0, %v4292
        %v4357 = vsub.f32 2.0, %v4293
        %v4358 = vsub.f32 2.0, %v4294
        %v4359 = vsub.f32 2.0, %v4295
        %v4360 = vsub.f32 2.0, %v4296
        %v4361 = vsub.f32 2.0, %v4297
        %v4362 = vsub.f32 2.0, %v4298
        %v4363 = vsub.f32 2.0, %v4299
        %v4364 = vsub.f32 2.0, %v4300
        %v4365 = vsub.f32 2.0, %v4301
        %v4366 = vsub.f32 2.0, %v4302
        %v4367 = vsub.f32 2.0, %v4303
        %v4368 = vmul.f32 %v4176, %v4304
        %v4369 = vmul.f32 %v4177, %v4305
        %v4370 = vmul.f32 %v4178, %v4306
        %v4371 = vmul.f32 %v4179, %v4307
        %v4372 = vmul.f32 %v4180, %v4308
        %v4373 = vmul.f32 %v4181, %v4309
        %v4374 = vmul.f32 %v4182, %v4310
        %v4375 = vmul.f32 %v4183, %v4311
        %v4376 = vmul.f32 %v4184, %v4312
        %v4377 = vmul.f32 %v4185, %v4313
        %v4378 = vmul.f32 %v4186, %v4314
        %v4379 = vmul.f32 %v4187, %v4315
        %v4380 = vmul.f32 %v4188, %v4316
        %v4381 = vmul.f32 %v4189, %v4317
        %v4382 = vmul.f32 %v4190, %v4318
        %v4383 = vmul.f32 %v4191, %v4319
        %v4384 = vmul.f32 %v4192, %v4320
        %v4385 = vmul.f32 %v4193, %v4321
        %v4386 = vmul.f32 %v4194, %v4322
        %v4387 = vmul.f32 %v4195, %v4323
        %v4388 = vmul.f32 %v4196, %v4324
        %v4389 = vmul.f32 %v4197, %v4325
        %v4390 = vmul.f32 %v4198, %v4326
        %v4391 = vmul.f32 %v4199, %v4327
        %v4392 = vmul.f32 %v4200, %v4328
        %v4393 = vmul.f32 %v4201, %v4329
        %v4394 = vmul.f32 %v4202, %v4330
        %v4395 = vmul.f32 %v4203, %v4331
        %v4396 = vmul.f32 %v4204, %v4332
        %v4397 = vmul.f32 %v4205, %v4333
        %v4398 = vmul.f32 %v4206, %v4334
        %v4399 = vmul.f32 %v4207, %v4335
        %v4400 = vmul.f32 %v4208, %v4336
        %v4401 = vmul.f32 %v4209, %v4337
        %v4402 = vmul.f32 %v4210, %v4338
        %v4403 = vmul.f32 %v4211, %v4339
        %v4404 = vmul.f32 %v4212, %v4340
        %v4405 = vmul.f32 %v4213, %v4341
        %v4406 = vmul.f32 %v4214, %v4342
        %v4407 = vmul.f32 %v4215, %v4343
        %v4408 = vmul.f32 %v4216, %v4344
        %v4409 = vmul.f32 %v4217, %v4345
        %v4410 = vmul.f32 %v4218, %v4346
        %v4411 = vmul.f32 %v4219, %v4347
        %v4412 = vmul.f32 %v4220, %v4348
        %v4413 = vmul.f32 %v4221, %v4349
        %v4414 = vmul.f32 %v4222, %v4350
        %v4415 = vmul.f32 %v4223, %v4351
        %v4416 = vmul.f32 %v4224, %v4352
        %v4417 = vmul.f32 %v4225, %v4353
        %v4418 = vmul.f32 %v4226, %v4354
        %v4419 = vmul.f32 %v4227, %v4355
        %v4420 = vmul.f32 %v4228, %v4356
        %v4421 = vmul.f32 %v4229, %v4357
        %v4422 = vmul.f32 %v4230, %v4358
        %v4423 = vmul.f32 %v4231, %v4359
        %v4424 = vmul.f32 %v4232, %v4360
        %v4425 = vmul.f32 %v4233, %v4361
        %v4426 = vmul.f32 %v4234, %v4362
        %v4427 = vmul.f32 %v4235, %v4363
        %v4428 = vmul.f32 %v4236, %v4364
        %v4429 = vmul.f32 %v4237, %v4365
        %v4430 = vmul.f32 %v4238, %v4366
        %v4431 = vmul.f32 %v4239, %v4367
        %v4432 = vmul.f32 %v4112, %v4368
        %v4433 = vmul.f32 %v4113, %v4369
        %v4434 = vmul.f32 %v4114, %v4370
        %v4435 = vmul.f32 %v4115, %v4371
        %v4436 = vmul.f32 %v4116, %v4372
        %v4437 = vmul.f32 %v4117, %v4373
        %v4438 = vmul.f32 %v4118, %v4374
        %v4439 = vmul.f32 %v4119, %v4375
        %v4440 = vmul.f32 %v4120, %v4376
        %v4441 = vmul.f32 %v4121, %v4377
        %v4442 = vmul.f32 %v4122, %v4378
        %v4443 = vmul.f32 %v4123, %v4379
        %v4444 = vmul.f32 %v4124, %v4380
        %v4445 = vmul.f32 %v4125, %v4381
        %v4446 = vmul.f32 %v4126, %v4382
        %v4447 = vmul.f32 %v4127, %v4383
        %v4448 = vmul.f32 %v4128, %v4384
        %v4449 = vmul.f32 %v4129, %v4385
        %v4450 = vmul.f32 %v4130, %v4386
        %v4451 = vmul.f32 %v4131, %v4387
        %v4452 = vmul.f32 %v4132, %v4388
        %v4453 = vmul.f32 %v4133, %v4389
        %v4454 = vmul.f32 %v4134, %v4390
        %v4455 = vmul.f32 %v4135, %v4391
        %v4456 = vmul.f32 %v4136, %v4392
        %v4457 = vmul.f32 %v4137, %v4393
        %v4458 = vmul.f32 %v4138, %v4394
        %v4459 = vmul.f32 %v4139, %v4395
        %v4460 = vmul.f32 %v4140, %v4396
        %v4461 = vmul.f32 %v4141, %v4397
        %v4462 = vmul.f32 %v4142, %v4398
        %v4463 = vmul.f32 %v4143, %v4399
        %v4464 = vmul.f32 %v4144, %v4400
        %v4465 = vmul.f32 %v4145, %v4401
        %v4466 = vmul.f32 %v4146, %v4402
        %v4467 = vmul.f32 %v4147, %v4403
        %v4468 = vmul.f32 %v4148, %v4404
        %v4469 = vmul.f32 %v4149, %v4405
        %v4470 = vmul.f32 %v4150, %v4406
        %v4471 = vmul.f32 %v4151, %v4407
        %v4472 = vmul.f32 %v4152, %v4408
        %v4473 = vmul.f32 %v4153, %v4409
        %v4474 = vmul.f32 %v4154, %v4410
        %v4475 = vmul.f32 %v4155, %v4411
        %v4476 = vmul.f32 %v4156, %v4412
        %v4477 = vmul.f32 %v4157, %v4413
        %v4478 = vmul.f32 %v4158, %v4414
        %v4479 = vmul.f32 %v4159, %v4415
        %v4480 = vmul.f32 %v4160, %v4416
        %v4481 = vmul.f32 %v4161, %v4417
        %v4482 = vmul.f32 %v4162, %v4418
        %v4483 = vmul.f32 %v4163, %v4419
        %v4484 = vmul.f32 %v4164, %v4420
        %v4485 = vmul.f32 %v4165, %v4421
        %v4486 = vmul.f32 %v4166, %v4422
        %v4487 = vmul.f32 %v4167, %v4423
        %v4488 = vmul.f32 %v4168, %v4424
        %v4489 = vmul.f32 %v4169, %v4425
        %v4490 = vmul.f32 %v4170, %v4426
        %v4491 = vmul.f32 %v4171, %v4427
        %v4492 = vmul.f32 %v4172, %v4428
        %v4493 = vmul.f32 %v4173, %v4429
        %v4494 = vmul.f32 %v4174, %v4430
        %v4495 = vmul.f32 %v4175, %v4431
        %v4496 = vadd.f32 %v4432, 1.0
        %v4497 = vadd.f32 %v4433, 1.0
        %v4498 = vadd.f32 %v4434, 1.0
        %v4499 = vadd.f32 %v4435, 1.0
        %v4500 = vadd.f32 %v4436, 1.0
        %v4501 = vadd.f32 %v4437, 1.0
        %v4502 = vadd.f32 %v4438, 1.0
        %v4503 = vadd.f32 %v4439, 1.0
        %v4504 = vadd.f32 %v4440, 1.0
        %v4505 = vadd.f32 %v4441, 1.0
        %v4506 = vadd.f32 %v4442, 1.0
        %v4507 = vadd.f32 %v4443, 1.0
        %v4508 = vadd.f32 %v4444, 1.0
        %v4509 = vadd.f32 %v4445, 1.0
        %v4510 = vadd.f32 %v4446, 1.0
        %v4511 = vadd.f32 %v4447, 1.0
        %v4512 = vadd.f32 %v4448, 1.0
        %v4513 = vadd.f32 %v4449, 1.0
        %v4514 = vadd.f32 %v4450, 1.0
        %v4515 = vadd.f32 %v4451, 1.0
        %v4516 = vadd.f32 %v4452, 1.0
        %v4517 = vadd.f32 %v4453, 1.0
        %v4518 = vadd.f32 %v4454, 1.0
        %v4519 = vadd.f32 %v4455, 1.0
        %v4520 = vadd.f32 %v4456, 1.0
        %v4521 = vadd.f32 %v4457, 1.0
        %v4522 = vadd.f32 %v4458, 1.0
        %v4523 = vadd.f32 %v4459, 1.0
        %v4524 = vadd.f32 %v4460, 1.0
        %v4525 = vadd.f32 %v4461, 1.0
        %v4526 = vadd.f32 %v4462, 1.0
        %v4527 = vadd.f32 %v4463, 1.0
        %v4528 = vadd.f32 %v4464, 1.0
        %v4529 = vadd.f32 %v4465, 1.0
        %v4530 = vadd.f32 %v4466, 1.0
        %v4531 = vadd.f32 %v4467, 1.0
        %v4532 = vadd.f32 %v4468, 1.0
        %v4533 = vadd.f32 %v4469, 1.0
        %v4534 = vadd.f32 %v4470, 1.0
        %v4535 = vadd.f32 %v4471, 1.0
        %v4536 = vadd.f32 %v4472, 1.0
        %v4537 = vadd.f32 %v4473, 1.0
        %v4538 = vadd.f32 %v4474, 1.0
        %v4539 = vadd.f32 %v4475, 1.0
        %v4540 = vadd.f32 %v4476, 1.0
        %v4541 = vadd.f32 %v4477, 1.0
        %v4542 = vadd.f32 %v4478, 1.0
        %v4543 = vadd.f32 %v4479, 1.0
        %v4544 = vadd.f32 %v4480, 1.0
        %v4545 = vadd.f32 %v4481, 1.0
        %v4546 = vadd.f32 %v4482, 1.0
        %v4547 = vadd.f32 %v4483, 1.0
        %v4548 = vadd.f32 %v4484, 1.0
        %v4549 = vadd.f32 %v4485, 1.0
        %v4550 = vadd.f32 %v4486, 1.0
        %v4551 = vadd.f32 %v4487, 1.0
        %v4552 = vadd.f32 %v4488, 1.0
        %v4553 = vadd.f32 %v4489, 1.0
        %v4554 = vadd.f32 %v4490, 1.0
        %v4555 = vadd.f32 %v4491, 1.0
        %v4556 = vadd.f32 %v4492, 1.0
        %v4557 = vadd.f32 %v4493, 1.0
        %v4558 = vadd.f32 %v4494, 1.0
        %v4559 = vadd.f32 %v4495, 1.0
        %v4560 = vmul.f32 %v2512, %v4496
        %v4561 = vmul.f32 %v2513, %v4497
        %v4562 = vmul.f32 %v2514, %v4498
        %v4563 = vmul.f32 %v2515, %v4499
        %v4564 = vmul.f32 %v2516, %v4500
        %v4565 = vmul.f32 %v2517, %v4501
        %v4566 = vmul.f32 %v2518, %v4502
        %v4567 = vmul.f32 %v2519, %v4503
        %v4568 = vmul.f32 %v2520, %v4504
        %v4569 = vmul.f32 %v2521, %v4505
        %v4570 = vmul.f32 %v2522, %v4506
        %v4571 = vmul.f32 %v2523, %v4507
        %v4572 = vmul.f32 %v2524, %v4508
        %v4573 = vmul.f32 %v2525, %v4509
        %v4574 = vmul.f32 %v2526, %v4510
        %v4575 = vmul.f32 %v2527, %v4511
        %v4576 = vmul.f32 %v2528, %v4512
        %v4577 = vmul.f32 %v2529, %v4513
        %v4578 = vmul.f32 %v2530, %v4514
        %v4579 = vmul.f32 %v2531, %v4515
        %v4580 = vmul.f32 %v2532, %v4516
        %v4581 = vmul.f32 %v2533, %v4517
        %v4582 = vmul.f32 %v2534, %v4518
        %v4583 = vmul.f32 %v2535, %v4519
        %v4584 = vmul.f32 %v2536, %v4520
        %v4585 = vmul.f32 %v2537, %v4521
        %v4586 = vmul.f32 %v2538, %v4522
        %v4587 = vmul.f32 %v2539, %v4523
        %v4588 = vmul.f32 %v2540, %v4524
        %v4589 = vmul.f32 %v2541, %v4525
        %v4590 = vmul.f32 %v2542, %v4526
        %v4591 = vmul.f32 %v2543, %v4527
        %v4592 = vmul.f32 %v2544, %v4528
        %v4593 = vmul.f32 %v2545, %v4529
        %v4594 = vmul.f32 %v2546, %v4530
        %v4595 = vmul.f32 %v2547, %v4531
        %v4596 = vmul.f32 %v2548, %v4532
        %v4597 = vmul.f32 %v2549, %v4533
        %v4598 = vmul.f32 %v2550, %v4534
        %v4599 = vmul.f32 %v2551, %v4535
        %v4600 = vmul.f32 %v2552, %v4536
        %v4601 = vmul.f32 %v2553, %v4537
        %v4602 = vmul.f32 %v2554, %v4538
        %v4603 = vmul.f32 %v2555, %v4539
        %v4604 = vmul.f32 %v2556, %v4540
        %v4605 = vmul.f32 %v2557, %v4541
        %v4606 = vmul.f32 %v2558, %v4542
        %v4607 = vmul.f32 %v2559, %v4543
        %v4608 = vmul.f32 %v2560, %v4544
        %v4609 = vmul.f32 %v2561, %v4545
        %v4610 = vmul.f32 %v2562, %v4546
        %v4611 = vmul.f32 %v2563, %v4547
        %v4612 = vmul.f32 %v2564, %v4548
        %v4613 = vmul.f32 %v2565, %v4549
        %v4614 = vmul.f32 %v2566, %v4550
        %v4615 = vmul.f32 %v2567, %v4551
        %v4616 = vmul.f32 %v2568, %v4552
        %v4617 = vmul.f32 %v2569, %v4553
        %v4618 = vmul.f32 %v2570, %v4554
        %v4619 = vmul.f32 %v2571, %v4555
        %v4620 = vmul.f32 %v2572, %v4556
        %v4621 = vmul.f32 %v2573, %v4557
        %v4622 = vmul.f32 %v2574, %v4558
        %v4623 = vmul.f32 %v2575, %v4559
        %v4624 = vld [vmem:[#allocation8] sm:$0x1]
        %v4625 = vld [vmem:[#allocation2] sm:$0x1]
        %4627 = vset.pattern.permute.xlu0 0
        %4628 = vperm.xlu0 %4627, %v4625
        %v4629 = vpop.permute.xlu0 %4628
        %v4631 = vlaneseq
        %v4632 = vshrl.u32 %v4631, 7
        %v4633 = vsub.s32 0, %v4632
        %v4634 = vrot.slane %v4629, %v4633
        %vm4635 = vcmask 523264
        %v4637 = vsel %vm4635, %v4624, 0
        %4639 = vmatprep.subr.mxu0 %v4561
        %4640 = vmatpush1.msra.mxu0 %v4560
        %4641 = vmatprep.subr.mxu0 %v4569
        %4642 = vmatpush1.msra.mxu0 %v4568
        %4643 = vmatprep.subr.mxu0 %v4577
        %4644 = vmatpush1.msra.mxu0 %v4576
        %4645 = vmatprep.subr.mxu0 %v4585
        %4646 = vmatpush1.msra.mxu0 %v4584
        %4647 = vmatprep.subr.mxu0 %v4593
        %4648 = vmatpush1.msra.mxu0 %v4592
        %4649 = vmatprep.subr.mxu0 %v4601
        %4650 = vmatpush1.msra.mxu0 %v4600
        %4651 = vmatprep.subr.mxu0 %v4609
        %4652 = vmatpush1.msra.mxu0 %v4608
        %4653 = vmatprep.subr.mxu0 %v4617
        %4654 = vmatpush1.msra.mxu0 %v4616
        %4655 = vmatprep.subr.mxu0 0.0
        %4656 = vmatpush1.msra.mxu0 0.0
        %4657 = vmatprep.subr.mxu0 0.0
        %4658 = vmatpush1.msra.mxu0 0.0
        %4659 = vmatprep.subr.mxu0 0.0
        %4660 = vmatpush1.msra.mxu0 0.0
        %4661 = vmatprep.subr.mxu0 0.0
        %4662 = vmatpush1.msra.mxu0 0.0
        %4663 = vmatprep.subr.mxu0 0.0
        %4664 = vmatpush1.msra.mxu0 0.0
        %4665 = vmatprep.subr.mxu0 0.0
        %4666 = vmatpush1.msra.mxu0 0.0
        %4667 = vmatprep.subr.mxu0 0.0
        %4668 = vmatpush1.msra.mxu0 0.0
        %4669 = vmatprep.subr.mxu0 0.0
        %4670 = vmatpush1.msra.mxu0 0.0
        %4671 = vmatprep.subr.mxu0 0.0
        %4672 = vmatpush1.msra.mxu0 0.0
        %4673 = vmatprep.subr.mxu0 0.0
        %4674 = vmatpush1.msra.mxu0 0.0
        %4675 = vmatprep.subr.mxu0 0.0
        %4676 = vmatpush1.msra.mxu0 0.0
        %4677 = vmatprep.subr.mxu0 0.0
        %4678 = vmatpush1.msra.mxu0 0.0
        %4679 = vmatprep.subr.mxu0 0.0
        %4680 = vmatpush1.msra.mxu0 0.0
        %4681 = vmatprep.subr.mxu0 0.0
        %4682 = vmatpush1.msra.mxu0 0.0
        %4683 = vmatprep.subr.mxu0 0.0
        %4684 = vmatpush1.msra.mxu0 0.0
        %4685 = vmatprep.subr.mxu0 0.0
        %4686 = vmatpush1.msra.mxu0 0.0
        %4687 = vmatprep.subr.mxu0 0.0
        %4688 = vmatpush1.msra.mxu0 0.0
        %4689 = vmatprep.subr.mxu0 0.0
        %4690 = vmatpush1.msra.mxu0 0.0
        %4691 = vmatprep.subr.mxu0 0.0
        %4692 = vmatpush1.msra.mxu0 0.0
        %4693 = vmatprep.subr.mxu0 0.0
        %4694 = vmatpush1.msra.mxu0 0.0
        %4695 = vmatprep.subr.mxu0 0.0
        %4696 = vmatpush1.msra.mxu0 0.0
        %4697 = vmatprep.subr.mxu0 0.0
        %4698 = vmatpush1.msra.mxu0 0.0
        %4699 = vmatprep.subr.mxu0 0.0
        %4700 = vmatpush1.msra.mxu0 0.0
        %4701 = vmatprep.subr.mxu0 0.0
        %4702 = vmatpush1.msra.mxu0 0.0
        %4703 = vmatprep.mubr.f32.mxu0 0.0
        %4704 = vmatmul.mubr.f32.gmra.mrb[0].mxu0 %v4637
        %v4705 = vpop.f32.mrb[0].mxu0
        %v4706 = vadd.f32 %v4634, %v4705
        %v4707 = vpop.f32.mrb[0].mxu0
        %v4708 = vadd.f32 %v4634, %v4707
        %4709 = vdwg.mxu0
        %4710 = vmatprep.subr.mxu0 %v4563
        %4711 = vmatpush1.msra.mxu0 %v4562
        %4712 = vmatprep.subr.mxu0 %v4571
        %4713 = vmatpush1.msra.mxu0 %v4570
        %4714 = vmatprep.subr.mxu0 %v4579
        %4715 = vmatpush1.msra.mxu0 %v4578
        %4716 = vmatprep.subr.mxu0 %v4587
        %4717 = vmatpush1.msra.mxu0 %v4586
        %4718 = vmatprep.subr.mxu0 %v4595
        %4719 = vmatpush1.msra.mxu0 %v4594
        %4720 = vmatprep.subr.mxu0 %v4603
        %4721 = vmatpush1.msra.mxu0 %v4602
        %4722 = vmatprep.subr.mxu0 %v4611
        %4723 = vmatpush1.msra.mxu0 %v4610
        %4724 = vmatprep.subr.mxu0 %v4619
        %4725 = vmatpush1.msra.mxu0 %v4618
        %4726 = vmatprep.subr.mxu0 0.0
        %4727 = vmatpush1.msra.mxu0 0.0
        %4728 = vmatprep.subr.mxu0 0.0
        %4729 = vmatpush1.msra.mxu0 0.0
        %4730 = vmatprep.subr.mxu0 0.0
        %4731 = vmatpush1.msra.mxu0 0.0
        %4732 = vmatprep.subr.mxu0 0.0
        %4733 = vmatpush1.msra.mxu0 0.0
        %4734 = vmatprep.subr.mxu0 0.0
        %4735 = vmatpush1.msra.mxu0 0.0
        %4736 = vmatprep.subr.mxu0 0.0
        %4737 = vmatpush1.msra.mxu0 0.0
        %4738 = vmatprep.subr.mxu0 0.0
        %4739 = vmatpush1.msra.mxu0 0.0
        %4740 = vmatprep.subr.mxu0 0.0
        %4741 = vmatpush1.msra.mxu0 0.0
        %4742 = vmatprep.subr.mxu0 0.0
        %4743 = vmatpush1.msra.mxu0 0.0
        %4744 = vmatprep.subr.mxu0 0.0
        %4745 = vmatpush1.msra.mxu0 0.0
        %4746 = vmatprep.subr.mxu0 0.0
        %4747 = vmatpush1.msra.mxu0 0.0
        %4748 = vmatprep.subr.mxu0 0.0
        %4749 = vmatpush1.msra.mxu0 0.0
        %4750 = vmatprep.subr.mxu0 0.0
        %4751 = vmatpush1.msra.mxu0 0.0
        %4752 = vmatprep.subr.mxu0 0.0
        %4753 = vmatpush1.msra.mxu0 0.0
        %4754 = vmatprep.subr.mxu0 0.0
        %4755 = vmatpush1.msra.mxu0 0.0
        %4756 = vmatprep.subr.mxu0 0.0
        %4757 = vmatpush1.msra.mxu0 0.0
        %4758 = vmatprep.subr.mxu0 0.0
        %4759 = vmatpush1.msra.mxu0 0.0
        %4760 = vmatprep.subr.mxu0 0.0
        %4761 = vmatpush1.msra.mxu0 0.0
        %4762 = vmatprep.subr.mxu0 0.0
        %4763 = vmatpush1.msra.mxu0 0.0
        %4764 = vmatprep.subr.mxu0 0.0
        %4765 = vmatpush1.msra.mxu0 0.0
        %4766 = vmatprep.subr.mxu0 0.0
        %4767 = vmatpush1.msra.mxu0 0.0
        %4768 = vmatprep.subr.mxu0 0.0
        %4769 = vmatpush1.msra.mxu0 0.0
        %4770 = vmatprep.subr.mxu0 0.0
        %4771 = vmatpush1.msra.mxu0 0.0
        %4772 = vmatprep.subr.mxu0 0.0
        %4773 = vmatpush1.msra.mxu0 0.0
        %4774 = vmatprep.mubr.f32.mxu0 0.0
        %4775 = vmatmul.mubr.f32.gmra.mrb[0].mxu0 %v4637
        %v4776 = vpop.f32.mrb[0].mxu0
        %v4777 = vadd.f32 %v4634, %v4776
        %v4778 = vpop.f32.mrb[0].mxu0
        %v4779 = vadd.f32 %v4634, %v4778
        %4780 = vdwg.mxu0
        %4781 = vmatprep.subr.mxu0 %v4565
        %4782 = vmatpush1.msra.mxu0 %v4564
        %4783 = vmatprep.subr.mxu0 %v4573
        %4784 = vmatpush1.msra.mxu0 %v4572
        %4785 = vmatprep.subr.mxu0 %v4581
        %4786 = vmatpush1.msra.mxu0 %v4580
        %4787 = vmatprep.subr.mxu0 %v4589
        %4788 = vmatpush1.msra.mxu0 %v4588
        %4789 = vmatprep.subr.mxu0 %v4597
        %4790 = vmatpush1.msra.mxu0 %v4596
        %4791 = vmatprep.subr.mxu0 %v4605
        %4792 = vmatpush1.msra.mxu0 %v4604
        %4793 = vmatprep.subr.mxu0 %v4613
        %4794 = vmatpush1.msra.mxu0 %v4612
        %4795 = vmatprep.subr.mxu0 %v4621
        %4796 = vmatpush1.msra.mxu0 %v4620
        %4797 = vmatprep.subr.mxu0 0.0
        %4798 = vmatpush1.msra.mxu0 0.0
        %4799 = vmatprep.subr.mxu0 0.0
        %4800 = vmatpush1.msra.mxu0 0.0
        %4801 = vmatprep.subr.mxu0 0.0
        %4802 = vmatpush1.msra.mxu0 0.0
        %4803 = vmatprep.subr.mxu0 0.0
        %4804 = vmatpush1.msra.mxu0 0.0
        %4805 = vmatprep.subr.mxu0 0.0
        %4806 = vmatpush1.msra.mxu0 0.0
        %4807 = vmatprep.subr.mxu0 0.0
        %4808 = vmatpush1.msra.mxu0 0.0
        %4809 = vmatprep.subr.mxu0 0.0
        %4810 = vmatpush1.msra.mxu0 0.0
        %4811 = vmatprep.subr.mxu0 0.0
        %4812 = vmatpush1.msra.mxu0 0.0
        %4813 = vmatprep.subr.mxu0 0.0
        %4814 = vmatpush1.msra.mxu0 0.0
        %4815 = vmatprep.subr.mxu0 0.0
        %4816 = vmatpush1.msra.mxu0 0.0
        %4817 = vmatprep.subr.mxu0 0.0
        %4818 = vmatpush1.msra.mxu0 0.0
        %4819 = vmatprep.subr.mxu0 0.0
        %4820 = vmatpush1.msra.mxu0 0.0
        %4821 = vmatprep.subr.mxu0 0.0
        %4822 = vmatpush1.msra.mxu0 0.0
        %4823 = vmatprep.subr.mxu0 0.0
        %4824 = vmatpush1.msra.mxu0 0.0
        %4825 = vmatprep.subr.mxu0 0.0
        %4826 = vmatpush1.msra.mxu0 0.0
        %4827 = vmatprep.subr.mxu0 0.0
        %4828 = vmatpush1.msra.mxu0 0.0
        %4829 = vmatprep.subr.mxu0 0.0
        %4830 = vmatpush1.msra.mxu0 0.0
        %4831 = vmatprep.subr.mxu0 0.0
        %4832 = vmatpush1.msra.mxu0 0.0
        %4833 = vmatprep.subr.mxu0 0.0
        %4834 = vmatpush1.msra.mxu0 0.0
        %4835 = vmatprep.subr.mxu0 0.0
        %4836 = vmatpush1.msra.mxu0 0.0
        %4837 = vmatprep.subr.mxu0 0.0
        %4838 = vmatpush1.msra.mxu0 0.0
        %4839 = vmatprep.subr.mxu0 0.0
        %4840 = vmatpush1.msra.mxu0 0.0
        %4841 = vmatprep.subr.mxu0 0.0
        %4842 = vmatpush1.msra.mxu0 0.0
        %4843 = vmatprep.subr.mxu0 0.0
        %4844 = vmatpush1.msra.mxu0 0.0
        %4845 = vmatprep.mubr.f32.mxu0 0.0
        %4846 = vmatmul.mubr.f32.gmra.mrb[0].mxu0 %v4637
        %v4847 = vpop.f32.mrb[0].mxu0
        %v4848 = vadd.f32 %v4634, %v4847
        %v4849 = vpop.f32.mrb[0].mxu0
        %v4850 = vadd.f32 %v4634, %v4849
        %4851 = vdwg.mxu0
        %4852 = vmatprep.subr.mxu0 %v4567
        %4853 = vmatpush1.msra.mxu0 %v4566
        %4854 = vmatprep.subr.mxu0 %v4575
        %4855 = vmatpush1.msra.mxu0 %v4574
        %4856 = vmatprep.subr.mxu0 %v4583
        %4857 = vmatpush1.msra.mxu0 %v4582
        %4858 = vmatprep.subr.mxu0 %v4591
        %4859 = vmatpush1.msra.mxu0 %v4590
        %4860 = vmatprep.subr.mxu0 %v4599
        %4861 = vmatpush1.msra.mxu0 %v4598
        %4862 = vmatprep.subr.mxu0 %v4607
        %4863 = vmatpush1.msra.mxu0 %v4606
        %4864 = vmatprep.subr.mxu0 %v4615
        %4865 = vmatpush1.msra.mxu0 %v4614
        %4866 = vmatprep.subr.mxu0 %v4623
        %4867 = vmatpush1.msra.mxu0 %v4622
        %4868 = vmatprep.subr.mxu0 0.0
        %4869 = vmatpush1.msra.mxu0 0.0
        %4870 = vmatprep.subr.mxu0 0.0
        %4871 = vmatpush1.msra.mxu0 0.0
        %4872 = vmatprep.subr.mxu0 0.0
        %4873 = vmatpush1.msra.mxu0 0.0
        %4874 = vmatprep.subr.mxu0 0.0
        %4875 = vmatpush1.msra.mxu0 0.0
        %4876 = vmatprep.subr.mxu0 0.0
        %4877 = vmatpush1.msra.mxu0 0.0
        %4878 = vmatprep.subr.mxu0 0.0
        %4879 = vmatpush1.msra.mxu0 0.0
        %4880 = vmatprep.subr.mxu0 0.0
        %4881 = vmatpush1.msra.mxu0 0.0
        %4882 = vmatprep.subr.mxu0 0.0
        %4883 = vmatpush1.msra.mxu0 0.0
        %4884 = vmatprep.subr.mxu0 0.0
        %4885 = vmatpush1.msra.mxu0 0.0
        %4886 = vmatprep.subr.mxu0 0.0
        %4887 = vmatpush1.msra.mxu0 0.0
        %4888 = vmatprep.subr.mxu0 0.0
        %4889 = vmatpush1.msra.mxu0 0.0
        %4890 = vmatprep.subr.mxu0 0.0
        %4891 = vmatpush1.msra.mxu0 0.0
        %4892 = vmatprep.subr.mxu0 0.0
        %4893 = vmatpush1.msra.mxu0 0.0
        %4894 = vmatprep.subr.mxu0 0.0
        %4895 = vmatpush1.msra.mxu0 0.0
        %4896 = vmatprep.subr.mxu0 0.0
        %4897 = vmatpush1.msra.mxu0 0.0
        %4898 = vmatprep.subr.mxu0 0.0
        %4899 = vmatpush1.msra.mxu0 0.0
        %4900 = vmatprep.subr.mxu0 0.0
        %4901 = vmatpush1.msra.mxu0 0.0
        %4902 = vmatprep.subr.mxu0 0.0
        %4903 = vmatpush1.msra.mxu0 0.0
        %4904 = vmatprep.subr.mxu0 0.0
        %4905 = vmatpush1.msra.mxu0 0.0
        %4906 = vmatprep.subr.mxu0 0.0
        %4907 = vmatpush1.msra.mxu0 0.0
        %4908 = vmatprep.subr.mxu0 0.0
        %4909 = vmatpush1.msra.mxu0 0.0
        %4910 = vmatprep.subr.mxu0 0.0
        %4911 = vmatpush1.msra.mxu0 0.0
        %4912 = vmatprep.subr.mxu0 0.0
        %4913 = vmatpush1.msra.mxu0 0.0
        %4914 = vmatprep.subr.mxu0 0.0
        %4915 = vmatpush1.msra.mxu0 0.0
        %4916 = vmatprep.mubr.f32.mxu0 0.0
        %4917 = vmatmul.mubr.f32.gmra.mrb[0].mxu0 %v4637
        %v4918 = vpop.f32.mrb[0].mxu0
        %v4919 = vadd.f32 %v4634, %v4918
        %v4920 = vpop.f32.mrb[0].mxu0
        %v4921 = vadd.f32 %v4634, %v4920
        %4922 = vdwg.mxu0
        %v4931 = vcombine.low %v4706, %v4708
        %v4932 = vcombine.low %v4777, %v4779
        %v4933 = vcombine.low %v4848, %v4850
        %v4934 = vcombine.low %v4919, %v4921
        %v4936 = vunpack.c.l.s4 1966171168
        %v4937 = vunpack.c.0.s8 %v4936
        %v4938 = vlaneseq
        %v4939 = vshrl.u32 %v4938, 7
        %v4940 = vsub.s32 %v4937, %v4939
        %v4941 = vrot.slane %v4931, %v4940
        %v4943 = vunpack.c.l.s4 1966171168
        %v4944 = vunpack.c.0.s8 %v4943
        %v4945 = vlaneseq
        %v4946 = vshrl.u32 %v4945, 7
        %v4947 = vsub.s32 %v4944, %v4946
        %v4948 = vrot.slane %v4932, %v4947
        %v4950 = vunpack.c.l.s4 1966171168
        %v4951 = vunpack.c.0.s8 %v4950
        %v4952 = vlaneseq
        %v4953 = vshrl.u32 %v4952, 7
        %v4954 = vsub.s32 %v4951, %v4953
        %v4955 = vrot.slane %v4933, %v4954
        %v4957 = vunpack.c.l.s4 1966171168
        %v4958 = vunpack.c.0.s8 %v4957
        %v4959 = vlaneseq
        %v4960 = vshrl.u32 %v4959, 7
        %v4961 = vsub.s32 %v4958, %v4960
        %v4962 = vrot.slane %v4934, %v4961
        %v4963 = vcombine.low %v4941, %v4948
        %v4964 = vcombine.low %v4955, %v4962
        %v4966 = vunpack.c.l.s4 1966171168
        %v4967 = vunpack.c.0.s8 %v4966
        %v4968 = vlaneseq
        %v4969 = vshrl.u32 %v4968, 7
        %v4970 = vsub.s32 %v4967, %v4969
        %v4971 = vrot.slane %v4963, %v4970
        %v4973 = vunpack.c.l.s4 1966171168
        %v4974 = vunpack.c.0.s8 %v4973
        %v4975 = vlaneseq
        %v4976 = vshrl.u32 %v4975, 7
        %v4977 = vsub.s32 %v4974, %v4976
        %v4978 = vrot.slane %v4964, %v4977
        %v4979 = vcombine.low %v4971, %v4978
        %4981 = vst [vmem:[%s289] sm:$0xff] %v4979
        %s4982 = sand.u32 %s159, 1
        %s4983 = scalar_lea.sflag [#allocation5], %s4982
        %s4984 = sand.u32 %s159, 1
        %s4985 = smul.addr %s4984, 8
        %s4986 = scalar_lea.vmem [#allocation9], %s4985
        // Predicated region
        $region53: #{tpu_custom_call.1} parent=39 // pred_check
          %p4987 = pneg %p169
        $region54: #{tpu_custom_call.1} parent=39 // pred_check_branch
          %4989 = sbr.rel (%p4987) target = $region56
        $region55: #{tpu_custom_call.1} parent=39 // pred_region
          %s4990 = smul.u32 8, %s30
          %s4992 = ssub.s32 128, 128
          %4993 = vsyncadd %s4983, %s4992
          %s4994 = smul.addr %s29, 8
          %s4995 = sadd.s32 %s4990, %s4994
          %s4996 = smul.addr %s4995, 16
          %s4997 = scalar_lea.hbm %s5, %s4996
          %s4999 = sshll.u32 %s4986, 4
          %s5000 = int_to_ptr.vmem [resolvable:$true] %s4999
          %5002 = dma.vmem_to_hbm [thread:$0]  %s5000, 128, %s4997, %s4983
        $region56: #{tpu_custom_call.1} parent=39 // pred_fallthru
          _
      $region40: #{tpu_custom_call.1} parent=5 // pred_fallthru
        _
      %p5003 = scmp.le.s32.totalorder 2, %s20
      // Predicated region
      $region57: #{tpu_custom_call.1} parent=5 // pred_check
        %p5004 = pneg %p5003
      $region58: #{tpu_custom_call.1} parent=5 // pred_check_branch
        %5006 = sbr.rel (%p5004) target = $region60
      $region59: #{tpu_custom_call.1} parent=5 // pred_region
        %s5007 = ssub.s32 %s20, 2
        // Predicated region
        $region61: #{tpu_custom_call.1} parent=59 // pred_check
          %p5008 = pneg %p175
        $region62: #{tpu_custom_call.1} parent=59 // pred_check_branch
          %5010 = sbr.rel (%p5008) target = $region64
        $region63: #{tpu_custom_call.1} parent=59 // pred_region
          %s5011 = sand.u32 %s160, 1
          %s5012 = scalar_lea.sflag [#allocation5], %s5011
          %s5013 = sand.u32 %s160, 1
          %s5014 = smul.addr %s5013, 8
          %s5015 = scalar_lea.vmem [#allocation9], %s5014
          %5016 = dma.done %s5012, 128
        $region64: #{tpu_custom_call.1} parent=59 // pred_fallthru
          _
      $region60: #{tpu_custom_call.1} parent=5 // pred_fallthru
        _
    $region6: #{tpu_custom_call.1} parent=1 // loop_footer
      %s24 = sadd.s32 1, %s20
    $region7: #{tpu_custom_call.1} parent=1 // loop_footer_branch
      %19 = sbr.rel target = $region3
    $region8: #{tpu_custom_call.1} parent=1 // loop_exit
      _
    %5017 = vsyncpa [#allocation4], 1
    %s5018 = scalar_lea.sflag [#allocation4], 1
    %5019 = vsyncpa %s5018, 1
    %5020 = vsyncpa [#allocation7], 1
    %5021 = vsyncpa [#allocation5], 1
    %s5022 = scalar_lea.sflag [#allocation5], 1
    %5023 = vsyncpa %s5022, 1

</llo_original>
